<compile_context>
chip_gen: v6e
topology: v6e:2x2x1
jax: 0.10.0
libtpu: 0.0.40
codegen_flags: <defaults>
</compile_context>

<pallas_src>
import numpy as np

import jax
import jax.numpy as jnp
from jax import lax
from jax.experimental import pallas as pl
from jax.experimental.pallas import tpu as pltpu

EMB = 32
N_COL_FEAT = 7
N_ROW_FEAT = 7
N_CUTSEL = 4
LN_EPS = 1e-5


# ----------------------------- shared math helpers -----------------------------

def _layernorm(x, g, b, eps=LN_EPS):
    mean = jnp.mean(x, axis=-1, keepdims=True)
    var = jnp.mean(jnp.square(x - mean), axis=-1, keepdims=True)
    return (x - mean) * lax.rsqrt(var + eps) * g + b


def _dot(a, b):
    return jnp.dot(a, b, preferred_element_type=jnp.float32)


# ----------------------------- fused Pallas kernel -----------------------------

def gnn_fused_kernel(*refs):
    (src_ref, dst_ref, colf_ref, rowf_ref,
     # col embedding params
     ce_g, ce_b, ce_w1, ce_b1, ce_w2, ce_b2,
     # row embedding params
     re_g, re_b, re_w1, re_b1, re_w2, re_b2,
     # conv_col_to_row params (edge bias already folded into c1_lb)
     c1_lw, c1_lb, c1_rw, c1_fg, c1_fb, c1_fw, c1_fbias,
     c1_pg, c1_pb, c1_o1a, c1_o1bw, c1_o1bias, c1_o2w, c1_o2b,
     # conv_row_to_col params (edge bias already folded into c2_lb)
     c2_lw, c2_lb, c2_rw, c2_fg, c2_fb, c2_fw, c2_fbias,
     c2_pg, c2_pb, c2_o1a, c2_o1bw, c2_o1bias, c2_o2w, c2_o2b,
     # output head params
     ow1, ob1, ow2,
     # output
     o_ref) = refs

    n_edges = src_ref.shape[0]
    n_cols = colf_ref.shape[0]
    n_rows = rowf_ref.shape[0]

    def embed(x, g, b, w1, b1, w2, b2):
        h = _layernorm(x, g, b)
        h = jnp.maximum(_dot(h, w1) + b1, 0.0)
        return jnp.maximum(_dot(h, w2) + b2, 0.0)

    col_emb = embed(colf_ref[...], ce_g[...], ce_b[...], ce_w1[...], ce_b1[...],
                    ce_w2[...], ce_b2[...])                               # [Nc, 32]
    row_emb = embed(rowf_ref[...], re_g[...], re_b[...], re_w1[...], re_b1[...],
                    re_w2[...], re_b2[...])                               # [Nr, 32]

    # Gather/scatter one-hot operators built in-kernel from the [E,1] index vectors
    # (exact 0/1 values -> one-hot matmul gather/scatter is exact in f32).
    oh_src = jnp.where(
        src_ref[...] == lax.broadcasted_iota(jnp.int32, (n_edges, n_cols), 1),
        1.0, 0.0)                                                         # [E, Nc]
    oh_dst = jnp.where(
        dst_ref[...] == lax.broadcasted_iota(jnp.int32, (n_edges, n_rows), 1),
        1.0, 0.0)                                                         # [E, Nr]

    # Shared gather: col_emb[src] is x_j of conv1 AND x_i of conv2 -- compute once.
    col_at_src = _dot(oh_src, col_emb)                                    # [E, 32]

    def conv(x_i, x_j, oh_scatter, right,
             lw, lb, rw, fg, fb, fw, fbias, pg, pb, o1a, o1bw, o1bias, o2w, o2b):
        # message: feature_module_final(left(x_i) + edge(e) + right(x_j))
        # (edge term is a constant row already folded into lb on the host)
        pre = _dot(x_i, lw) + lb + _dot(x_j, rw)                          # [E, 32]
        msg = _dot(jnp.maximum(_layernorm(pre, fg, fb), 0.0), fw) + fbias
        # 'add' aggregation onto target nodes: oh_scatter.T @ msg
        agg = lax.dot_general(oh_scatter, msg, (((0,), (0,)), ((), ())),
                              preferred_element_type=jnp.float32)         # [Nt, 32]
        post = _layernorm(agg, pg, pb)
        # output_module(concat([post, right], -1)) with the concat folded into
        # split weights (two K=32 dots).
        h = jnp.maximum(_dot(post, o1a) + _dot(right, o1bw) + o1bias, 0.0)
        return _dot(h, o2w) + o2b

    # conv_col_to_row: source = cols (x_j = col_emb[src]), target = rows
    # (x_i = row_emb[dst]), scatter-add by dst.
    row_at_dst = _dot(oh_dst, row_emb)                                    # [E, 32]
    row_h = conv(row_at_dst, col_at_src, oh_dst, row_emb,
                 c1_lw[...], c1_lb[...], c1_rw[...], c1_fg[...], c1_fb[...],
                 c1_fw[...], c1_fbias[...], c1_pg[...], c1_pb[...],
                 c1_o1a[...], c1_o1bw[...], c1_o1bias[...], c1_o2w[...], c1_o2b[...])

    # conv_row_to_col (reversed edges): source = rows (x_j = row_h[dst]),
    # target = cols (x_i = col_emb[src], reused), scatter-add by src.
    rowh_at_dst = _dot(oh_dst, row_h)                                     # [E, 32]
    col_h = conv(col_at_src, rowh_at_dst, oh_src, col_emb,
                 c2_lw[...], c2_lb[...], c2_rw[...], c2_fg[...], c2_fb[...],
                 c2_fw[...], c2_fbias[...], c2_pg[...], c2_pb[...],
                 c2_o1a[...], c2_o1bw[...], c2_o1bias[...], c2_o2w[...], c2_o2b[...])

    # output head: Linear+ReLU -> Linear(no bias)+ReLU -> L1-normalize -> mean over nodes
    y = jnp.maximum(_dot(col_h, ow1[...]) + ob1[...], 0.0)
    y = jnp.maximum(_dot(y, ow2[...]), 0.0)                               # [Nc, 4]
    y = y / jnp.maximum(jnp.sum(jnp.abs(y), axis=-1, keepdims=True), 1e-12)
    o_ref[...] = jnp.mean(y, axis=0, keepdims=True)                       # [1, 4]


# ----------------------------- wrapper -----------------------------

def _full_spec(shape):
    nd = len(shape)
    return pl.BlockSpec(shape, lambda i, _nd=nd: (0,) * _nd)


def _emb_args(p):
    return [p["ln_g"], p["ln_b"], p["w1"], p["b1"], p["w2"], p["b2"]]


def _conv_args(p, edge_ln_b):
    # LayerNorm(1)(x) == its learned bias (x-mean == 0 exactly), so the per-edge
    # edge contribution is the constant row edge_ln_b * fme_w: fold it into fml_b.
    bias_eff = p["fml_b"] + edge_ln_b * p["fme_w"]
    return [p["fml_w"], bias_eff, p["fmr_w"],
            p["fin_g"], p["fin_b"], p["fin_w"], p["fin_bias"],
            p["post_g"], p["post_b"],
            p["o1_wa"], p["o1_wb"], p["o1_b"],
            p["o2_w"], p["o2_b"]]


@jax.jit
def gnn_policy_forward(edge_indices, coefficients, col_features, row_features, params):
    # `coefficients` is mathematically inert (LayerNorm over 1 feature collapses to its
    # bias) -- this matches the torch semantics; the learned LN bias is folded below.
    del coefficients

    n_cols = col_features.shape[0]
    n_rows = row_features.shape[0]
    n_edges = edge_indices.shape[1]

    src = edge_indices[0].astype(jnp.int32).reshape(n_edges, 1)   # indexes cols
    dst = edge_indices[1].astype(jnp.int32).reshape(n_edges, 1)   # indexes rows

    edge_ln_b = params["edge_embedding"]["ln_b"]                  # [1, 1]
    po = params["output_module"]

    args = ([src, dst, col_features, row_features]
            + _emb_args(params["col_embedding"])
            + _emb_args(params["row_embedding"])
            + _conv_args(params["conv_col_to_row"], edge_ln_b)
            + _conv_args(params["conv_row_to_col"], edge_ln_b)
            + [po["w1"], po["b1"], po["w2"]])

    # advisory cost estimate (static shapes)
    gather_macs = EMB * n_edges * (2 * n_cols + 3 * n_rows)
    dense_macs = ((n_cols + n_rows) * (N_COL_FEAT * EMB + EMB * EMB)     # embeddings
                  + 2 * n_edges * 3 * EMB * EMB                          # conv message paths
                  + (n_cols + n_rows) * 3 * EMB * EMB                    # conv output paths
                  + n_cols * (EMB * EMB + EMB * N_CUTSEL))               # head
    bytes_accessed = sum(int(np.prod(a.shape)) * np.dtype(a.dtype).itemsize for a in args)
    bytes_accessed += N_CUTSEL * 4
    cost = pl.CostEstimate(
        flops=int(2 * (gather_macs + dense_macs)),
        transcendentals=int(2 * n_edges + 2 * (n_cols + n_rows)),
        bytes_accessed=int(bytes_accessed))

    out = pl.pallas_call(
        gnn_fused_kernel,
        grid=(1,),
        in_specs=[_full_spec(a.shape) for a in args],
        out_specs=_full_spec((1, N_CUTSEL)),
        out_shape=jax.ShapeDtypeStruct((1, N_CUTSEL), jnp.float32),
        compiler_params=pltpu.CompilerParams(
            dimension_semantics=("arbitrary",),
            vmem_limit_bytes=32 * 1024 * 1024),
        cost_estimate=cost,
    )(*args)
    return out.reshape(N_CUTSEL)


# ----------------------------- parameter init -----------------------------

class KeyGen:
    def __init__(self, key):
        self._key = key

    def __call__(self):
        self._key, sub = jax.random.split(self._key)
        return sub


def _lin(kg, din, dout, scale=0.2):
    return jax.random.normal(kg(), (din, dout), jnp.float32) * scale


def _vec(kg, d, scale=0.1):
    return jax.random.normal(kg(), (1, d), jnp.float32) * scale


def init_embedding(kg, f):
    return dict(ln_g=1.0 + _vec(kg, f), ln_b=_vec(kg, f),
                w1=_lin(kg, f, EMB), b1=_vec(kg, EMB),
                w2=_lin(kg, EMB, EMB), b2=_vec(kg, EMB))


def init_conv(kg):
    return dict(
        fml_w=_lin(kg, EMB, EMB), fml_b=_vec(kg, EMB),
        fme_w=_lin(kg, 1, EMB),
        fmr_w=_lin(kg, EMB, EMB),
        fin_g=1.0 + _vec(kg, EMB), fin_b=_vec(kg, EMB),
        fin_w=_lin(kg, EMB, EMB), fin_bias=_vec(kg, EMB),
        post_g=1.0 + _vec(kg, EMB), post_b=_vec(kg, EMB),
        o1_wa=_lin(kg, EMB, EMB), o1_wb=_lin(kg, EMB, EMB), o1_b=_vec(kg, EMB),
        o2_w=_lin(kg, EMB, EMB), o2_b=_vec(kg, EMB))


def init_params(key):
    kg = KeyGen(key)
    return dict(
        row_embedding=init_embedding(kg, N_ROW_FEAT),
        col_embedding=init_embedding(kg, N_COL_FEAT),
        edge_embedding=dict(ln_g=1.0 + _vec(kg, 1), ln_b=_vec(kg, 1)),
        conv_col_to_row=init_conv(kg),
        conv_row_to_col=init_conv(kg),
        output_module=dict(w1=_lin(kg, EMB, EMB), b1=_vec(kg, EMB),
                           w2=_lin(kg, EMB, N_CUTSEL)))


# ----------------------------- pure-JAX reference (unfused, unfolded) -----------------------------

def _ref_embed(x, p):
    h = _layernorm(x, p["ln_g"], p["ln_b"])
    h = jnp.maximum(h @ p["w1"] + p["b1"], 0.0)
    return jnp.maximum(h @ p["w2"] + p["b2"], 0.0)


def _ref_conv(src, dst, left, right, edge_feat, n_right, p):
    x_j = left[src]
    x_i = right[dst]
    pre = x_i @ p["fml_w"] + p["fml_b"] + edge_feat @ p["fme_w"] + x_j @ p["fmr_w"]
    msg = jnp.maximum(_layernorm(pre, p["fin_g"], p["fin_b"]), 0.0) @ p["fin_w"] + p["fin_bias"]
    agg = jnp.zeros((n_right, EMB), jnp.float32).at[dst].add(msg)
    post = _layernorm(agg, p["post_g"], p["post_b"])
    h = jnp.maximum(post @ p["o1_wa"] + right @ p["o1_wb"] + p["o1_b"], 0.0)
    return h @ p["o2_w"] + p["o2_b"]


def reference_forward(edge_indices, coefficients, col_features, row_features, params):
    src, dst = edge_indices[0], edge_indices[1]
    row_emb = _ref_embed(row_features, params["row_embedding"])
    col_emb = _ref_embed(col_features, params["col_embedding"])
    pe = params["edge_embedding"]
    edge_emb = _layernorm(coefficients, pe["ln_g"], pe["ln_b"])
    row_h = _ref_conv(src, dst, col_emb, row_emb, edge_emb, row_emb.shape[0],
                      params["conv_col_to_row"])
    col_h = _ref_conv(dst, src, row_h, col_emb, edge_emb, col_emb.shape[0],
                      params["conv_row_to_col"])
    po = params["output_module"]
    y = jnp.maximum(jnp.maximum(col_h @ po["w1"] + po["b1"], 0.0) @ po["w2"], 0.0)
    y = y / jnp.maximum(jnp.sum(jnp.abs(y), axis=1, keepdims=True), 1e-12)
    return jnp.mean(y, axis=0)


# ----------------------------- main -----------------------------

if __name__ == "__main__":
    n_cols, n_rows, n_edges = 12, 10, 24

    kg = KeyGen(jax.random.PRNGKey(0))
    params = init_params(kg())

    col_features = jax.random.normal(kg(), (n_cols, N_COL_FEAT), jnp.float32)
    row_features = jax.random.normal(kg(), (n_rows, N_ROW_FEAT), jnp.float32)
    coefficients = jax.random.normal(kg(), (n_edges, 1), jnp.float32)
    e_src = jax.random.randint(kg(), (n_edges,), 0, n_cols)   # column indices
    e_dst = jax.random.randint(kg(), (n_edges,), 0, n_rows)   # row indices
    edge_indices = jnp.stack([e_src, e_dst], axis=0)

    out = gnn_policy_forward(edge_indices, coefficients, col_features, row_features, params)
    out = jax.block_until_ready(out)

    ref = reference_forward(edge_indices, coefficients, col_features, row_features, params)
    assert out.shape == (N_CUTSEL,)
    assert jnp.allclose(out, ref, rtol=2e-4, atol=2e-5), (out, ref)

    print("KERNEL_OK")
</pallas_src>

<mosaic_0001>
module attributes {stable_mosaic.version = 11 : i64} {
  func.func @gnn_fused_kernel(%arg0: i32, %arg1: memref<24x1xi32, #tpu.memory_space<vmem>>, %arg2: memref<24x1xi32, #tpu.memory_space<vmem>>, %arg3: memref<12x7xf32, #tpu.memory_space<vmem>>, %arg4: memref<10x7xf32, #tpu.memory_space<vmem>>, %arg5: memref<1x7xf32, #tpu.memory_space<vmem>>, %arg6: memref<1x7xf32, #tpu.memory_space<vmem>>, %arg7: memref<7x32xf32, #tpu.memory_space<vmem>>, %arg8: memref<1x32xf32, #tpu.memory_space<vmem>>, %arg9: memref<32x32xf32, #tpu.memory_space<vmem>>, %arg10: memref<1x32xf32, #tpu.memory_space<vmem>>, %arg11: memref<1x7xf32, #tpu.memory_space<vmem>>, %arg12: memref<1x7xf32, #tpu.memory_space<vmem>>, %arg13: memref<7x32xf32, #tpu.memory_space<vmem>>, %arg14: memref<1x32xf32, #tpu.memory_space<vmem>>, %arg15: memref<32x32xf32, #tpu.memory_space<vmem>>, %arg16: memref<1x32xf32, #tpu.memory_space<vmem>>, %arg17: memref<32x32xf32, #tpu.memory_space<vmem>>, %arg18: memref<1x32xf32, #tpu.memory_space<vmem>>, %arg19: memref<32x32xf32, #tpu.memory_space<vmem>>, %arg20: memref<1x32xf32, #tpu.memory_space<vmem>>, %arg21: memref<1x32xf32, #tpu.memory_space<vmem>>, %arg22: memref<32x32xf32, #tpu.memory_space<vmem>>, %arg23: memref<1x32xf32, #tpu.memory_space<vmem>>, %arg24: memref<1x32xf32, #tpu.memory_space<vmem>>, %arg25: memref<1x32xf32, #tpu.memory_space<vmem>>, %arg26: memref<32x32xf32, #tpu.memory_space<vmem>>, %arg27: memref<32x32xf32, #tpu.memory_space<vmem>>, %arg28: memref<1x32xf32, #tpu.memory_space<vmem>>, %arg29: memref<32x32xf32, #tpu.memory_space<vmem>>, %arg30: memref<1x32xf32, #tpu.memory_space<vmem>>, %arg31: memref<32x32xf32, #tpu.memory_space<vmem>>, %arg32: memref<1x32xf32, #tpu.memory_space<vmem>>, %arg33: memref<32x32xf32, #tpu.memory_space<vmem>>, %arg34: memref<1x32xf32, #tpu.memory_space<vmem>>, %arg35: memref<1x32xf32, #tpu.memory_space<vmem>>, %arg36: memref<32x32xf32, #tpu.memory_space<vmem>>, %arg37: memref<1x32xf32, #tpu.memory_space<vmem>>, %arg38: memref<1x32xf32, #tpu.memory_space<vmem>>, %arg39: memref<1x32xf32, #tpu.memory_space<vmem>>, %arg40: memref<32x32xf32, #tpu.memory_space<vmem>>, %arg41: memref<32x32xf32, #tpu.memory_space<vmem>>, %arg42: memref<1x32xf32, #tpu.memory_space<vmem>>, %arg43: memref<32x32xf32, #tpu.memory_space<vmem>>, %arg44: memref<1x32xf32, #tpu.memory_space<vmem>>, %arg45: memref<32x32xf32, #tpu.memory_space<vmem>>, %arg46: memref<1x32xf32, #tpu.memory_space<vmem>>, %arg47: memref<32x4xf32, #tpu.memory_space<vmem>>, %arg48: memref<1x4xf32, #tpu.memory_space<vmem>>) attributes {dimension_semantics = [#tpu.dimension_semantics<arbitrary>], iteration_bounds = array<i64: 1>, scalar_prefetch = 0 : i64, scratch_operands = 0 : i64, tpu.core_type = #tpu.core_type<tc>, window_params = [{pipeline_mode = #tpu.pipeline_mode<synchronous>, transform_indices = @transform_0, window_bounds = array<i64: 24, 1>}, {pipeline_mode = #tpu.pipeline_mode<synchronous>, transform_indices = @transform_1, window_bounds = array<i64: 24, 1>}, {pipeline_mode = #tpu.pipeline_mode<synchronous>, transform_indices = @transform_2, window_bounds = array<i64: 12, 7>}, {pipeline_mode = #tpu.pipeline_mode<synchronous>, transform_indices = @transform_3, window_bounds = array<i64: 10, 7>}, {pipeline_mode = #tpu.pipeline_mode<synchronous>, transform_indices = @transform_4, window_bounds = array<i64: 1, 7>}, {pipeline_mode = #tpu.pipeline_mode<synchronous>, transform_indices = @transform_5, window_bounds = array<i64: 1, 7>}, {pipeline_mode = #tpu.pipeline_mode<synchronous>, transform_indices = @transform_6, window_bounds = array<i64: 7, 32>}, {pipeline_mode = #tpu.pipeline_mode<synchronous>, transform_indices = @transform_7, window_bounds = array<i64: 1, 32>}, {pipeline_mode = #tpu.pipeline_mode<synchronous>, transform_indices = @transform_8, window_bounds = array<i64: 32, 32>}, {pipeline_mode = #tpu.pipeline_mode<synchronous>, transform_indices = @transform_9, window_bounds = array<i64: 1, 32>}, {pipeline_mode = #tpu.pipeline_mode<synchronous>, transform_indices = @transform_10, window_bounds = array<i64: 1, 7>}, {pipeline_mode = #tpu.pipeline_mode<synchronous>, transform_indices = @transform_11, window_bounds = array<i64: 1, 7>}, {pipeline_mode = #tpu.pipeline_mode<synchronous>, transform_indices = @transform_12, window_bounds = array<i64: 7, 32>}, {pipeline_mode = #tpu.pipeline_mode<synchronous>, transform_indices = @transform_13, window_bounds = array<i64: 1, 32>}, {pipeline_mode = #tpu.pipeline_mode<synchronous>, transform_indices = @transform_14, window_bounds = array<i64: 32, 32>}, {pipeline_mode = #tpu.pipeline_mode<synchronous>, transform_indices = @transform_15, window_bounds = array<i64: 1, 32>}, {pipeline_mode = #tpu.pipeline_mode<synchronous>, transform_indices = @transform_16, window_bounds = array<i64: 32, 32>}, {pipeline_mode = #tpu.pipeline_mode<synchronous>, transform_indices = @transform_17, window_bounds = array<i64: 1, 32>}, {pipeline_mode = #tpu.pipeline_mode<synchronous>, transform_indices = @transform_18, window_bounds = array<i64: 32, 32>}, {pipeline_mode = #tpu.pipeline_mode<synchronous>, transform_indices = @transform_19, window_bounds = array<i64: 1, 32>}, {pipeline_mode = #tpu.pipeline_mode<synchronous>, transform_indices = @transform_20, window_bounds = array<i64: 1, 32>}, {pipeline_mode = #tpu.pipeline_mode<synchronous>, transform_indices = @transform_21, window_bounds = array<i64: 32, 32>}, {pipeline_mode = #tpu.pipeline_mode<synchronous>, transform_indices = @transform_22, window_bounds = array<i64: 1, 32>}, {pipeline_mode = #tpu.pipeline_mode<synchronous>, transform_indices = @transform_23, window_bounds = array<i64: 1, 32>}, {pipeline_mode = #tpu.pipeline_mode<synchronous>, transform_indices = @transform_24, window_bounds = array<i64: 1, 32>}, {pipeline_mode = #tpu.pipeline_mode<synchronous>, transform_indices = @transform_25, window_bounds = array<i64: 32, 32>}, {pipeline_mode = #tpu.pipeline_mode<synchronous>, transform_indices = @transform_26, window_bounds = array<i64: 32, 32>}, {pipeline_mode = #tpu.pipeline_mode<synchronous>, transform_indices = @transform_27, window_bounds = array<i64: 1, 32>}, {pipeline_mode = #tpu.pipeline_mode<synchronous>, transform_indices = @transform_28, window_bounds = array<i64: 32, 32>}, {pipeline_mode = #tpu.pipeline_mode<synchronous>, transform_indices = @transform_29, window_bounds = array<i64: 1, 32>}, {pipeline_mode = #tpu.pipeline_mode<synchronous>, transform_indices = @transform_30, window_bounds = array<i64: 32, 32>}, {pipeline_mode = #tpu.pipeline_mode<synchronous>, transform_indices = @transform_31, window_bounds = array<i64: 1, 32>}, {pipeline_mode = #tpu.pipeline_mode<synchronous>, transform_indices = @transform_32, window_bounds = array<i64: 32, 32>}, {pipeline_mode = #tpu.pipeline_mode<synchronous>, transform_indices = @transform_33, window_bounds = array<i64: 1, 32>}, {pipeline_mode = #tpu.pipeline_mode<synchronous>, transform_indices = @transform_34, window_bounds = array<i64: 1, 32>}, {pipeline_mode = #tpu.pipeline_mode<synchronous>, transform_indices = @transform_35, window_bounds = array<i64: 32, 32>}, {pipeline_mode = #tpu.pipeline_mode<synchronous>, transform_indices = @transform_36, window_bounds = array<i64: 1, 32>}, {pipeline_mode = #tpu.pipeline_mode<synchronous>, transform_indices = @transform_37, window_bounds = array<i64: 1, 32>}, {pipeline_mode = #tpu.pipeline_mode<synchronous>, transform_indices = @transform_38, window_bounds = array<i64: 1, 32>}, {pipeline_mode = #tpu.pipeline_mode<synchronous>, transform_indices = @transform_39, window_bounds = array<i64: 32, 32>}, {pipeline_mode = #tpu.pipeline_mode<synchronous>, transform_indices = @transform_40, window_bounds = array<i64: 32, 32>}, {pipeline_mode = #tpu.pipeline_mode<synchronous>, transform_indices = @transform_41, window_bounds = array<i64: 1, 32>}, {pipeline_mode = #tpu.pipeline_mode<synchronous>, transform_indices = @transform_42, window_bounds = array<i64: 32, 32>}, {pipeline_mode = #tpu.pipeline_mode<synchronous>, transform_indices = @transform_43, window_bounds = array<i64: 1, 32>}, {pipeline_mode = #tpu.pipeline_mode<synchronous>, transform_indices = @transform_44, window_bounds = array<i64: 32, 32>}, {pipeline_mode = #tpu.pipeline_mode<synchronous>, transform_indices = @transform_45, window_bounds = array<i64: 1, 32>}, {pipeline_mode = #tpu.pipeline_mode<synchronous>, transform_indices = @transform_46, window_bounds = array<i64: 32, 4>}, {pipeline_mode = #tpu.pipeline_mode<synchronous>, transform_indices = @transform_47, window_bounds = array<i64: 1, 4>}]} {
    %c0 = arith.constant 0 : index
    %c0_0 = arith.constant 0 : index
    %0 = vector.load %arg3[%c0, %c0_0] : memref<12x7xf32, #tpu.memory_space<vmem>>, vector<12x7xf32>
    %c0_1 = arith.constant 0 : index
    %c0_2 = arith.constant 0 : index
    %1 = vector.load %arg5[%c0_1, %c0_2] : memref<1x7xf32, #tpu.memory_space<vmem>>, vector<1x7xf32>
    %c0_3 = arith.constant 0 : index
    %c0_4 = arith.constant 0 : index
    %2 = vector.load %arg6[%c0_3, %c0_4] : memref<1x7xf32, #tpu.memory_space<vmem>>, vector<1x7xf32>
    %c0_5 = arith.constant 0 : index
    %c0_6 = arith.constant 0 : index
    %3 = vector.load %arg7[%c0_5, %c0_6] : memref<7x32xf32, #tpu.memory_space<vmem>>, vector<7x32xf32>
    %c0_7 = arith.constant 0 : index
    %c0_8 = arith.constant 0 : index
    %4 = vector.load %arg8[%c0_7, %c0_8] : memref<1x32xf32, #tpu.memory_space<vmem>>, vector<1x32xf32>
    %c0_9 = arith.constant 0 : index
    %c0_10 = arith.constant 0 : index
    %5 = vector.load %arg9[%c0_9, %c0_10] : memref<32x32xf32, #tpu.memory_space<vmem>>, vector<32x32xf32>
    %c0_11 = arith.constant 0 : index
    %c0_12 = arith.constant 0 : index
    %6 = vector.load %arg10[%c0_11, %c0_12] : memref<1x32xf32, #tpu.memory_space<vmem>>, vector<1x32xf32>
    %cst = arith.constant dense<0.000000e+00> : vector<12xf32>
    %7 = vector.multi_reduction <add>, %0, %cst [1] : vector<12x7xf32> to vector<12xf32>
    %8 = vector.shape_cast %7 : vector<12xf32> to vector<12x1xf32>
    %cst_13 = arith.constant 7.000000e+00 : f32
    %9 = vector.broadcast %cst_13 : f32 to vector<12x1xf32>
    %10 = arith.divf %8, %9 : vector<12x1xf32>
    %11 = vector.broadcast %10 : vector<12x1xf32> to vector<12x7xf32>
    %12 = arith.subf %0, %11 : vector<12x7xf32>
    %13 = arith.mulf %12, %12 : vector<12x7xf32>
    %cst_14 = arith.constant dense<0.000000e+00> : vector<12xf32>
    %14 = vector.multi_reduction <add>, %13, %cst_14 [1] : vector<12x7xf32> to vector<12xf32>
    %15 = vector.shape_cast %14 : vector<12xf32> to vector<12x1xf32>
    %cst_15 = arith.constant 7.000000e+00 : f32
    %16 = vector.broadcast %cst_15 : f32 to vector<12x1xf32>
    %17 = arith.divf %15, %16 : vector<12x1xf32>
    %18 = vector.broadcast %10 : vector<12x1xf32> to vector<12x7xf32>
    %19 = arith.subf %0, %18 : vector<12x7xf32>
    %cst_16 = arith.constant 9.99999974E-6 : f32
    %20 = vector.broadcast %cst_16 : f32 to vector<12x1xf32>
    %21 = arith.addf %17, %20 : vector<12x1xf32>
    %22 = math.rsqrt %21 : vector<12x1xf32>
    %23 = vector.broadcast %22 : vector<12x1xf32> to vector<12x7xf32>
    %24 = arith.mulf %19, %23 : vector<12x7xf32>
    %25 = vector.broadcast %1 : vector<1x7xf32> to vector<12x7xf32>
    %26 = arith.mulf %24, %25 : vector<12x7xf32>
    %27 = vector.broadcast %2 : vector<1x7xf32> to vector<12x7xf32>
    %28 = arith.addf %26, %27 : vector<12x7xf32>
    %cst_17 = arith.constant dense<0.000000e+00> : vector<12x32xf32>
    %29 = tpu.matmul %28, %3, %cst_17 {dimension_numbers = #tpu.dot_dimension_numbers<[1], [0], [0], [1], [0, 0, 1, 1], [], []>} : vector<12x7xf32>, vector<7x32xf32>, vector<12x32xf32> -> vector<12x32xf32>
    %30 = vector.broadcast %4 : vector<1x32xf32> to vector<12x32xf32>
    %31 = arith.addf %29, %30 : vector<12x32xf32>
    %cst_18 = arith.constant 0.000000e+00 : f32
    %32 = vector.broadcast %cst_18 : f32 to vector<12x32xf32>
    %33 = arith.maximumf %31, %32 : vector<12x32xf32>
    %cst_19 = arith.constant dense<0.000000e+00> : vector<12x32xf32>
    %34 = tpu.matmul %33, %5, %cst_19 {dimension_numbers = #tpu.dot_dimension_numbers<[1], [0], [0], [1], [0, 0, 1, 1], [], []>} : vector<12x32xf32>, vector<32x32xf32>, vector<12x32xf32> -> vector<12x32xf32>
    %35 = vector.broadcast %6 : vector<1x32xf32> to vector<12x32xf32>
    %36 = arith.addf %34, %35 : vector<12x32xf32>
    %cst_20 = arith.constant 0.000000e+00 : f32
    %37 = vector.broadcast %cst_20 : f32 to vector<12x32xf32>
    %38 = arith.maximumf %36, %37 : vector<12x32xf32>
    %c0_21 = arith.constant 0 : index
    %c0_22 = arith.constant 0 : index
    %39 = vector.load %arg4[%c0_21, %c0_22] : memref<10x7xf32, #tpu.memory_space<vmem>>, vector<10x7xf32>
    %c0_23 = arith.constant 0 : index
    %c0_24 = arith.constant 0 : index
    %40 = vector.load %arg11[%c0_23, %c0_24] : memref<1x7xf32, #tpu.memory_space<vmem>>, vector<1x7xf32>
    %c0_25 = arith.constant 0 : index
    %c0_26 = arith.constant 0 : index
    %41 = vector.load %arg12[%c0_25, %c0_26] : memref<1x7xf32, #tpu.memory_space<vmem>>, vector<1x7xf32>
    %c0_27 = arith.constant 0 : index
    %c0_28 = arith.constant 0 : index
    %42 = vector.load %arg13[%c0_27, %c0_28] : memref<7x32xf32, #tpu.memory_space<vmem>>, vector<7x32xf32>
    %c0_29 = arith.constant 0 : index
    %c0_30 = arith.constant 0 : index
    %43 = vector.load %arg14[%c0_29, %c0_30] : memref<1x32xf32, #tpu.memory_space<vmem>>, vector<1x32xf32>
    %c0_31 = arith.constant 0 : index
    %c0_32 = arith.constant 0 : index
    %44 = vector.load %arg15[%c0_31, %c0_32] : memref<32x32xf32, #tpu.memory_space<vmem>>, vector<32x32xf32>
    %c0_33 = arith.constant 0 : index
    %c0_34 = arith.constant 0 : index
    %45 = vector.load %arg16[%c0_33, %c0_34] : memref<1x32xf32, #tpu.memory_space<vmem>>, vector<1x32xf32>
    %cst_35 = arith.constant dense<0.000000e+00> : vector<10xf32>
    %46 = vector.multi_reduction <add>, %39, %cst_35 [1] : vector<10x7xf32> to vector<10xf32>
    %47 = vector.shape_cast %46 : vector<10xf32> to vector<10x1xf32>
    %cst_36 = arith.constant 7.000000e+00 : f32
    %48 = vector.broadcast %cst_36 : f32 to vector<10x1xf32>
    %49 = arith.divf %47, %48 : vector<10x1xf32>
    %50 = vector.broadcast %49 : vector<10x1xf32> to vector<10x7xf32>
    %51 = arith.subf %39, %50 : vector<10x7xf32>
    %52 = arith.mulf %51, %51 : vector<10x7xf32>
    %cst_37 = arith.constant dense<0.000000e+00> : vector<10xf32>
    %53 = vector.multi_reduction <add>, %52, %cst_37 [1] : vector<10x7xf32> to vector<10xf32>
    %54 = vector.shape_cast %53 : vector<10xf32> to vector<10x1xf32>
    %cst_38 = arith.constant 7.000000e+00 : f32
    %55 = vector.broadcast %cst_38 : f32 to vector<10x1xf32>
    %56 = arith.divf %54, %55 : vector<10x1xf32>
    %57 = vector.broadcast %49 : vector<10x1xf32> to vector<10x7xf32>
    %58 = arith.subf %39, %57 : vector<10x7xf32>
    %cst_39 = arith.constant 9.99999974E-6 : f32
    %59 = vector.broadcast %cst_39 : f32 to vector<10x1xf32>
    %60 = arith.addf %56, %59 : vector<10x1xf32>
    %61 = math.rsqrt %60 : vector<10x1xf32>
    %62 = vector.broadcast %61 : vector<10x1xf32> to vector<10x7xf32>
    %63 = arith.mulf %58, %62 : vector<10x7xf32>
    %64 = vector.broadcast %40 : vector<1x7xf32> to vector<10x7xf32>
    %65 = arith.mulf %63, %64 : vector<10x7xf32>
    %66 = vector.broadcast %41 : vector<1x7xf32> to vector<10x7xf32>
    %67 = arith.addf %65, %66 : vector<10x7xf32>
    %cst_40 = arith.constant dense<0.000000e+00> : vector<10x32xf32>
    %68 = tpu.matmul %67, %42, %cst_40 {dimension_numbers = #tpu.dot_dimension_numbers<[1], [0], [0], [1], [0, 0, 1, 1], [], []>} : vector<10x7xf32>, vector<7x32xf32>, vector<10x32xf32> -> vector<10x32xf32>
    %69 = vector.broadcast %43 : vector<1x32xf32> to vector<10x32xf32>
    %70 = arith.addf %68, %69 : vector<10x32xf32>
    %cst_41 = arith.constant 0.000000e+00 : f32
    %71 = vector.broadcast %cst_41 : f32 to vector<10x32xf32>
    %72 = arith.maximumf %70, %71 : vector<10x32xf32>
    %cst_42 = arith.constant dense<0.000000e+00> : vector<10x32xf32>
    %73 = tpu.matmul %72, %44, %cst_42 {dimension_numbers = #tpu.dot_dimension_numbers<[1], [0], [0], [1], [0, 0, 1, 1], [], []>} : vector<10x32xf32>, vector<32x32xf32>, vector<10x32xf32> -> vector<10x32xf32>
    %74 = vector.broadcast %45 : vector<1x32xf32> to vector<10x32xf32>
    %75 = arith.addf %73, %74 : vector<10x32xf32>
    %cst_43 = arith.constant 0.000000e+00 : f32
    %76 = vector.broadcast %cst_43 : f32 to vector<10x32xf32>
    %77 = arith.maximumf %75, %76 : vector<10x32xf32>
    %c0_44 = arith.constant 0 : index
    %c0_45 = arith.constant 0 : index
    %78 = vector.load %arg1[%c0_44, %c0_45] : memref<24x1xi32, #tpu.memory_space<vmem>>, vector<24x1xi32>
    %79 = tpu.iota {dimensions = array<i32: 1>} : vector<24x12xi32>
    %80 = vector.broadcast %78 : vector<24x1xi32> to vector<24x12xi32>
    %81 = arith.cmpi eq, %80, %79 : vector<24x12xi32>
    %cst_46 = arith.constant 1.000000e+00 : f32
    %cst_47 = arith.constant 0.000000e+00 : f32
    %82 = vector.broadcast %cst_46 : f32 to vector<24x12xf32>
    %83 = vector.broadcast %cst_47 : f32 to vector<24x12xf32>
    %84 = arith.select %81, %82, %83 : vector<24x12xi1>, vector<24x12xf32>
    %c0_48 = arith.constant 0 : index
    %c0_49 = arith.constant 0 : index
    %85 = vector.load %arg2[%c0_48, %c0_49] : memref<24x1xi32, #tpu.memory_space<vmem>>, vector<24x1xi32>
    %86 = tpu.iota {dimensions = array<i32: 1>} : vector<24x10xi32>
    %87 = vector.broadcast %85 : vector<24x1xi32> to vector<24x10xi32>
    %88 = arith.cmpi eq, %87, %86 : vector<24x10xi32>
    %cst_50 = arith.constant 1.000000e+00 : f32
    %cst_51 = arith.constant 0.000000e+00 : f32
    %89 = vector.broadcast %cst_50 : f32 to vector<24x10xf32>
    %90 = vector.broadcast %cst_51 : f32 to vector<24x10xf32>
    %91 = arith.select %88, %89, %90 : vector<24x10xi1>, vector<24x10xf32>
    %cst_52 = arith.constant dense<0.000000e+00> : vector<24x32xf32>
    %92 = tpu.matmul %84, %38, %cst_52 {dimension_numbers = #tpu.dot_dimension_numbers<[1], [0], [0], [1], [0, 0, 1, 1], [], []>} : vector<24x12xf32>, vector<12x32xf32>, vector<24x32xf32> -> vector<24x32xf32>
    %cst_53 = arith.constant dense<0.000000e+00> : vector<24x32xf32>
    %93 = tpu.matmul %91, %77, %cst_53 {dimension_numbers = #tpu.dot_dimension_numbers<[1], [0], [0], [1], [0, 0, 1, 1], [], []>} : vector<24x10xf32>, vector<10x32xf32>, vector<24x32xf32> -> vector<24x32xf32>
    %c0_54 = arith.constant 0 : index
    %c0_55 = arith.constant 0 : index
    %94 = vector.load %arg17[%c0_54, %c0_55] : memref<32x32xf32, #tpu.memory_space<vmem>>, vector<32x32xf32>
    %c0_56 = arith.constant 0 : index
    %c0_57 = arith.constant 0 : index
    %95 = vector.load %arg18[%c0_56, %c0_57] : memref<1x32xf32, #tpu.memory_space<vmem>>, vector<1x32xf32>
    %c0_58 = arith.constant 0 : index
    %c0_59 = arith.constant 0 : index
    %96 = vector.load %arg19[%c0_58, %c0_59] : memref<32x32xf32, #tpu.memory_space<vmem>>, vector<32x32xf32>
    %c0_60 = arith.constant 0 : index
    %c0_61 = arith.constant 0 : index
    %97 = vector.load %arg20[%c0_60, %c0_61] : memref<1x32xf32, #tpu.memory_space<vmem>>, vector<1x32xf32>
    %c0_62 = arith.constant 0 : index
    %c0_63 = arith.constant 0 : index
    %98 = vector.load %arg21[%c0_62, %c0_63] : memref<1x32xf32, #tpu.memory_space<vmem>>, vector<1x32xf32>
    %c0_64 = arith.constant 0 : index
    %c0_65 = arith.constant 0 : index
    %99 = vector.load %arg22[%c0_64, %c0_65] : memref<32x32xf32, #tpu.memory_space<vmem>>, vector<32x32xf32>
    %c0_66 = arith.constant 0 : index
    %c0_67 = arith.constant 0 : index
    %100 = vector.load %arg23[%c0_66, %c0_67] : memref<1x32xf32, #tpu.memory_space<vmem>>, vector<1x32xf32>
    %c0_68 = arith.constant 0 : index
    %c0_69 = arith.constant 0 : index
    %101 = vector.load %arg24[%c0_68, %c0_69] : memref<1x32xf32, #tpu.memory_space<vmem>>, vector<1x32xf32>
    %c0_70 = arith.constant 0 : index
    %c0_71 = arith.constant 0 : index
    %102 = vector.load %arg25[%c0_70, %c0_71] : memref<1x32xf32, #tpu.memory_space<vmem>>, vector<1x32xf32>
    %c0_72 = arith.constant 0 : index
    %c0_73 = arith.constant 0 : index
    %103 = vector.load %arg26[%c0_72, %c0_73] : memref<32x32xf32, #tpu.memory_space<vmem>>, vector<32x32xf32>
    %c0_74 = arith.constant 0 : index
    %c0_75 = arith.constant 0 : index
    %104 = vector.load %arg27[%c0_74, %c0_75] : memref<32x32xf32, #tpu.memory_space<vmem>>, vector<32x32xf32>
    %c0_76 = arith.constant 0 : index
    %c0_77 = arith.constant 0 : index
    %105 = vector.load %arg28[%c0_76, %c0_77] : memref<1x32xf32, #tpu.memory_space<vmem>>, vector<1x32xf32>
    %c0_78 = arith.constant 0 : index
    %c0_79 = arith.constant 0 : index
    %106 = vector.load %arg29[%c0_78, %c0_79] : memref<32x32xf32, #tpu.memory_space<vmem>>, vector<32x32xf32>
    %c0_80 = arith.constant 0 : index
    %c0_81 = arith.constant 0 : index
    %107 = vector.load %arg30[%c0_80, %c0_81] : memref<1x32xf32, #tpu.memory_space<vmem>>, vector<1x32xf32>
    %cst_82 = arith.constant dense<0.000000e+00> : vector<24x32xf32>
    %108 = tpu.matmul %93, %94, %cst_82 {dimension_numbers = #tpu.dot_dimension_numbers<[1], [0], [0], [1], [0, 0, 1, 1], [], []>} : vector<24x32xf32>, vector<32x32xf32>, vector<24x32xf32> -> vector<24x32xf32>
    %109 = vector.broadcast %95 : vector<1x32xf32> to vector<24x32xf32>
    %110 = arith.addf %108, %109 : vector<24x32xf32>
    %cst_83 = arith.constant dense<0.000000e+00> : vector<24x32xf32>
    %111 = tpu.matmul %92, %96, %cst_83 {dimension_numbers = #tpu.dot_dimension_numbers<[1], [0], [0], [1], [0, 0, 1, 1], [], []>} : vector<24x32xf32>, vector<32x32xf32>, vector<24x32xf32> -> vector<24x32xf32>
    %112 = arith.addf %110, %111 : vector<24x32xf32>
    %cst_84 = arith.constant dense<0.000000e+00> : vector<24xf32>
    %113 = vector.multi_reduction <add>, %112, %cst_84 [1] : vector<24x32xf32> to vector<24xf32>
    %114 = vector.shape_cast %113 : vector<24xf32> to vector<24x1xf32>
    %cst_85 = arith.constant 3.200000e+01 : f32
    %115 = vector.broadcast %cst_85 : f32 to vector<24x1xf32>
    %116 = arith.divf %114, %115 : vector<24x1xf32>
    %117 = vector.broadcast %116 : vector<24x1xf32> to vector<24x32xf32>
    %118 = arith.subf %112, %117 : vector<24x32xf32>
    %119 = arith.mulf %118, %118 : vector<24x32xf32>
    %cst_86 = arith.constant dense<0.000000e+00> : vector<24xf32>
    %120 = vector.multi_reduction <add>, %119, %cst_86 [1] : vector<24x32xf32> to vector<24xf32>
    %121 = vector.shape_cast %120 : vector<24xf32> to vector<24x1xf32>
    %cst_87 = arith.constant 3.200000e+01 : f32
    %122 = vector.broadcast %cst_87 : f32 to vector<24x1xf32>
    %123 = arith.divf %121, %122 : vector<24x1xf32>
    %124 = vector.broadcast %116 : vector<24x1xf32> to vector<24x32xf32>
    %125 = arith.subf %112, %124 : vector<24x32xf32>
    %cst_88 = arith.constant 9.99999974E-6 : f32
    %126 = vector.broadcast %cst_88 : f32 to vector<24x1xf32>
    %127 = arith.addf %123, %126 : vector<24x1xf32>
    %128 = math.rsqrt %127 : vector<24x1xf32>
    %129 = vector.broadcast %128 : vector<24x1xf32> to vector<24x32xf32>
    %130 = arith.mulf %125, %129 : vector<24x32xf32>
    %131 = vector.broadcast %97 : vector<1x32xf32> to vector<24x32xf32>
    %132 = arith.mulf %130, %131 : vector<24x32xf32>
    %133 = vector.broadcast %98 : vector<1x32xf32> to vector<24x32xf32>
    %134 = arith.addf %132, %133 : vector<24x32xf32>
    %cst_89 = arith.constant 0.000000e+00 : f32
    %135 = vector.broadcast %cst_89 : f32 to vector<24x32xf32>
    %136 = arith.maximumf %134, %135 : vector<24x32xf32>
    %cst_90 = arith.constant dense<0.000000e+00> : vector<24x32xf32>
    %137 = tpu.matmul %136, %99, %cst_90 {dimension_numbers = #tpu.dot_dimension_numbers<[1], [0], [0], [1], [0, 0, 1, 1], [], []>} : vector<24x32xf32>, vector<32x32xf32>, vector<24x32xf32> -> vector<24x32xf32>
    %138 = vector.broadcast %100 : vector<1x32xf32> to vector<24x32xf32>
    %139 = arith.addf %137, %138 : vector<24x32xf32>
    %cst_91 = arith.constant dense<0.000000e+00> : vector<10x32xf32>
    %140 = tpu.matmul %91, %139, %cst_91 {dimension_numbers = #tpu.dot_dimension_numbers<[0], [0], [1], [1], [0, 1, 1, 1], [], []>} : vector<24x10xf32>, vector<24x32xf32>, vector<10x32xf32> -> vector<10x32xf32>
    %cst_92 = arith.constant dense<0.000000e+00> : vector<10xf32>
    %141 = vector.multi_reduction <add>, %140, %cst_92 [1] : vector<10x32xf32> to vector<10xf32>
    %142 = vector.shape_cast %141 : vector<10xf32> to vector<10x1xf32>
    %cst_93 = arith.constant 3.200000e+01 : f32
    %143 = vector.broadcast %cst_93 : f32 to vector<10x1xf32>
    %144 = arith.divf %142, %143 : vector<10x1xf32>
    %145 = vector.broadcast %144 : vector<10x1xf32> to vector<10x32xf32>
    %146 = arith.subf %140, %145 : vector<10x32xf32>
    %147 = arith.mulf %146, %146 : vector<10x32xf32>
    %cst_94 = arith.constant dense<0.000000e+00> : vector<10xf32>
    %148 = vector.multi_reduction <add>, %147, %cst_94 [1] : vector<10x32xf32> to vector<10xf32>
    %149 = vector.shape_cast %148 : vector<10xf32> to vector<10x1xf32>
    %cst_95 = arith.constant 3.200000e+01 : f32
    %150 = vector.broadcast %cst_95 : f32 to vector<10x1xf32>
    %151 = arith.divf %149, %150 : vector<10x1xf32>
    %152 = vector.broadcast %144 : vector<10x1xf32> to vector<10x32xf32>
    %153 = arith.subf %140, %152 : vector<10x32xf32>
    %cst_96 = arith.constant 9.99999974E-6 : f32
    %154 = vector.broadcast %cst_96 : f32 to vector<10x1xf32>
    %155 = arith.addf %151, %154 : vector<10x1xf32>
    %156 = math.rsqrt %155 : vector<10x1xf32>
    %157 = vector.broadcast %156 : vector<10x1xf32> to vector<10x32xf32>
    %158 = arith.mulf %153, %157 : vector<10x32xf32>
    %159 = vector.broadcast %101 : vector<1x32xf32> to vector<10x32xf32>
    %160 = arith.mulf %158, %159 : vector<10x32xf32>
    %161 = vector.broadcast %102 : vector<1x32xf32> to vector<10x32xf32>
    %162 = arith.addf %160, %161 : vector<10x32xf32>
    %cst_97 = arith.constant dense<0.000000e+00> : vector<10x32xf32>
    %163 = tpu.matmul %162, %103, %cst_97 {dimension_numbers = #tpu.dot_dimension_numbers<[1], [0], [0], [1], [0, 0, 1, 1], [], []>} : vector<10x32xf32>, vector<32x32xf32>, vector<10x32xf32> -> vector<10x32xf32>
    %cst_98 = arith.constant dense<0.000000e+00> : vector<10x32xf32>
    %164 = tpu.matmul %77, %104, %cst_98 {dimension_numbers = #tpu.dot_dimension_numbers<[1], [0], [0], [1], [0, 0, 1, 1], [], []>} : vector<10x32xf32>, vector<32x32xf32>, vector<10x32xf32> -> vector<10x32xf32>
    %165 = arith.addf %163, %164 : vector<10x32xf32>
    %166 = vector.broadcast %105 : vector<1x32xf32> to vector<10x32xf32>
    %167 = arith.addf %165, %166 : vector<10x32xf32>
    %cst_99 = arith.constant 0.000000e+00 : f32
    %168 = vector.broadcast %cst_99 : f32 to vector<10x32xf32>
    %169 = arith.maximumf %167, %168 : vector<10x32xf32>
    %cst_100 = arith.constant dense<0.000000e+00> : vector<10x32xf32>
    %170 = tpu.matmul %169, %106, %cst_100 {dimension_numbers = #tpu.dot_dimension_numbers<[1], [0], [0], [1], [0, 0, 1, 1], [], []>} : vector<10x32xf32>, vector<32x32xf32>, vector<10x32xf32> -> vector<10x32xf32>
    %171 = vector.broadcast %107 : vector<1x32xf32> to vector<10x32xf32>
    %172 = arith.addf %170, %171 : vector<10x32xf32>
    %cst_101 = arith.constant dense<0.000000e+00> : vector<24x32xf32>
    %173 = tpu.matmul %91, %172, %cst_101 {dimension_numbers = #tpu.dot_dimension_numbers<[1], [0], [0], [1], [0, 0, 1, 1], [], []>} : vector<24x10xf32>, vector<10x32xf32>, vector<24x32xf32> -> vector<24x32xf32>
    %c0_102 = arith.constant 0 : index
    %c0_103 = arith.constant 0 : index
    %174 = vector.load %arg31[%c0_102, %c0_103] : memref<32x32xf32, #tpu.memory_space<vmem>>, vector<32x32xf32>
    %c0_104 = arith.constant 0 : index
    %c0_105 = arith.constant 0 : index
    %175 = vector.load %arg32[%c0_104, %c0_105] : memref<1x32xf32, #tpu.memory_space<vmem>>, vector<1x32xf32>
    %c0_106 = arith.constant 0 : index
    %c0_107 = arith.constant 0 : index
    %176 = vector.load %arg33[%c0_106, %c0_107] : memref<32x32xf32, #tpu.memory_space<vmem>>, vector<32x32xf32>
    %c0_108 = arith.constant 0 : index
    %c0_109 = arith.constant 0 : index
    %177 = vector.load %arg34[%c0_108, %c0_109] : memref<1x32xf32, #tpu.memory_space<vmem>>, vector<1x32xf32>
    %c0_110 = arith.constant 0 : index
    %c0_111 = arith.constant 0 : index
    %178 = vector.load %arg35[%c0_110, %c0_111] : memref<1x32xf32, #tpu.memory_space<vmem>>, vector<1x32xf32>
    %c0_112 = arith.constant 0 : index
    %c0_113 = arith.constant 0 : index
    %179 = vector.load %arg36[%c0_112, %c0_113] : memref<32x32xf32, #tpu.memory_space<vmem>>, vector<32x32xf32>
    %c0_114 = arith.constant 0 : index
    %c0_115 = arith.constant 0 : index
    %180 = vector.load %arg37[%c0_114, %c0_115] : memref<1x32xf32, #tpu.memory_space<vmem>>, vector<1x32xf32>
    %c0_116 = arith.constant 0 : index
    %c0_117 = arith.constant 0 : index
    %181 = vector.load %arg38[%c0_116, %c0_117] : memref<1x32xf32, #tpu.memory_space<vmem>>, vector<1x32xf32>
    %c0_118 = arith.constant 0 : index
    %c0_119 = arith.constant 0 : index
    %182 = vector.load %arg39[%c0_118, %c0_119] : memref<1x32xf32, #tpu.memory_space<vmem>>, vector<1x32xf32>
    %c0_120 = arith.constant 0 : index
    %c0_121 = arith.constant 0 : index
    %183 = vector.load %arg40[%c0_120, %c0_121] : memref<32x32xf32, #tpu.memory_space<vmem>>, vector<32x32xf32>
    %c0_122 = arith.constant 0 : index
    %c0_123 = arith.constant 0 : index
    %184 = vector.load %arg41[%c0_122, %c0_123] : memref<32x32xf32, #tpu.memory_space<vmem>>, vector<32x32xf32>
    %c0_124 = arith.constant 0 : index
    %c0_125 = arith.constant 0 : index
    %185 = vector.load %arg42[%c0_124, %c0_125] : memref<1x32xf32, #tpu.memory_space<vmem>>, vector<1x32xf32>
    %c0_126 = arith.constant 0 : index
    %c0_127 = arith.constant 0 : index
    %186 = vector.load %arg43[%c0_126, %c0_127] : memref<32x32xf32, #tpu.memory_space<vmem>>, vector<32x32xf32>
    %c0_128 = arith.constant 0 : index
    %c0_129 = arith.constant 0 : index
    %187 = vector.load %arg44[%c0_128, %c0_129] : memref<1x32xf32, #tpu.memory_space<vmem>>, vector<1x32xf32>
    %cst_130 = arith.constant dense<0.000000e+00> : vector<24x32xf32>
    %188 = tpu.matmul %92, %174, %cst_130 {dimension_numbers = #tpu.dot_dimension_numbers<[1], [0], [0], [1], [0, 0, 1, 1], [], []>} : vector<24x32xf32>, vector<32x32xf32>, vector<24x32xf32> -> vector<24x32xf32>
    %189 = vector.broadcast %175 : vector<1x32xf32> to vector<24x32xf32>
    %190 = arith.addf %188, %189 : vector<24x32xf32>
    %cst_131 = arith.constant dense<0.000000e+00> : vector<24x32xf32>
    %191 = tpu.matmul %173, %176, %cst_131 {dimension_numbers = #tpu.dot_dimension_numbers<[1], [0], [0], [1], [0, 0, 1, 1], [], []>} : vector<24x32xf32>, vector<32x32xf32>, vector<24x32xf32> -> vector<24x32xf32>
    %192 = arith.addf %190, %191 : vector<24x32xf32>
    %cst_132 = arith.constant dense<0.000000e+00> : vector<24xf32>
    %193 = vector.multi_reduction <add>, %192, %cst_132 [1] : vector<24x32xf32> to vector<24xf32>
    %194 = vector.shape_cast %193 : vector<24xf32> to vector<24x1xf32>
    %cst_133 = arith.constant 3.200000e+01 : f32
    %195 = vector.broadcast %cst_133 : f32 to vector<24x1xf32>
    %196 = arith.divf %194, %195 : vector<24x1xf32>
    %197 = vector.broadcast %196 : vector<24x1xf32> to vector<24x32xf32>
    %198 = arith.subf %192, %197 : vector<24x32xf32>
    %199 = arith.mulf %198, %198 : vector<24x32xf32>
    %cst_134 = arith.constant dense<0.000000e+00> : vector<24xf32>
    %200 = vector.multi_reduction <add>, %199, %cst_134 [1] : vector<24x32xf32> to vector<24xf32>
    %201 = vector.shape_cast %200 : vector<24xf32> to vector<24x1xf32>
    %cst_135 = arith.constant 3.200000e+01 : f32
    %202 = vector.broadcast %cst_135 : f32 to vector<24x1xf32>
    %203 = arith.divf %201, %202 : vector<24x1xf32>
    %204 = vector.broadcast %196 : vector<24x1xf32> to vector<24x32xf32>
    %205 = arith.subf %192, %204 : vector<24x32xf32>
    %cst_136 = arith.constant 9.99999974E-6 : f32
    %206 = vector.broadcast %cst_136 : f32 to vector<24x1xf32>
    %207 = arith.addf %203, %206 : vector<24x1xf32>
    %208 = math.rsqrt %207 : vector<24x1xf32>
    %209 = vector.broadcast %208 : vector<24x1xf32> to vector<24x32xf32>
    %210 = arith.mulf %205, %209 : vector<24x32xf32>
    %211 = vector.broadcast %177 : vector<1x32xf32> to vector<24x32xf32>
    %212 = arith.mulf %210, %211 : vector<24x32xf32>
    %213 = vector.broadcast %178 : vector<1x32xf32> to vector<24x32xf32>
    %214 = arith.addf %212, %213 : vector<24x32xf32>
    %cst_137 = arith.constant 0.000000e+00 : f32
    %215 = vector.broadcast %cst_137 : f32 to vector<24x32xf32>
    %216 = arith.maximumf %214, %215 : vector<24x32xf32>
    %cst_138 = arith.constant dense<0.000000e+00> : vector<24x32xf32>
    %217 = tpu.matmul %216, %179, %cst_138 {dimension_numbers = #tpu.dot_dimension_numbers<[1], [0], [0], [1], [0, 0, 1, 1], [], []>} : vector<24x32xf32>, vector<32x32xf32>, vector<24x32xf32> -> vector<24x32xf32>
    %218 = vector.broadcast %180 : vector<1x32xf32> to vector<24x32xf32>
    %219 = arith.addf %217, %218 : vector<24x32xf32>
    %cst_139 = arith.constant dense<0.000000e+00> : vector<12x32xf32>
    %220 = tpu.matmul %84, %219, %cst_139 {dimension_numbers = #tpu.dot_dimension_numbers<[0], [0], [1], [1], [0, 1, 1, 1], [], []>} : vector<24x12xf32>, vector<24x32xf32>, vector<12x32xf32> -> vector<12x32xf32>
    %cst_140 = arith.constant dense<0.000000e+00> : vector<12xf32>
    %221 = vector.multi_reduction <add>, %220, %cst_140 [1] : vector<12x32xf32> to vector<12xf32>
    %222 = vector.shape_cast %221 : vector<12xf32> to vector<12x1xf32>
    %cst_141 = arith.constant 3.200000e+01 : f32
    %223 = vector.broadcast %cst_141 : f32 to vector<12x1xf32>
    %224 = arith.divf %222, %223 : vector<12x1xf32>
    %225 = vector.broadcast %224 : vector<12x1xf32> to vector<12x32xf32>
    %226 = arith.subf %220, %225 : vector<12x32xf32>
    %227 = arith.mulf %226, %226 : vector<12x32xf32>
    %cst_142 = arith.constant dense<0.000000e+00> : vector<12xf32>
    %228 = vector.multi_reduction <add>, %227, %cst_142 [1] : vector<12x32xf32> to vector<12xf32>
    %229 = vector.shape_cast %228 : vector<12xf32> to vector<12x1xf32>
    %cst_143 = arith.constant 3.200000e+01 : f32
    %230 = vector.broadcast %cst_143 : f32 to vector<12x1xf32>
    %231 = arith.divf %229, %230 : vector<12x1xf32>
    %232 = vector.broadcast %224 : vector<12x1xf32> to vector<12x32xf32>
    %233 = arith.subf %220, %232 : vector<12x32xf32>
    %cst_144 = arith.constant 9.99999974E-6 : f32
    %234 = vector.broadcast %cst_144 : f32 to vector<12x1xf32>
    %235 = arith.addf %231, %234 : vector<12x1xf32>
    %236 = math.rsqrt %235 : vector<12x1xf32>
    %237 = vector.broadcast %236 : vector<12x1xf32> to vector<12x32xf32>
    %238 = arith.mulf %233, %237 : vector<12x32xf32>
    %239 = vector.broadcast %181 : vector<1x32xf32> to vector<12x32xf32>
    %240 = arith.mulf %238, %239 : vector<12x32xf32>
    %241 = vector.broadcast %182 : vector<1x32xf32> to vector<12x32xf32>
    %242 = arith.addf %240, %241 : vector<12x32xf32>
    %cst_145 = arith.constant dense<0.000000e+00> : vector<12x32xf32>
    %243 = tpu.matmul %242, %183, %cst_145 {dimension_numbers = #tpu.dot_dimension_numbers<[1], [0], [0], [1], [0, 0, 1, 1], [], []>} : vector<12x32xf32>, vector<32x32xf32>, vector<12x32xf32> -> vector<12x32xf32>
    %cst_146 = arith.constant dense<0.000000e+00> : vector<12x32xf32>
    %244 = tpu.matmul %38, %184, %cst_146 {dimension_numbers = #tpu.dot_dimension_numbers<[1], [0], [0], [1], [0, 0, 1, 1], [], []>} : vector<12x32xf32>, vector<32x32xf32>, vector<12x32xf32> -> vector<12x32xf32>
    %245 = arith.addf %243, %244 : vector<12x32xf32>
    %246 = vector.broadcast %185 : vector<1x32xf32> to vector<12x32xf32>
    %247 = arith.addf %245, %246 : vector<12x32xf32>
    %cst_147 = arith.constant 0.000000e+00 : f32
    %248 = vector.broadcast %cst_147 : f32 to vector<12x32xf32>
    %249 = arith.maximumf %247, %248 : vector<12x32xf32>
    %cst_148 = arith.constant dense<0.000000e+00> : vector<12x32xf32>
    %250 = tpu.matmul %249, %186, %cst_148 {dimension_numbers = #tpu.dot_dimension_numbers<[1], [0], [0], [1], [0, 0, 1, 1], [], []>} : vector<12x32xf32>, vector<32x32xf32>, vector<12x32xf32> -> vector<12x32xf32>
    %251 = vector.broadcast %187 : vector<1x32xf32> to vector<12x32xf32>
    %252 = arith.addf %250, %251 : vector<12x32xf32>
    %c0_149 = arith.constant 0 : index
    %c0_150 = arith.constant 0 : index
    %253 = vector.load %arg45[%c0_149, %c0_150] : memref<32x32xf32, #tpu.memory_space<vmem>>, vector<32x32xf32>
    %cst_151 = arith.constant dense<0.000000e+00> : vector<12x32xf32>
    %254 = tpu.matmul %252, %253, %cst_151 {dimension_numbers = #tpu.dot_dimension_numbers<[1], [0], [0], [1], [0, 0, 1, 1], [], []>} : vector<12x32xf32>, vector<32x32xf32>, vector<12x32xf32> -> vector<12x32xf32>
    %c0_152 = arith.constant 0 : index
    %c0_153 = arith.constant 0 : index
    %255 = vector.load %arg46[%c0_152, %c0_153] : memref<1x32xf32, #tpu.memory_space<vmem>>, vector<1x32xf32>
    %256 = vector.broadcast %255 : vector<1x32xf32> to vector<12x32xf32>
    %257 = arith.addf %254, %256 : vector<12x32xf32>
    %cst_154 = arith.constant 0.000000e+00 : f32
    %258 = vector.broadcast %cst_154 : f32 to vector<12x32xf32>
    %259 = arith.maximumf %257, %258 : vector<12x32xf32>
    %c0_155 = arith.constant 0 : index
    %c0_156 = arith.constant 0 : index
    %260 = vector.load %arg47[%c0_155, %c0_156] : memref<32x4xf32, #tpu.memory_space<vmem>>, vector<32x4xf32>
    %cst_157 = arith.constant dense<0.000000e+00> : vector<12x4xf32>
    %261 = tpu.matmul %259, %260, %cst_157 {dimension_numbers = #tpu.dot_dimension_numbers<[1], [0], [0], [1], [0, 0, 1, 1], [], []>} : vector<12x32xf32>, vector<32x4xf32>, vector<12x4xf32> -> vector<12x4xf32>
    %cst_158 = arith.constant 0.000000e+00 : f32
    %262 = vector.broadcast %cst_158 : f32 to vector<12x4xf32>
    %263 = arith.maximumf %261, %262 : vector<12x4xf32>
    %264 = math.absf %263 : vector<12x4xf32>
    %cst_159 = arith.constant dense<0.000000e+00> : vector<12xf32>
    %265 = vector.multi_reduction <add>, %264, %cst_159 [1] : vector<12x4xf32> to vector<12xf32>
    %266 = vector.shape_cast %265 : vector<12xf32> to vector<12x1xf32>
    %cst_160 = arith.constant 9.99999996E-13 : f32
    %267 = vector.broadcast %cst_160 : f32 to vector<12x1xf32>
    %268 = arith.maximumf %266, %267 : vector<12x1xf32>
    %269 = vector.broadcast %268 : vector<12x1xf32> to vector<12x4xf32>
    %270 = arith.divf %263, %269 : vector<12x4xf32>
    %cst_161 = arith.constant dense<0.000000e+00> : vector<4xf32>
    %271 = vector.multi_reduction <add>, %270, %cst_161 [0] : vector<12x4xf32> to vector<4xf32>
    %272 = vector.shape_cast %271 : vector<4xf32> to vector<1x4xf32>
    %cst_162 = arith.constant 1.200000e+01 : f32
    %273 = vector.broadcast %cst_162 : f32 to vector<1x4xf32>
    %274 = arith.divf %272, %273 : vector<1x4xf32>
    %c0_163 = arith.constant 0 : index
    %c0_164 = arith.constant 0 : index
    %275 = vector.load %arg48[%c0_163, %c0_164] : memref<1x4xf32, #tpu.memory_space<vmem>>, vector<1x4xf32>
    tpu.vector_store %arg48[%c0_163, %c0_164], %274 {strides = array<i32>} : memref<1x4xf32, #tpu.memory_space<vmem>>, vector<1x4xf32>,
    return
  }
  func.func @transform_0(%arg0: i32) -> (i32, i32) {
    %c0_i32 = arith.constant 0 : i32
    %c0_i32_0 = arith.constant 0 : i32
    %c0_i32_1 = arith.constant 0 : i32
    return %c0_i32, %c0_i32_0 : i32, i32
  }
  func.func @transform_1(%arg0: i32) -> (i32, i32) {
    %c0_i32 = arith.constant 0 : i32
    %c0_i32_0 = arith.constant 0 : i32
    %c0_i32_1 = arith.constant 0 : i32
    return %c0_i32, %c0_i32_0 : i32, i32
  }
  func.func @transform_2(%arg0: i32) -> (i32, i32) {
    %c0_i32 = arith.constant 0 : i32
    %c0_i32_0 = arith.constant 0 : i32
    %c0_i32_1 = arith.constant 0 : i32
    return %c0_i32, %c0_i32_0 : i32, i32
  }
  func.func @transform_3(%arg0: i32) -> (i32, i32) {
    %c0_i32 = arith.constant 0 : i32
    %c0_i32_0 = arith.constant 0 : i32
    %c0_i32_1 = arith.constant 0 : i32
    return %c0_i32, %c0_i32_0 : i32, i32
  }
  func.func @transform_4(%arg0: i32) -> (i32, i32) {
    %c0_i32 = arith.constant 0 : i32
    %c0_i32_0 = arith.constant 0 : i32
    %c0_i32_1 = arith.constant 0 : i32
    return %c0_i32, %c0_i32_0 : i32, i32
  }
  func.func @transform_5(%arg0: i32) -> (i32, i32) {
    %c0_i32 = arith.constant 0 : i32
    %c0_i32_0 = arith.constant 0 : i32
    %c0_i32_1 = arith.constant 0 : i32
    return %c0_i32, %c0_i32_0 : i32, i32
  }
  func.func @transform_6(%arg0: i32) -> (i32, i32) {
    %c0_i32 = arith.constant 0 : i32
    %c0_i32_0 = arith.constant 0 : i32
    %c0_i32_1 = arith.constant 0 : i32
    return %c0_i32, %c0_i32_0 : i32, i32
  }
  func.func @transform_7(%arg0: i32) -> (i32, i32) {
    %c0_i32 = arith.constant 0 : i32
    %c0_i32_0 = arith.constant 0 : i32
    %c0_i32_1 = arith.constant 0 : i32
    return %c0_i32, %c0_i32_0 : i32, i32
  }
  func.func @transform_8(%arg0: i32) -> (i32, i32) {
    %c0_i32 = arith.constant 0 : i32
    %c0_i32_0 = arith.constant 0 : i32
    %c0_i32_1 = arith.constant 0 : i32
    return %c0_i32, %c0_i32_0 : i32, i32
  }
  func.func @transform_9(%arg0: i32) -> (i32, i32) {
    %c0_i32 = arith.constant 0 : i32
    %c0_i32_0 = arith.constant 0 : i32
    %c0_i32_1 = arith.constant 0 : i32
    return %c0_i32, %c0_i32_0 : i32, i32
  }
  func.func @transform_10(%arg0: i32) -> (i32, i32) {
    %c0_i32 = arith.constant 0 : i32
    %c0_i32_0 = arith.constant 0 : i32
    %c0_i32_1 = arith.constant 0 : i32
    return %c0_i32, %c0_i32_0 : i32, i32
  }
  func.func @transform_11(%arg0: i32) -> (i32, i32) {
    %c0_i32 = arith.constant 0 : i32
    %c0_i32_0 = arith.constant 0 : i32
    %c0_i32_1 = arith.constant 0 : i32
    return %c0_i32, %c0_i32_0 : i32, i32
  }
  func.func @transform_12(%arg0: i32) -> (i32, i32) {
    %c0_i32 = arith.constant 0 : i32
    %c0_i32_0 = arith.constant 0 : i32
    %c0_i32_1 = arith.constant 0 : i32
    return %c0_i32, %c0_i32_0 : i32, i32
  }
  func.func @transform_13(%arg0: i32) -> (i32, i32) {
    %c0_i32 = arith.constant 0 : i32
    %c0_i32_0 = arith.constant 0 : i32
    %c0_i32_1 = arith.constant 0 : i32
    return %c0_i32, %c0_i32_0 : i32, i32
  }
  func.func @transform_14(%arg0: i32) -> (i32, i32) {
    %c0_i32 = arith.constant 0 : i32
    %c0_i32_0 = arith.constant 0 : i32
    %c0_i32_1 = arith.constant 0 : i32
    return %c0_i32, %c0_i32_0 : i32, i32
  }
  func.func @transform_15(%arg0: i32) -> (i32, i32) {
    %c0_i32 = arith.constant 0 : i32
    %c0_i32_0 = arith.constant 0 : i32
    %c0_i32_1 = arith.constant 0 : i32
    return %c0_i32, %c0_i32_0 : i32, i32
  }
  func.func @transform_16(%arg0: i32) -> (i32, i32) {
    %c0_i32 = arith.constant 0 : i32
    %c0_i32_0 = arith.constant 0 : i32
    %c0_i32_1 = arith.constant 0 : i32
    return %c0_i32, %c0_i32_0 : i32, i32
  }
  func.func @transform_17(%arg0: i32) -> (i32, i32) {
    %c0_i32 = arith.constant 0 : i32
    %c0_i32_0 = arith.constant 0 : i32
    %c0_i32_1 = arith.constant 0 : i32
    return %c0_i32, %c0_i32_0 : i32, i32
  }
  func.func @transform_18(%arg0: i32) -> (i32, i32) {
    %c0_i32 = arith.constant 0 : i32
    %c0_i32_0 = arith.constant 0 : i32
    %c0_i32_1 = arith.constant 0 : i32
    return %c0_i32, %c0_i32_0 : i32, i32
  }
  func.func @transform_19(%arg0: i32) -> (i32, i32) {
    %c0_i32 = arith.constant 0 : i32
    %c0_i32_0 = arith.constant 0 : i32
    %c0_i32_1 = arith.constant 0 : i32
    return %c0_i32, %c0_i32_0 : i32, i32
  }
  func.func @transform_20(%arg0: i32) -> (i32, i32) {
    %c0_i32 = arith.constant 0 : i32
    %c0_i32_0 = arith.constant 0 : i32
    %c0_i32_1 = arith.constant 0 : i32
    return %c0_i32, %c0_i32_0 : i32, i32
  }
  func.func @transform_21(%arg0: i32) -> (i32, i32) {
    %c0_i32 = arith.constant 0 : i32
    %c0_i32_0 = arith.constant 0 : i32
    %c0_i32_1 = arith.constant 0 : i32
    return %c0_i32, %c0_i32_0 : i32, i32
  }
  func.func @transform_22(%arg0: i32) -> (i32, i32) {
    %c0_i32 = arith.constant 0 : i32
    %c0_i32_0 = arith.constant 0 : i32
    %c0_i32_1 = arith.constant 0 : i32
    return %c0_i32, %c0_i32_0 : i32, i32
  }
  func.func @transform_23(%arg0: i32) -> (i32, i32) {
    %c0_i32 = arith.constant 0 : i32
    %c0_i32_0 = arith.constant 0 : i32
    %c0_i32_1 = arith.constant 0 : i32
    return %c0_i32, %c0_i32_0 : i32, i32
  }
  func.func @transform_24(%arg0: i32) -> (i32, i32) {
    %c0_i32 = arith.constant 0 : i32
    %c0_i32_0 = arith.constant 0 : i32
    %c0_i32_1 = arith.constant 0 : i32
    return %c0_i32, %c0_i32_0 : i32, i32
  }
  func.func @transform_25(%arg0: i32) -> (i32, i32) {
    %c0_i32 = arith.constant 0 : i32
    %c0_i32_0 = arith.constant 0 : i32
    %c0_i32_1 = arith.constant 0 : i32
    return %c0_i32, %c0_i32_0 : i32, i32
  }
  func.func @transform_26(%arg0: i32) -> (i32, i32) {
    %c0_i32 = arith.constant 0 : i32
    %c0_i32_0 = arith.constant 0 : i32
    %c0_i32_1 = arith.constant 0 : i32
    return %c0_i32, %c0_i32_0 : i32, i32
  }
  func.func @transform_27(%arg0: i32) -> (i32, i32) {
    %c0_i32 = arith.constant 0 : i32
    %c0_i32_0 = arith.constant 0 : i32
    %c0_i32_1 = arith.constant 0 : i32
    return %c0_i32, %c0_i32_0 : i32, i32
  }
  func.func @transform_28(%arg0: i32) -> (i32, i32) {
    %c0_i32 = arith.constant 0 : i32
    %c0_i32_0 = arith.constant 0 : i32
    %c0_i32_1 = arith.constant 0 : i32
    return %c0_i32, %c0_i32_0 : i32, i32
  }
  func.func @transform_29(%arg0: i32) -> (i32, i32) {
    %c0_i32 = arith.constant 0 : i32
    %c0_i32_0 = arith.constant 0 : i32
    %c0_i32_1 = arith.constant 0 : i32
    return %c0_i32, %c0_i32_0 : i32, i32
  }
  func.func @transform_30(%arg0: i32) -> (i32, i32) {
    %c0_i32 = arith.constant 0 : i32
    %c0_i32_0 = arith.constant 0 : i32
    %c0_i32_1 = arith.constant 0 : i32
    return %c0_i32, %c0_i32_0 : i32, i32
  }
  func.func @transform_31(%arg0: i32) -> (i32, i32) {
    %c0_i32 = arith.constant 0 : i32
    %c0_i32_0 = arith.constant 0 : i32
    %c0_i32_1 = arith.constant 0 : i32
    return %c0_i32, %c0_i32_0 : i32, i32
  }
  func.func @transform_32(%arg0: i32) -> (i32, i32) {
    %c0_i32 = arith.constant 0 : i32
    %c0_i32_0 = arith.constant 0 : i32
    %c0_i32_1 = arith.constant 0 : i32
    return %c0_i32, %c0_i32_0 : i32, i32
  }
  func.func @transform_33(%arg0: i32) -> (i32, i32) {
    %c0_i32 = arith.constant 0 : i32
    %c0_i32_0 = arith.constant 0 : i32
    %c0_i32_1 = arith.constant 0 : i32
    return %c0_i32, %c0_i32_0 : i32, i32
  }
  func.func @transform_34(%arg0: i32) -> (i32, i32) {
    %c0_i32 = arith.constant 0 : i32
    %c0_i32_0 = arith.constant 0 : i32
    %c0_i32_1 = arith.constant 0 : i32
    return %c0_i32, %c0_i32_0 : i32, i32
  }
  func.func @transform_35(%arg0: i32) -> (i32, i32) {
    %c0_i32 = arith.constant 0 : i32
    %c0_i32_0 = arith.constant 0 : i32
    %c0_i32_1 = arith.constant 0 : i32
    return %c0_i32, %c0_i32_0 : i32, i32
  }
  func.func @transform_36(%arg0: i32) -> (i32, i32) {
    %c0_i32 = arith.constant 0 : i32
    %c0_i32_0 = arith.constant 0 : i32
    %c0_i32_1 = arith.constant 0 : i32
    return %c0_i32, %c0_i32_0 : i32, i32
  }
  func.func @transform_37(%arg0: i32) -> (i32, i32) {
    %c0_i32 = arith.constant 0 : i32
    %c0_i32_0 = arith.constant 0 : i32
    %c0_i32_1 = arith.constant 0 : i32
    return %c0_i32, %c0_i32_0 : i32, i32
  }
  func.func @transform_38(%arg0: i32) -> (i32, i32) {
    %c0_i32 = arith.constant 0 : i32
    %c0_i32_0 = arith.constant 0 : i32
    %c0_i32_1 = arith.constant 0 : i32
    return %c0_i32, %c0_i32_0 : i32, i32
  }
  func.func @transform_39(%arg0: i32) -> (i32, i32) {
    %c0_i32 = arith.constant 0 : i32
    %c0_i32_0 = arith.constant 0 : i32
    %c0_i32_1 = arith.constant 0 : i32
    return %c0_i32, %c0_i32_0 : i32, i32
  }
  func.func @transform_40(%arg0: i32) -> (i32, i32) {
    %c0_i32 = arith.constant 0 : i32
    %c0_i32_0 = arith.constant 0 : i32
    %c0_i32_1 = arith.constant 0 : i32
    return %c0_i32, %c0_i32_0 : i32, i32
  }
  func.func @transform_41(%arg0: i32) -> (i32, i32) {
    %c0_i32 = arith.constant 0 : i32
    %c0_i32_0 = arith.constant 0 : i32
    %c0_i32_1 = arith.constant 0 : i32
    return %c0_i32, %c0_i32_0 : i32, i32
  }
  func.func @transform_42(%arg0: i32) -> (i32, i32) {
    %c0_i32 = arith.constant 0 : i32
    %c0_i32_0 = arith.constant 0 : i32
    %c0_i32_1 = arith.constant 0 : i32
    return %c0_i32, %c0_i32_0 : i32, i32
  }
  func.func @transform_43(%arg0: i32) -> (i32, i32) {
    %c0_i32 = arith.constant 0 : i32
    %c0_i32_0 = arith.constant 0 : i32
    %c0_i32_1 = arith.constant 0 : i32
    return %c0_i32, %c0_i32_0 : i32, i32
  }
  func.func @transform_44(%arg0: i32) -> (i32, i32) {
    %c0_i32 = arith.constant 0 : i32
    %c0_i32_0 = arith.constant 0 : i32
    %c0_i32_1 = arith.constant 0 : i32
    return %c0_i32, %c0_i32_0 : i32, i32
  }
  func.func @transform_45(%arg0: i32) -> (i32, i32) {
    %c0_i32 = arith.constant 0 : i32
    %c0_i32_0 = arith.constant 0 : i32
    %c0_i32_1 = arith.constant 0 : i32
    return %c0_i32, %c0_i32_0 : i32, i32
  }
  func.func @transform_46(%arg0: i32) -> (i32, i32) {
    %c0_i32 = arith.constant 0 : i32
    %c0_i32_0 = arith.constant 0 : i32
    %c0_i32_1 = arith.constant 0 : i32
    return %c0_i32, %c0_i32_0 : i32, i32
  }
  func.func @transform_47(%arg0: i32) -> (i32, i32) {
    %c0_i32 = arith.constant 0 : i32
    %c0_i32_0 = arith.constant 0 : i32
    %c0_i32_1 = arith.constant 0 : i32
    return %c0_i32, %c0_i32_0 : i32, i32
  }
}

</mosaic_0001>

<llo_original>
// kernel: gnn_policy_forward.1
$region0: #{gnn_policy_forward.1}
  #allocation0 [shape = 'u32[]', space=smem, size = 0x4, offset = 0x4, fixed_abs, tag = 'smem constant byte address 0x4 - core index']
  #allocation1 [shape = 'u32[144,128]{1,0:T(1,128)}', space=vmem, size = 0x12000, scoped, tag = 'internal scratch']
  %s0 = inlined_call_operand.smem [shape: u32[48], index: -1, kind: input, shape index: {}]
  %s1 = sld [smem:[%s0]]
  %s2 = scalar_lea.smem %s0, 1
  %s3 = sld [smem:[%s2]]
  %s4 = scalar_lea.smem %s0, 2
  %s5 = sld [smem:[%s4]]
  %s6 = scalar_lea.smem %s0, 3
  %s7 = sld [smem:[%s6]]
  %s8 = scalar_lea.smem %s0, 4
  %s9 = sld [smem:[%s8]]
  %s10 = scalar_lea.smem %s0, 5
  %s11 = sld [smem:[%s10]]
  %s12 = scalar_lea.smem %s0, 6
  %s13 = sld [smem:[%s12]]
  %s14 = scalar_lea.smem %s0, 7
  %s15 = sld [smem:[%s14]]
  %s16 = scalar_lea.smem %s0, 8
  %s17 = sld [smem:[%s16]]
  %s18 = scalar_lea.smem %s0, 9
  %s19 = sld [smem:[%s18]]
  %s20 = scalar_lea.smem %s0, 10
  %s21 = sld [smem:[%s20]]
  %s22 = scalar_lea.smem %s0, 11
  %s23 = sld [smem:[%s22]]
  %s24 = scalar_lea.smem %s0, 12
  %s25 = sld [smem:[%s24]]
  %s26 = scalar_lea.smem %s0, 13
  %s27 = sld [smem:[%s26]]
  %s28 = scalar_lea.smem %s0, 14
  %s29 = sld [smem:[%s28]]
  %s30 = scalar_lea.smem %s0, 15
  %s31 = sld [smem:[%s30]]
  %s32 = scalar_lea.smem %s0, 16
  %s33 = sld [smem:[%s32]]
  %s34 = scalar_lea.smem %s0, 17
  %s35 = sld [smem:[%s34]]
  %s36 = scalar_lea.smem %s0, 18
  %s37 = sld [smem:[%s36]]
  %s38 = scalar_lea.smem %s0, 19
  %s39 = sld [smem:[%s38]]
  %s40 = scalar_lea.smem %s0, 20
  %s41 = sld [smem:[%s40]]
  %s42 = scalar_lea.smem %s0, 21
  %s43 = sld [smem:[%s42]]
  %s44 = scalar_lea.smem %s0, 22
  %s45 = sld [smem:[%s44]]
  %s46 = scalar_lea.smem %s0, 23
  %s47 = sld [smem:[%s46]]
  %s48 = scalar_lea.smem %s0, 24
  %s49 = sld [smem:[%s48]]
  %s50 = scalar_lea.smem %s0, 25
  %s51 = sld [smem:[%s50]]
  %s52 = scalar_lea.smem %s0, 26
  %s53 = sld [smem:[%s52]]
  %s54 = scalar_lea.smem %s0, 27
  %s55 = sld [smem:[%s54]]
  %s56 = scalar_lea.smem %s0, 28
  %s57 = sld [smem:[%s56]]
  %s58 = scalar_lea.smem %s0, 29
  %s59 = sld [smem:[%s58]]
  %s60 = scalar_lea.smem %s0, 30
  %s61 = sld [smem:[%s60]]
  %s62 = scalar_lea.smem %s0, 31
  %s63 = sld [smem:[%s62]]
  %s64 = scalar_lea.smem %s0, 32
  %s65 = sld [smem:[%s64]]
  %s66 = scalar_lea.smem %s0, 33
  %s67 = sld [smem:[%s66]]
  %s68 = scalar_lea.smem %s0, 34
  %s69 = sld [smem:[%s68]]
  %s70 = scalar_lea.smem %s0, 35
  %s71 = sld [smem:[%s70]]
  %s72 = scalar_lea.smem %s0, 36
  %s73 = sld [smem:[%s72]]
  %s74 = scalar_lea.smem %s0, 37
  %s75 = sld [smem:[%s74]]
  %s76 = scalar_lea.smem %s0, 38
  %s77 = sld [smem:[%s76]]
  %s78 = scalar_lea.smem %s0, 39
  %s79 = sld [smem:[%s78]]
  %s80 = scalar_lea.smem %s0, 40
  %s81 = sld [smem:[%s80]]
  %s82 = scalar_lea.smem %s0, 41
  %s83 = sld [smem:[%s82]]
  %s84 = scalar_lea.smem %s0, 42
  %s85 = sld [smem:[%s84]]
  %s86 = scalar_lea.smem %s0, 43
  %s87 = sld [smem:[%s86]]
  %s88 = scalar_lea.smem %s0, 44
  %s89 = sld [smem:[%s88]]
  %s90 = scalar_lea.smem %s0, 45
  %s91 = sld [smem:[%s90]]
  %s92 = scalar_lea.smem %s0, 46
  %s93 = sld [smem:[%s92]]
  %s94 = scalar_lea.smem %s0, 47
  %s95 = sld [smem:[%s94]]
  %s96 = sld [smem:[#allocation0]]
  $region318: #{gnn_policy_forward.1} parent=0
    _
  %s98 = ssub.s32 1, %s96
  %s99 = scalar_select 0, %s98, %s96
  $region1: #{gnn_policy_forward.1} parent=0
    #allocation2 [shape = 'u8[512]{0}', space=vmem, size = 0x400, scoped, tag = 'input window, operand 4, single buffered']
    #allocation3 [shape = 's32[1]{0}', space=sflag, size = 0x4, scoped, tag = 'scoped memory for gnn_policy_forward.1']
    #allocation4 [shape = 's32[1]{0}', space=sflag, size = 0x4, scoped, tag = 'scoped memory for gnn_policy_forward.1']
    #allocation5 [shape = 'u8[512]{0}', space=vmem, size = 0x400, scoped, tag = 'input window, operand 5, single buffered']
    #allocation6 [shape = 's32[1]{0}', space=sflag, size = 0x4, scoped, tag = 'scoped memory for gnn_policy_forward.1']
    #allocation7 [shape = 'u8[4096]{0}', space=vmem, size = 0x1000, scoped, tag = 'input window, operand 6, single buffered']
    #allocation8 [shape = 'u8[512]{0}', space=vmem, size = 0x400, scoped, tag = 'input window, operand 7, single buffered']
    #allocation9 [shape = 's32[1]{0}', space=sflag, size = 0x4, scoped, tag = 'scoped memory for gnn_policy_forward.1']
    #allocation10 [shape = 'u8[512]{0}', space=vmem, size = 0x400, scoped, tag = 'input window, operand 9, single buffered']
    #allocation11 [shape = 'u8[512]{0}', space=vmem, size = 0x400, scoped, tag = 'input window, operand 13, single buffered']
    #allocation12 [shape = 's32[1]{0}', space=sflag, size = 0x4, scoped, tag = 'scoped memory for gnn_policy_forward.1']
    #allocation13 [shape = 'u8[512]{0}', space=vmem, size = 0x400, scoped, tag = 'input window, operand 15, single buffered']
    #allocation14 [shape = 'u8[512]{0}', space=vmem, size = 0x400, scoped, tag = 'input window, operand 19, single buffered']
    #allocation15 [shape = 's32[1]{0}', space=sflag, size = 0x4, scoped, tag = 'scoped memory for gnn_policy_forward.1']
    #allocation16 [shape = 'u8[512]{0}', space=vmem, size = 0x400, scoped, tag = 'input window, operand 20, single buffered']
    #allocation17 [shape = 'u8[512]{0}', space=vmem, size = 0x400, scoped, tag = 'input window, operand 22, single buffered']
    #allocation18 [shape = 's32[1]{0}', space=sflag, size = 0x4, scoped, tag = 'scoped memory for gnn_policy_forward.1']
    #allocation19 [shape = 'u8[512]{0}', space=vmem, size = 0x400, scoped, tag = 'input window, operand 23, single buffered']
    #allocation20 [shape = 'u8[512]{0}', space=vmem, size = 0x400, scoped, tag = 'input window, operand 24, single buffered']
    #allocation21 [shape = 's32[1]{0}', space=sflag, size = 0x4, scoped, tag = 'scoped memory for gnn_policy_forward.1']
    #allocation22 [shape = 'u8[16384]{0}', space=vmem, size = 0x4000, scoped, tag = 'input window, operand 25, single buffered']
    #allocation23 [shape = 'u8[16384]{0}', space=vmem, size = 0x4000, scoped, tag = 'input window, operand 26, single buffered']
    #allocation24 [shape = 's32[1]{0}', space=sflag, size = 0x4, scoped, tag = 'scoped memory for gnn_policy_forward.1']
    #allocation25 [shape = 'u8[512]{0}', space=vmem, size = 0x400, scoped, tag = 'input window, operand 27, single buffered']
    #allocation26 [shape = 'u8[512]{0}', space=vmem, size = 0x400, scoped, tag = 'input window, operand 29, single buffered']
    #allocation27 [shape = 's32[1]{0}', space=sflag, size = 0x4, scoped, tag = 'scoped memory for gnn_policy_forward.1']
    #allocation28 [shape = 'u8[16384]{0}', space=vmem, size = 0x4000, scoped, tag = 'input window, operand 30, single buffered']
    #allocation29 [shape = 'u8[16384]{0}', space=vmem, size = 0x4000, scoped, tag = 'input window, operand 32, single buffered']
    #allocation30 [shape = 's32[1]{0}', space=sflag, size = 0x4, scoped, tag = 'scoped memory for gnn_policy_forward.1']
    #allocation31 [shape = 'u8[512]{0}', space=vmem, size = 0x400, scoped, tag = 'input window, operand 33, single buffered']
    #allocation32 [shape = 'u8[512]{0}', space=vmem, size = 0x400, scoped, tag = 'input window, operand 34, single buffered']
    #allocation33 [shape = 's32[1]{0}', space=sflag, size = 0x4, scoped, tag = 'scoped memory for gnn_policy_forward.1']
    #allocation34 [shape = 'u8[16384]{0}', space=vmem, size = 0x4000, scoped, tag = 'input window, operand 35, single buffered']
    #allocation35 [shape = 'u8[512]{0}', space=vmem, size = 0x400, scoped, tag = 'input window, operand 36, single buffered']
    #allocation36 [shape = 's32[1]{0}', space=sflag, size = 0x4, scoped, tag = 'scoped memory for gnn_policy_forward.1']
    #allocation37 [shape = 'u8[512]{0}', space=vmem, size = 0x400, scoped, tag = 'input window, operand 37, single buffered']
    #allocation38 [shape = 'u8[512]{0}', space=vmem, size = 0x400, scoped, tag = 'input window, operand 38, single buffered']
    #allocation39 [shape = 's32[1]{0}', space=sflag, size = 0x4, scoped, tag = 'scoped memory for gnn_policy_forward.1']
    #allocation40 [shape = 'u8[16384]{0}', space=vmem, size = 0x4000, scoped, tag = 'input window, operand 39, single buffered']
    #allocation41 [shape = 'u8[16384]{0}', space=vmem, size = 0x4000, scoped, tag = 'input window, operand 40, single buffered']
    #allocation42 [shape = 's32[1]{0}', space=sflag, size = 0x4, scoped, tag = 'scoped memory for gnn_policy_forward.1']
    #allocation43 [shape = 'u8[512]{0}', space=vmem, size = 0x400, scoped, tag = 'input window, operand 41, single buffered']
    #allocation44 [shape = 'u8[16384]{0}', space=vmem, size = 0x4000, scoped, tag = 'input window, operand 42, single buffered']
    #allocation45 [shape = 's32[1]{0}', space=sflag, size = 0x4, scoped, tag = 'scoped memory for gnn_policy_forward.1']
    #allocation46 [shape = 'u8[512]{0}', space=vmem, size = 0x400, scoped, tag = 'input window, operand 43, single buffered']
    #allocation47 [shape = 'u8[512]{0}', space=vmem, size = 0x400, scoped, tag = 'input window, operand 45, single buffered']
    #allocation48 [shape = 's32[1]{0}', space=sflag, size = 0x4, scoped, tag = 'scoped memory for gnn_policy_forward.1']
    #allocation49 [shape = 'u8[512]{0}', space=vmem, size = 0x400, scoped, tag = 'output window, operand 0, single buffered']
    %100 = vsyncpa [#allocation3], 0
    %101 = vsyncpa [#allocation6], 0
    %102 = vsyncpa [#allocation9], 0
    %103 = vsyncpa [#allocation12], 0
    %104 = vsyncpa [#allocation15], 0
    %105 = vsyncpa [#allocation18], 0
    %106 = vsyncpa [#allocation21], 0
    %107 = vsyncpa [#allocation24], 0
    %108 = vsyncpa [#allocation27], 0
    %109 = vsyncpa [#allocation30], 0
    %110 = vsyncpa [#allocation33], 0
    %111 = vsyncpa [#allocation36], 0
    %112 = vsyncpa [#allocation39], 0
    %113 = vsyncpa [#allocation42], 0
    %114 = vsyncpa [#allocation45], 0
    %115 = vsyncpa [#allocation48], 0
    %116 = vsyncpa [#allocation4], 0
    // Predicated region
    $region2: #{gnn_policy_forward.1} parent=1 // pred_check
      _
    $region3: #{gnn_policy_forward.1} parent=1 // pred_check_branch
      %118 = sbr.rel (0) target = $region5
    $region4: #{gnn_policy_forward.1} parent=1 // pred_region
      _
    $region5: #{gnn_policy_forward.1} parent=1 // pred_fallthru
      _
    // Predicated region
    $region6: #{gnn_policy_forward.1} parent=1 // pred_check
      _
    $region7: #{gnn_policy_forward.1} parent=1 // pred_check_branch
      %120 = sbr.rel (0) target = $region9
    $region8: #{gnn_policy_forward.1} parent=1 // pred_region
      _
    $region9: #{gnn_policy_forward.1} parent=1 // pred_fallthru
      _
    // Predicated region
    $region10: #{gnn_policy_forward.1} parent=1 // pred_check
      _
    $region11: #{gnn_policy_forward.1} parent=1 // pred_check_branch
      %122 = sbr.rel (0) target = $region13
    $region12: #{gnn_policy_forward.1} parent=1 // pred_region
      _
    $region13: #{gnn_policy_forward.1} parent=1 // pred_fallthru
      _
    // Predicated region
    $region14: #{gnn_policy_forward.1} parent=1 // pred_check
      _
    $region15: #{gnn_policy_forward.1} parent=1 // pred_check_branch
      %124 = sbr.rel (0) target = $region17
    $region16: #{gnn_policy_forward.1} parent=1 // pred_region
      _
    $region17: #{gnn_policy_forward.1} parent=1 // pred_fallthru
      _
    // Predicated region
    $region18: #{gnn_policy_forward.1} parent=1 // pred_check
      _
    $region19: #{gnn_policy_forward.1} parent=1 // pred_check_branch
      %126 = sbr.rel (0) target = $region21
    $region20: #{gnn_policy_forward.1} parent=1 // pred_region
      %s128 = ssub.s32 16, 16
      %129 = vsyncadd [#allocation3], %s128
      %s131 = sshll.u32 [#allocation2], 4
      %s132 = int_to_ptr.vmem [resolvable:$true] %s131
      %134 = dma.hbm_to_vmem [thread:$0]  %s9, 16, %s132, [#allocation3]
    $region21: #{gnn_policy_forward.1} parent=1 // pred_fallthru
      _
    // Predicated region
    $region22: #{gnn_policy_forward.1} parent=1 // pred_check
      _
    $region23: #{gnn_policy_forward.1} parent=1 // pred_check_branch
      %136 = sbr.rel (0) target = $region25
    $region24: #{gnn_policy_forward.1} parent=1 // pred_region
      %s138 = ssub.s32 16, 16
      %139 = vsyncadd [#allocation6], %s138
      %s141 = sshll.u32 [#allocation5], 4
      %s142 = int_to_ptr.vmem [resolvable:$true] %s141
      %144 = dma.hbm_to_vmem [thread:$0]  %s11, 16, %s142, [#allocation6]
    $region25: #{gnn_policy_forward.1} parent=1 // pred_fallthru
      _
    // Predicated region
    $region26: #{gnn_policy_forward.1} parent=1 // pred_check
      _
    $region27: #{gnn_policy_forward.1} parent=1 // pred_check_branch
      %146 = sbr.rel (0) target = $region29
    $region28: #{gnn_policy_forward.1} parent=1 // pred_region
      %s148 = ssub.s32 128, 128
      %149 = vsyncadd [#allocation6], %s148
      %s151 = sshll.u32 [#allocation7], 4
      %s152 = int_to_ptr.vmem [resolvable:$true] %s151
      %154 = dma.hbm_to_vmem [thread:$0]  %s13, 128, %s152, [#allocation6]
    $region29: #{gnn_policy_forward.1} parent=1 // pred_fallthru
      _
    // Predicated region
    $region30: #{gnn_policy_forward.1} parent=1 // pred_check
      _
    $region31: #{gnn_policy_forward.1} parent=1 // pred_check_branch
      %156 = sbr.rel (0) target = $region33
    $region32: #{gnn_policy_forward.1} parent=1 // pred_region
      %s158 = ssub.s32 16, 16
      %159 = vsyncadd [#allocation9], %s158
      %s161 = sshll.u32 [#allocation8], 4
      %s162 = int_to_ptr.vmem [resolvable:$true] %s161
      %164 = dma.hbm_to_vmem [thread:$0]  %s15, 16, %s162, [#allocation9]
    $region33: #{gnn_policy_forward.1} parent=1 // pred_fallthru
      _
    // Predicated region
    $region34: #{gnn_policy_forward.1} parent=1 // pred_check
      _
    $region35: #{gnn_policy_forward.1} parent=1 // pred_check_branch
      %166 = sbr.rel (0) target = $region37
    $region36: #{gnn_policy_forward.1} parent=1 // pred_region
      _
    $region37: #{gnn_policy_forward.1} parent=1 // pred_fallthru
      _
    // Predicated region
    $region38: #{gnn_policy_forward.1} parent=1 // pred_check
      _
    $region39: #{gnn_policy_forward.1} parent=1 // pred_check_branch
      %168 = sbr.rel (0) target = $region41
    $region40: #{gnn_policy_forward.1} parent=1 // pred_region
      %s170 = ssub.s32 16, 16
      %171 = vsyncadd [#allocation9], %s170
      %s173 = sshll.u32 [#allocation10], 4
      %s174 = int_to_ptr.vmem [resolvable:$true] %s173
      %176 = dma.hbm_to_vmem [thread:$0]  %s19, 16, %s174, [#allocation9]
    $region41: #{gnn_policy_forward.1} parent=1 // pred_fallthru
      _
    // Predicated region
    $region42: #{gnn_policy_forward.1} parent=1 // pred_check
      _
    $region43: #{gnn_policy_forward.1} parent=1 // pred_check_branch
      %178 = sbr.rel (0) target = $region45
    $region44: #{gnn_policy_forward.1} parent=1 // pred_region
      _
    $region45: #{gnn_policy_forward.1} parent=1 // pred_fallthru
      _
    // Predicated region
    $region46: #{gnn_policy_forward.1} parent=1 // pred_check
      _
    $region47: #{gnn_policy_forward.1} parent=1 // pred_check_branch
      %180 = sbr.rel (0) target = $region49
    $region48: #{gnn_policy_forward.1} parent=1 // pred_region
      _
    $region49: #{gnn_policy_forward.1} parent=1 // pred_fallthru
      _
    // Predicated region
    $region50: #{gnn_policy_forward.1} parent=1 // pred_check
      _
    $region51: #{gnn_policy_forward.1} parent=1 // pred_check_branch
      %182 = sbr.rel (0) target = $region53
    $region52: #{gnn_policy_forward.1} parent=1 // pred_region
      _
    $region53: #{gnn_policy_forward.1} parent=1 // pred_fallthru
      _
    // Predicated region
    $region54: #{gnn_policy_forward.1} parent=1 // pred_check
      _
    $region55: #{gnn_policy_forward.1} parent=1 // pred_check_branch
      %184 = sbr.rel (0) target = $region57
    $region56: #{gnn_policy_forward.1} parent=1 // pred_region
      %s186 = ssub.s32 16, 16
      %187 = vsyncadd [#allocation12], %s186
      %s189 = sshll.u32 [#allocation11], 4
      %s190 = int_to_ptr.vmem [resolvable:$true] %s189
      %192 = dma.hbm_to_vmem [thread:$0]  %s27, 16, %s190, [#allocation12]
    $region57: #{gnn_policy_forward.1} parent=1 // pred_fallthru
      _
    // Predicated region
    $region58: #{gnn_policy_forward.1} parent=1 // pred_check
      _
    $region59: #{gnn_policy_forward.1} parent=1 // pred_check_branch
      %194 = sbr.rel (0) target = $region61
    $region60: #{gnn_policy_forward.1} parent=1 // pred_region
      _
    $region61: #{gnn_policy_forward.1} parent=1 // pred_fallthru
      _
    // Predicated region
    $region62: #{gnn_policy_forward.1} parent=1 // pred_check
      _
    $region63: #{gnn_policy_forward.1} parent=1 // pred_check_branch
      %196 = sbr.rel (0) target = $region65
    $region64: #{gnn_policy_forward.1} parent=1 // pred_region
      %s198 = ssub.s32 16, 16
      %199 = vsyncadd [#allocation12], %s198
      %s201 = sshll.u32 [#allocation13], 4
      %s202 = int_to_ptr.vmem [resolvable:$true] %s201
      %204 = dma.hbm_to_vmem [thread:$0]  %s31, 16, %s202, [#allocation12]
    $region65: #{gnn_policy_forward.1} parent=1 // pred_fallthru
      _
    // Predicated region
    $region66: #{gnn_policy_forward.1} parent=1 // pred_check
      _
    $region67: #{gnn_policy_forward.1} parent=1 // pred_check_branch
      %206 = sbr.rel (0) target = $region69
    $region68: #{gnn_policy_forward.1} parent=1 // pred_region
      _
    $region69: #{gnn_policy_forward.1} parent=1 // pred_fallthru
      _
    // Predicated region
    $region70: #{gnn_policy_forward.1} parent=1 // pred_check
      _
    $region71: #{gnn_policy_forward.1} parent=1 // pred_check_branch
      %208 = sbr.rel (0) target = $region73
    $region72: #{gnn_policy_forward.1} parent=1 // pred_region
      _
    $region73: #{gnn_policy_forward.1} parent=1 // pred_fallthru
      _
    // Predicated region
    $region74: #{gnn_policy_forward.1} parent=1 // pred_check
      _
    $region75: #{gnn_policy_forward.1} parent=1 // pred_check_branch
      %210 = sbr.rel (0) target = $region77
    $region76: #{gnn_policy_forward.1} parent=1 // pred_region
      _
    $region77: #{gnn_policy_forward.1} parent=1 // pred_fallthru
      _
    // Predicated region
    $region78: #{gnn_policy_forward.1} parent=1 // pred_check
      _
    $region79: #{gnn_policy_forward.1} parent=1 // pred_check_branch
      %212 = sbr.rel (0) target = $region81
    $region80: #{gnn_policy_forward.1} parent=1 // pred_region
      %s214 = ssub.s32 16, 16
      %215 = vsyncadd [#allocation15], %s214
      %s217 = sshll.u32 [#allocation14], 4
      %s218 = int_to_ptr.vmem [resolvable:$true] %s217
      %220 = dma.hbm_to_vmem [thread:$0]  %s39, 16, %s218, [#allocation15]
    $region81: #{gnn_policy_forward.1} parent=1 // pred_fallthru
      _
    // Predicated region
    $region82: #{gnn_policy_forward.1} parent=1 // pred_check
      _
    $region83: #{gnn_policy_forward.1} parent=1 // pred_check_branch
      %222 = sbr.rel (0) target = $region85
    $region84: #{gnn_policy_forward.1} parent=1 // pred_region
      %s224 = ssub.s32 16, 16
      %225 = vsyncadd [#allocation15], %s224
      %s227 = sshll.u32 [#allocation16], 4
      %s228 = int_to_ptr.vmem [resolvable:$true] %s227
      %230 = dma.hbm_to_vmem [thread:$0]  %s41, 16, %s228, [#allocation15]
    $region85: #{gnn_policy_forward.1} parent=1 // pred_fallthru
      _
    // Predicated region
    $region86: #{gnn_policy_forward.1} parent=1 // pred_check
      _
    $region87: #{gnn_policy_forward.1} parent=1 // pred_check_branch
      %232 = sbr.rel (0) target = $region89
    $region88: #{gnn_policy_forward.1} parent=1 // pred_region
      _
    $region89: #{gnn_policy_forward.1} parent=1 // pred_fallthru
      _
    // Predicated region
    $region90: #{gnn_policy_forward.1} parent=1 // pred_check
      _
    $region91: #{gnn_policy_forward.1} parent=1 // pred_check_branch
      %234 = sbr.rel (0) target = $region93
    $region92: #{gnn_policy_forward.1} parent=1 // pred_region
      %s236 = ssub.s32 16, 16
      %237 = vsyncadd [#allocation18], %s236
      %s239 = sshll.u32 [#allocation17], 4
      %s240 = int_to_ptr.vmem [resolvable:$true] %s239
      %242 = dma.hbm_to_vmem [thread:$0]  %s45, 16, %s240, [#allocation18]
    $region93: #{gnn_policy_forward.1} parent=1 // pred_fallthru
      _
    // Predicated region
    $region94: #{gnn_policy_forward.1} parent=1 // pred_check
      _
    $region95: #{gnn_policy_forward.1} parent=1 // pred_check_branch
      %244 = sbr.rel (0) target = $region97
    $region96: #{gnn_policy_forward.1} parent=1 // pred_region
      %s246 = ssub.s32 16, 16
      %247 = vsyncadd [#allocation18], %s246
      %s249 = sshll.u32 [#allocation19], 4
      %s250 = int_to_ptr.vmem [resolvable:$true] %s249
      %252 = dma.hbm_to_vmem [thread:$0]  %s47, 16, %s250, [#allocation18]
    $region97: #{gnn_policy_forward.1} parent=1 // pred_fallthru
      _
    // Predicated region
    $region98: #{gnn_policy_forward.1} parent=1 // pred_check
      _
    $region99: #{gnn_policy_forward.1} parent=1 // pred_check_branch
      %254 = sbr.rel (0) target = $region101
    $region100: #{gnn_policy_forward.1} parent=1 // pred_region
      %s256 = ssub.s32 16, 16
      %257 = vsyncadd [#allocation21], %s256
      %s259 = sshll.u32 [#allocation20], 4
      %s260 = int_to_ptr.vmem [resolvable:$true] %s259
      %262 = dma.hbm_to_vmem [thread:$0]  %s49, 16, %s260, [#allocation21]
    $region101: #{gnn_policy_forward.1} parent=1 // pred_fallthru
      _
    // Predicated region
    $region102: #{gnn_policy_forward.1} parent=1 // pred_check
      _
    $region103: #{gnn_policy_forward.1} parent=1 // pred_check_branch
      %264 = sbr.rel (0) target = $region105
    $region104: #{gnn_policy_forward.1} parent=1 // pred_region
      %s266 = ssub.s32 512, 512
      %267 = vsyncadd [#allocation21], %s266
      %s268 = sshll.u32 [#allocation22], 4
      %s269 = int_to_ptr.vmem [resolvable:$true] %s268
      %274 = dma.hbm_to_vmem [thread:$0]  %s51, 512, %s269, [#allocation21], 128, 128, 8
    $region105: #{gnn_policy_forward.1} parent=1 // pred_fallthru
      _
    // Predicated region
    $region106: #{gnn_policy_forward.1} parent=1 // pred_check
      _
    $region107: #{gnn_policy_forward.1} parent=1 // pred_check_branch
      %276 = sbr.rel (0) target = $region109
    $region108: #{gnn_policy_forward.1} parent=1 // pred_region
      %s278 = ssub.s32 512, 512
      %279 = vsyncadd [#allocation24], %s278
      %s280 = sshll.u32 [#allocation23], 4
      %s281 = int_to_ptr.vmem [resolvable:$true] %s280
      %286 = dma.hbm_to_vmem [thread:$0]  %s53, 512, %s281, [#allocation24], 128, 128, 8
    $region109: #{gnn_policy_forward.1} parent=1 // pred_fallthru
      _
    // Predicated region
    $region110: #{gnn_policy_forward.1} parent=1 // pred_check
      _
    $region111: #{gnn_policy_forward.1} parent=1 // pred_check_branch
      %288 = sbr.rel (0) target = $region113
    $region112: #{gnn_policy_forward.1} parent=1 // pred_region
      %s290 = ssub.s32 16, 16
      %291 = vsyncadd [#allocation24], %s290
      %s293 = sshll.u32 [#allocation25], 4
      %s294 = int_to_ptr.vmem [resolvable:$true] %s293
      %296 = dma.hbm_to_vmem [thread:$0]  %s55, 16, %s294, [#allocation24]
    $region113: #{gnn_policy_forward.1} parent=1 // pred_fallthru
      _
    // Predicated region
    $region114: #{gnn_policy_forward.1} parent=1 // pred_check
      _
    $region115: #{gnn_policy_forward.1} parent=1 // pred_check_branch
      %298 = sbr.rel (0) target = $region117
    $region116: #{gnn_policy_forward.1} parent=1 // pred_region
      _
    $region117: #{gnn_policy_forward.1} parent=1 // pred_fallthru
      _
    // Predicated region
    $region118: #{gnn_policy_forward.1} parent=1 // pred_check
      _
    $region119: #{gnn_policy_forward.1} parent=1 // pred_check_branch
      %300 = sbr.rel (0) target = $region121
    $region120: #{gnn_policy_forward.1} parent=1 // pred_region
      %s302 = ssub.s32 16, 16
      %303 = vsyncadd [#allocation27], %s302
      %s305 = sshll.u32 [#allocation26], 4
      %s306 = int_to_ptr.vmem [resolvable:$true] %s305
      %308 = dma.hbm_to_vmem [thread:$0]  %s59, 16, %s306, [#allocation27]
    $region121: #{gnn_policy_forward.1} parent=1 // pred_fallthru
      _
    // Predicated region
    $region122: #{gnn_policy_forward.1} parent=1 // pred_check
      _
    $region123: #{gnn_policy_forward.1} parent=1 // pred_check_branch
      %310 = sbr.rel (0) target = $region125
    $region124: #{gnn_policy_forward.1} parent=1 // pred_region
      %s312 = ssub.s32 512, 512
      %313 = vsyncadd [#allocation27], %s312
      %s314 = sshll.u32 [#allocation28], 4
      %s315 = int_to_ptr.vmem [resolvable:$true] %s314
      %320 = dma.hbm_to_vmem [thread:$0]  %s61, 512, %s315, [#allocation27], 128, 128, 8
    $region125: #{gnn_policy_forward.1} parent=1 // pred_fallthru
      _
    // Predicated region
    $region126: #{gnn_policy_forward.1} parent=1 // pred_check
      _
    $region127: #{gnn_policy_forward.1} parent=1 // pred_check_branch
      %322 = sbr.rel (0) target = $region129
    $region128: #{gnn_policy_forward.1} parent=1 // pred_region
      _
    $region129: #{gnn_policy_forward.1} parent=1 // pred_fallthru
      _
    // Predicated region
    $region130: #{gnn_policy_forward.1} parent=1 // pred_check
      _
    $region131: #{gnn_policy_forward.1} parent=1 // pred_check_branch
      %324 = sbr.rel (0) target = $region133
    $region132: #{gnn_policy_forward.1} parent=1 // pred_region
      %s326 = ssub.s32 512, 512
      %327 = vsyncadd [#allocation30], %s326
      %s328 = sshll.u32 [#allocation29], 4
      %s329 = int_to_ptr.vmem [resolvable:$true] %s328
      %334 = dma.hbm_to_vmem [thread:$0]  %s65, 512, %s329, [#allocation30], 128, 128, 8
    $region133: #{gnn_policy_forward.1} parent=1 // pred_fallthru
      _
    // Predicated region
    $region134: #{gnn_policy_forward.1} parent=1 // pred_check
      _
    $region135: #{gnn_policy_forward.1} parent=1 // pred_check_branch
      %336 = sbr.rel (0) target = $region137
    $region136: #{gnn_policy_forward.1} parent=1 // pred_region
      %s338 = ssub.s32 16, 16
      %339 = vsyncadd [#allocation30], %s338
      %s341 = sshll.u32 [#allocation31], 4
      %s342 = int_to_ptr.vmem [resolvable:$true] %s341
      %344 = dma.hbm_to_vmem [thread:$0]  %s67, 16, %s342, [#allocation30]
    $region137: #{gnn_policy_forward.1} parent=1 // pred_fallthru
      _
    // Predicated region
    $region138: #{gnn_policy_forward.1} parent=1 // pred_check
      _
    $region139: #{gnn_policy_forward.1} parent=1 // pred_check_branch
      %346 = sbr.rel (0) target = $region141
    $region140: #{gnn_policy_forward.1} parent=1 // pred_region
      %s348 = ssub.s32 16, 16
      %349 = vsyncadd [#allocation33], %s348
      %s351 = sshll.u32 [#allocation32], 4
      %s352 = int_to_ptr.vmem [resolvable:$true] %s351
      %354 = dma.hbm_to_vmem [thread:$0]  %s69, 16, %s352, [#allocation33]
    $region141: #{gnn_policy_forward.1} parent=1 // pred_fallthru
      _
    // Predicated region
    $region142: #{gnn_policy_forward.1} parent=1 // pred_check
      _
    $region143: #{gnn_policy_forward.1} parent=1 // pred_check_branch
      %356 = sbr.rel (0) target = $region145
    $region144: #{gnn_policy_forward.1} parent=1 // pred_region
      %s358 = ssub.s32 512, 512
      %359 = vsyncadd [#allocation33], %s358
      %s360 = sshll.u32 [#allocation34], 4
      %s361 = int_to_ptr.vmem [resolvable:$true] %s360
      %366 = dma.hbm_to_vmem [thread:$0]  %s71, 512, %s361, [#allocation33], 128, 128, 8
    $region145: #{gnn_policy_forward.1} parent=1 // pred_fallthru
      _
    // Predicated region
    $region146: #{gnn_policy_forward.1} parent=1 // pred_check
      _
    $region147: #{gnn_policy_forward.1} parent=1 // pred_check_branch
      %368 = sbr.rel (0) target = $region149
    $region148: #{gnn_policy_forward.1} parent=1 // pred_region
      %s370 = ssub.s32 16, 16
      %371 = vsyncadd [#allocation36], %s370
      %s373 = sshll.u32 [#allocation35], 4
      %s374 = int_to_ptr.vmem [resolvable:$true] %s373
      %376 = dma.hbm_to_vmem [thread:$0]  %s73, 16, %s374, [#allocation36]
    $region149: #{gnn_policy_forward.1} parent=1 // pred_fallthru
      _
    // Predicated region
    $region150: #{gnn_policy_forward.1} parent=1 // pred_check
      _
    $region151: #{gnn_policy_forward.1} parent=1 // pred_check_branch
      %378 = sbr.rel (0) target = $region153
    $region152: #{gnn_policy_forward.1} parent=1 // pred_region
      %s380 = ssub.s32 16, 16
      %381 = vsyncadd [#allocation36], %s380
      %s383 = sshll.u32 [#allocation37], 4
      %s384 = int_to_ptr.vmem [resolvable:$true] %s383
      %386 = dma.hbm_to_vmem [thread:$0]  %s75, 16, %s384, [#allocation36]
    $region153: #{gnn_policy_forward.1} parent=1 // pred_fallthru
      _
    // Predicated region
    $region154: #{gnn_policy_forward.1} parent=1 // pred_check
      _
    $region155: #{gnn_policy_forward.1} parent=1 // pred_check_branch
      %388 = sbr.rel (0) target = $region157
    $region156: #{gnn_policy_forward.1} parent=1 // pred_region
      %s390 = ssub.s32 16, 16
      %391 = vsyncadd [#allocation39], %s390
      %s393 = sshll.u32 [#allocation38], 4
      %s394 = int_to_ptr.vmem [resolvable:$true] %s393
      %396 = dma.hbm_to_vmem [thread:$0]  %s77, 16, %s394, [#allocation39]
    $region157: #{gnn_policy_forward.1} parent=1 // pred_fallthru
      _
    // Predicated region
    $region158: #{gnn_policy_forward.1} parent=1 // pred_check
      _
    $region159: #{gnn_policy_forward.1} parent=1 // pred_check_branch
      %398 = sbr.rel (0) target = $region161
    $region160: #{gnn_policy_forward.1} parent=1 // pred_region
      %s400 = ssub.s32 512, 512
      %401 = vsyncadd [#allocation39], %s400
      %s402 = sshll.u32 [#allocation40], 4
      %s403 = int_to_ptr.vmem [resolvable:$true] %s402
      %408 = dma.hbm_to_vmem [thread:$0]  %s79, 512, %s403, [#allocation39], 128, 128, 8
    $region161: #{gnn_policy_forward.1} parent=1 // pred_fallthru
      _
    // Predicated region
    $region162: #{gnn_policy_forward.1} parent=1 // pred_check
      _
    $region163: #{gnn_policy_forward.1} parent=1 // pred_check_branch
      %410 = sbr.rel (0) target = $region165
    $region164: #{gnn_policy_forward.1} parent=1 // pred_region
      %s412 = ssub.s32 512, 512
      %413 = vsyncadd [#allocation42], %s412
      %s414 = sshll.u32 [#allocation41], 4
      %s415 = int_to_ptr.vmem [resolvable:$true] %s414
      %420 = dma.hbm_to_vmem [thread:$0]  %s81, 512, %s415, [#allocation42], 128, 128, 8
    $region165: #{gnn_policy_forward.1} parent=1 // pred_fallthru
      _
    // Predicated region
    $region166: #{gnn_policy_forward.1} parent=1 // pred_check
      _
    $region167: #{gnn_policy_forward.1} parent=1 // pred_check_branch
      %422 = sbr.rel (0) target = $region169
    $region168: #{gnn_policy_forward.1} parent=1 // pred_region
      %s424 = ssub.s32 16, 16
      %425 = vsyncadd [#allocation42], %s424
      %s427 = sshll.u32 [#allocation43], 4
      %s428 = int_to_ptr.vmem [resolvable:$true] %s427
      %430 = dma.hbm_to_vmem [thread:$0]  %s83, 16, %s428, [#allocation42]
    $region169: #{gnn_policy_forward.1} parent=1 // pred_fallthru
      _
    // Predicated region
    $region170: #{gnn_policy_forward.1} parent=1 // pred_check
      _
    $region171: #{gnn_policy_forward.1} parent=1 // pred_check_branch
      %432 = sbr.rel (0) target = $region173
    $region172: #{gnn_policy_forward.1} parent=1 // pred_region
      %s434 = ssub.s32 512, 512
      %435 = vsyncadd [#allocation45], %s434
      %s436 = sshll.u32 [#allocation44], 4
      %s437 = int_to_ptr.vmem [resolvable:$true] %s436
      %442 = dma.hbm_to_vmem [thread:$0]  %s85, 512, %s437, [#allocation45], 128, 128, 8
    $region173: #{gnn_policy_forward.1} parent=1 // pred_fallthru
      _
    // Predicated region
    $region174: #{gnn_policy_forward.1} parent=1 // pred_check
      _
    $region175: #{gnn_policy_forward.1} parent=1 // pred_check_branch
      %444 = sbr.rel (0) target = $region177
    $region176: #{gnn_policy_forward.1} parent=1 // pred_region
      %s446 = ssub.s32 16, 16
      %447 = vsyncadd [#allocation45], %s446
      %s449 = sshll.u32 [#allocation46], 4
      %s450 = int_to_ptr.vmem [resolvable:$true] %s449
      %452 = dma.hbm_to_vmem [thread:$0]  %s87, 16, %s450, [#allocation45]
    $region177: #{gnn_policy_forward.1} parent=1 // pred_fallthru
      _
    // Predicated region
    $region178: #{gnn_policy_forward.1} parent=1 // pred_check
      _
    $region179: #{gnn_policy_forward.1} parent=1 // pred_check_branch
      %454 = sbr.rel (0) target = $region181
    $region180: #{gnn_policy_forward.1} parent=1 // pred_region
      _
    $region181: #{gnn_policy_forward.1} parent=1 // pred_fallthru
      _
    // Predicated region
    $region182: #{gnn_policy_forward.1} parent=1 // pred_check
      _
    $region183: #{gnn_policy_forward.1} parent=1 // pred_check_branch
      %456 = sbr.rel (0) target = $region185
    $region184: #{gnn_policy_forward.1} parent=1 // pred_region
      %s458 = ssub.s32 16, 16
      %459 = vsyncadd [#allocation48], %s458
      %s461 = sshll.u32 [#allocation47], 4
      %s462 = int_to_ptr.vmem [resolvable:$true] %s461
      %464 = dma.hbm_to_vmem [thread:$0]  %s91, 16, %s462, [#allocation48]
    $region185: #{gnn_policy_forward.1} parent=1 // pred_fallthru
      _
    // Predicated region
    $region186: #{gnn_policy_forward.1} parent=1 // pred_check
      _
    $region187: #{gnn_policy_forward.1} parent=1 // pred_check_branch
      %466 = sbr.rel (0) target = $region189
    $region188: #{gnn_policy_forward.1} parent=1 // pred_region
      _
    $region189: #{gnn_policy_forward.1} parent=1 // pred_fallthru
      _
    // Predicated region
    $region190: #{gnn_policy_forward.1} parent=1 // pred_check
      _
    $region191: #{gnn_policy_forward.1} parent=1 // pred_check_branch
      %468 = sbr.rel (0) target = $region193
    $region192: #{gnn_policy_forward.1} parent=1 // pred_region
      %469 = dma.done [#allocation3], 16
    $region193: #{gnn_policy_forward.1} parent=1 // pred_fallthru
      _
    // Predicated region
    $region194: #{gnn_policy_forward.1} parent=1 // pred_check
      _
    $region195: #{gnn_policy_forward.1} parent=1 // pred_check_branch
      %471 = sbr.rel (0) target = $region197
    $region196: #{gnn_policy_forward.1} parent=1 // pred_region
      %472 = dma.done [#allocation6], 16
    $region197: #{gnn_policy_forward.1} parent=1 // pred_fallthru
      _
    // Predicated region
    $region198: #{gnn_policy_forward.1} parent=1 // pred_check
      _
    $region199: #{gnn_policy_forward.1} parent=1 // pred_check_branch
      %474 = sbr.rel (0) target = $region201
    $region200: #{gnn_policy_forward.1} parent=1 // pred_region
      %475 = dma.done [#allocation6], 128
    $region201: #{gnn_policy_forward.1} parent=1 // pred_fallthru
      _
    // Predicated region
    $region202: #{gnn_policy_forward.1} parent=1 // pred_check
      _
    $region203: #{gnn_policy_forward.1} parent=1 // pred_check_branch
      %477 = sbr.rel (0) target = $region205
    $region204: #{gnn_policy_forward.1} parent=1 // pred_region
      %478 = dma.done [#allocation9], 16
    $region205: #{gnn_policy_forward.1} parent=1 // pred_fallthru
      _
    // Predicated region
    $region206: #{gnn_policy_forward.1} parent=1 // pred_check
      _
    $region207: #{gnn_policy_forward.1} parent=1 // pred_check_branch
      %480 = sbr.rel (0) target = $region209
    $region208: #{gnn_policy_forward.1} parent=1 // pred_region
      %481 = dma.done [#allocation9], 16
    $region209: #{gnn_policy_forward.1} parent=1 // pred_fallthru
      _
    // Predicated region
    $region210: #{gnn_policy_forward.1} parent=1 // pred_check
      _
    $region211: #{gnn_policy_forward.1} parent=1 // pred_check_branch
      %483 = sbr.rel (0) target = $region213
    $region212: #{gnn_policy_forward.1} parent=1 // pred_region
      %484 = dma.done [#allocation12], 16
    $region213: #{gnn_policy_forward.1} parent=1 // pred_fallthru
      _
    // Predicated region
    $region214: #{gnn_policy_forward.1} parent=1 // pred_check
      _
    $region215: #{gnn_policy_forward.1} parent=1 // pred_check_branch
      %486 = sbr.rel (0) target = $region217
    $region216: #{gnn_policy_forward.1} parent=1 // pred_region
      %487 = dma.done [#allocation12], 16
    $region217: #{gnn_policy_forward.1} parent=1 // pred_fallthru
      _
    // Predicated region
    $region218: #{gnn_policy_forward.1} parent=1 // pred_check
      _
    $region219: #{gnn_policy_forward.1} parent=1 // pred_check_branch
      %489 = sbr.rel (0) target = $region221
    $region220: #{gnn_policy_forward.1} parent=1 // pred_region
      %490 = dma.done [#allocation15], 16
    $region221: #{gnn_policy_forward.1} parent=1 // pred_fallthru
      _
    // Predicated region
    $region222: #{gnn_policy_forward.1} parent=1 // pred_check
      _
    $region223: #{gnn_policy_forward.1} parent=1 // pred_check_branch
      %492 = sbr.rel (0) target = $region225
    $region224: #{gnn_policy_forward.1} parent=1 // pred_region
      %493 = dma.done [#allocation15], 16
    $region225: #{gnn_policy_forward.1} parent=1 // pred_fallthru
      _
    // Predicated region
    $region226: #{gnn_policy_forward.1} parent=1 // pred_check
      _
    $region227: #{gnn_policy_forward.1} parent=1 // pred_check_branch
      %495 = sbr.rel (0) target = $region229
    $region228: #{gnn_policy_forward.1} parent=1 // pred_region
      %496 = dma.done [#allocation18], 16
    $region229: #{gnn_policy_forward.1} parent=1 // pred_fallthru
      _
    // Predicated region
    $region230: #{gnn_policy_forward.1} parent=1 // pred_check
      _
    $region231: #{gnn_policy_forward.1} parent=1 // pred_check_branch
      %498 = sbr.rel (0) target = $region233
    $region232: #{gnn_policy_forward.1} parent=1 // pred_region
      %499 = dma.done [#allocation18], 16
    $region233: #{gnn_policy_forward.1} parent=1 // pred_fallthru
      _
    // Predicated region
    $region234: #{gnn_policy_forward.1} parent=1 // pred_check
      _
    $region235: #{gnn_policy_forward.1} parent=1 // pred_check_branch
      %501 = sbr.rel (0) target = $region237
    $region236: #{gnn_policy_forward.1} parent=1 // pred_region
      %502 = dma.done [#allocation21], 16
    $region237: #{gnn_policy_forward.1} parent=1 // pred_fallthru
      _
    // Predicated region
    $region238: #{gnn_policy_forward.1} parent=1 // pred_check
      _
    $region239: #{gnn_policy_forward.1} parent=1 // pred_check_branch
      %504 = sbr.rel (0) target = $region241
    $region240: #{gnn_policy_forward.1} parent=1 // pred_region
      %505 = dma.done [#allocation21], 512
    $region241: #{gnn_policy_forward.1} parent=1 // pred_fallthru
      _
    // Predicated region
    $region242: #{gnn_policy_forward.1} parent=1 // pred_check
      _
    $region243: #{gnn_policy_forward.1} parent=1 // pred_check_branch
      %507 = sbr.rel (0) target = $region245
    $region244: #{gnn_policy_forward.1} parent=1 // pred_region
      %508 = dma.done [#allocation24], 512
    $region245: #{gnn_policy_forward.1} parent=1 // pred_fallthru
      _
    // Predicated region
    $region246: #{gnn_policy_forward.1} parent=1 // pred_check
      _
    $region247: #{gnn_policy_forward.1} parent=1 // pred_check_branch
      %510 = sbr.rel (0) target = $region249
    $region248: #{gnn_policy_forward.1} parent=1 // pred_region
      %511 = dma.done [#allocation24], 16
    $region249: #{gnn_policy_forward.1} parent=1 // pred_fallthru
      _
    // Predicated region
    $region250: #{gnn_policy_forward.1} parent=1 // pred_check
      _
    $region251: #{gnn_policy_forward.1} parent=1 // pred_check_branch
      %513 = sbr.rel (0) target = $region253
    $region252: #{gnn_policy_forward.1} parent=1 // pred_region
      %514 = dma.done [#allocation27], 16
    $region253: #{gnn_policy_forward.1} parent=1 // pred_fallthru
      _
    // Predicated region
    $region254: #{gnn_policy_forward.1} parent=1 // pred_check
      _
    $region255: #{gnn_policy_forward.1} parent=1 // pred_check_branch
      %516 = sbr.rel (0) target = $region257
    $region256: #{gnn_policy_forward.1} parent=1 // pred_region
      %517 = dma.done [#allocation27], 512
    $region257: #{gnn_policy_forward.1} parent=1 // pred_fallthru
      _
    // Predicated region
    $region258: #{gnn_policy_forward.1} parent=1 // pred_check
      _
    $region259: #{gnn_policy_forward.1} parent=1 // pred_check_branch
      %519 = sbr.rel (0) target = $region261
    $region260: #{gnn_policy_forward.1} parent=1 // pred_region
      %520 = dma.done [#allocation30], 512
    $region261: #{gnn_policy_forward.1} parent=1 // pred_fallthru
      _
    // Predicated region
    $region262: #{gnn_policy_forward.1} parent=1 // pred_check
      _
    $region263: #{gnn_policy_forward.1} parent=1 // pred_check_branch
      %522 = sbr.rel (0) target = $region265
    $region264: #{gnn_policy_forward.1} parent=1 // pred_region
      %523 = dma.done [#allocation30], 16
    $region265: #{gnn_policy_forward.1} parent=1 // pred_fallthru
      _
    // Predicated region
    $region266: #{gnn_policy_forward.1} parent=1 // pred_check
      _
    $region267: #{gnn_policy_forward.1} parent=1 // pred_check_branch
      %525 = sbr.rel (0) target = $region269
    $region268: #{gnn_policy_forward.1} parent=1 // pred_region
      %526 = dma.done [#allocation33], 16
    $region269: #{gnn_policy_forward.1} parent=1 // pred_fallthru
      _
    // Predicated region
    $region270: #{gnn_policy_forward.1} parent=1 // pred_check
      _
    $region271: #{gnn_policy_forward.1} parent=1 // pred_check_branch
      %528 = sbr.rel (0) target = $region273
    $region272: #{gnn_policy_forward.1} parent=1 // pred_region
      %529 = dma.done [#allocation33], 512
    $region273: #{gnn_policy_forward.1} parent=1 // pred_fallthru
      _
    // Predicated region
    $region274: #{gnn_policy_forward.1} parent=1 // pred_check
      _
    $region275: #{gnn_policy_forward.1} parent=1 // pred_check_branch
      %531 = sbr.rel (0) target = $region277
    $region276: #{gnn_policy_forward.1} parent=1 // pred_region
      %532 = dma.done [#allocation36], 16
    $region277: #{gnn_policy_forward.1} parent=1 // pred_fallthru
      _
    // Predicated region
    $region278: #{gnn_policy_forward.1} parent=1 // pred_check
      _
    $region279: #{gnn_policy_forward.1} parent=1 // pred_check_branch
      %534 = sbr.rel (0) target = $region281
    $region280: #{gnn_policy_forward.1} parent=1 // pred_region
      %535 = dma.done [#allocation36], 16
    $region281: #{gnn_policy_forward.1} parent=1 // pred_fallthru
      _
    // Predicated region
    $region282: #{gnn_policy_forward.1} parent=1 // pred_check
      _
    $region283: #{gnn_policy_forward.1} parent=1 // pred_check_branch
      %537 = sbr.rel (0) target = $region285
    $region284: #{gnn_policy_forward.1} parent=1 // pred_region
      %538 = dma.done [#allocation39], 16
    $region285: #{gnn_policy_forward.1} parent=1 // pred_fallthru
      _
    // Predicated region
    $region286: #{gnn_policy_forward.1} parent=1 // pred_check
      _
    $region287: #{gnn_policy_forward.1} parent=1 // pred_check_branch
      %540 = sbr.rel (0) target = $region289
    $region288: #{gnn_policy_forward.1} parent=1 // pred_region
      %541 = dma.done [#allocation39], 512
    $region289: #{gnn_policy_forward.1} parent=1 // pred_fallthru
      _
    // Predicated region
    $region290: #{gnn_policy_forward.1} parent=1 // pred_check
      _
    $region291: #{gnn_policy_forward.1} parent=1 // pred_check_branch
      %543 = sbr.rel (0) target = $region293
    $region292: #{gnn_policy_forward.1} parent=1 // pred_region
      %544 = dma.done [#allocation42], 512
    $region293: #{gnn_policy_forward.1} parent=1 // pred_fallthru
      _
    // Predicated region
    $region294: #{gnn_policy_forward.1} parent=1 // pred_check
      _
    $region295: #{gnn_policy_forward.1} parent=1 // pred_check_branch
      %546 = sbr.rel (0) target = $region297
    $region296: #{gnn_policy_forward.1} parent=1 // pred_region
      %547 = dma.done [#allocation42], 16
    $region297: #{gnn_policy_forward.1} parent=1 // pred_fallthru
      _
    // Predicated region
    $region298: #{gnn_policy_forward.1} parent=1 // pred_check
      _
    $region299: #{gnn_policy_forward.1} parent=1 // pred_check_branch
      %549 = sbr.rel (0) target = $region301
    $region300: #{gnn_policy_forward.1} parent=1 // pred_region
      %550 = dma.done [#allocation45], 512
    $region301: #{gnn_policy_forward.1} parent=1 // pred_fallthru
      _
    // Predicated region
    $region302: #{gnn_policy_forward.1} parent=1 // pred_check
      _
    $region303: #{gnn_policy_forward.1} parent=1 // pred_check_branch
      %552 = sbr.rel (0) target = $region305
    $region304: #{gnn_policy_forward.1} parent=1 // pred_region
      %553 = dma.done [#allocation45], 16
    $region305: #{gnn_policy_forward.1} parent=1 // pred_fallthru
      _
    // Predicated region
    $region306: #{gnn_policy_forward.1} parent=1 // pred_check
      _
    $region307: #{gnn_policy_forward.1} parent=1 // pred_check_branch
      %555 = sbr.rel (0) target = $region309
    $region308: #{gnn_policy_forward.1} parent=1 // pred_region
      %556 = dma.done [#allocation48], 16
    $region309: #{gnn_policy_forward.1} parent=1 // pred_fallthru
      _
    %v557 = vld [vmem:[%s5] sm:$0xff]
    %v558 = vld [vmem:[%s5 + $0x8] sm:$0xf]
    %v559 = vld [vmem:[#allocation2] sm:$0x1]
    %v560 = vld [vmem:[#allocation5] sm:$0x1]
    %v561 = vld [vmem:[#allocation7] sm:$0x7f]
    %v562 = vld [vmem:[#allocation8] sm:$0x1]
    %v563 = vld [vmem:[%s17] sm:$0xff]
    %v564 = vld [vmem:[%s17 + $0x8] sm:$0xff]
    %v565 = vld [vmem:[%s17 + $0x10] sm:$0xff]
    %v566 = vld [vmem:[%s17 + $0x18] sm:$0xff]
    %v567 = vld [vmem:[#allocation10] sm:$0x1]
    %vm568 = vcmask 56320
    %v569 = vsel %vm568, %v557, 0.0
    %570 = vadd.xlane.f32.xlu0 %v569
    %v571 = vpop.xlane.xlu0 %570
    %vm572 = vcmask 52224
    %v573 = vsel %vm572, %v558, 0.0
    %574 = vadd.xlane.f32.xlu0 %v573
    %v575 = vpop.xlane.xlu0 %574
    %v576 = vrcp.pop 7.0
    %v577 = vmul.f32 %v571, %v576
    %v578 = vmul.f32 %v575, %v576
    %v579 = vsub.f32 %v557, %v577
    %v580 = vsub.f32 %v558, %v578
    %v581 = vmul.f32 %v579, %v579
    %v582 = vmul.f32 %v580, %v580
    %v583 = vsel %vm568, %v581, 0.0
    %584 = vadd.xlane.f32.xlu0 %v583
    %v585 = vpop.xlane.xlu0 %584
    %v586 = vsel %vm572, %v582, 0.0
    %587 = vadd.xlane.f32.xlu0 %v586
    %v588 = vpop.xlane.xlu0 %587
    %v589 = vmul.f32 %v585, %v576
    %v590 = vmul.f32 %v588, %v576
    %v591 = vadd.f32 %v589, 1e-05
    %v592 = vadd.f32 %v590, 1e-05
    %v593 = vrsqrt.pop %v591
    %v594 = vrsqrt.pop %v592
    %v595 = vmul.f32 %v579, %v593
    %v596 = vmul.f32 %v580, %v594
    %v598 = vlaneseq
    %v599 = vshrl.u32 %v598, 7
    %v600 = vsub.s32 0, %v599
    %v601 = vrot.slane %v559, %v600
    %v603 = vmul.f32 %v595, %v601
    %v604 = vmul.f32 %v596, %v601
    %v606 = vlaneseq
    %v607 = vshrl.u32 %v606, 7
    %v608 = vsub.s32 0, %v607
    %v609 = vrot.slane %v560, %v608
    %v611 = vadd.f32 %v603, %v609
    %v612 = vadd.f32 %v604, %v609
    %v614 = vlaneseq
    %v615 = vshrl.u32 %v614, 7
    %v616 = vsub.s32 0, %v615
    %v617 = vrot.slane %v562, %v616
    %v620 = vsel %vm568, %v611, 0
    %v623 = vsel %vm568, %v612, 0
    %vm625 = vcmask 1046528
    %v627 = vsel %vm625, %v561, 0
    %629 = vmatprep.subr.mxu0 0.0
    %630 = vmatpush1.msra.mxu0 0.0
    %631 = vmatprep.subr.mxu0 0.0
    %632 = vmatpush1.msra.mxu0 0.0
    %633 = vmatprep.subr.mxu0 0.0
    %634 = vmatpush1.msra.mxu0 0.0
    %635 = vmatprep.subr.mxu0 0.0
    %636 = vmatpush1.msra.mxu0 0.0
    %637 = vmatprep.subr.mxu0 0.0
    %638 = vmatpush1.msra.mxu0 0.0
    %639 = vmatprep.subr.mxu0 0.0
    %640 = vmatpush1.msra.mxu0 0.0
    %641 = vmatprep.subr.mxu0 0.0
    %642 = vmatpush1.msra.mxu0 0.0
    %643 = vmatprep.subr.mxu0 0.0
    %644 = vmatpush1.msra.mxu0 0.0
    %645 = vmatprep.subr.mxu0 0.0
    %646 = vmatpush1.msra.mxu0 0.0
    %647 = vmatprep.subr.mxu0 0.0
    %648 = vmatpush1.msra.mxu0 0.0
    %649 = vmatprep.subr.mxu0 0.0
    %650 = vmatpush1.msra.mxu0 0.0
    %651 = vmatprep.subr.mxu0 0.0
    %652 = vmatpush1.msra.mxu0 0.0
    %653 = vmatprep.subr.mxu0 0.0
    %654 = vmatpush1.msra.mxu0 0.0
    %655 = vmatprep.subr.mxu0 0.0
    %656 = vmatpush1.msra.mxu0 0.0
    %657 = vmatprep.subr.mxu0 0.0
    %658 = vmatpush1.msra.mxu0 0.0
    %659 = vmatprep.subr.mxu0 0.0
    %660 = vmatpush1.msra.mxu0 %v627
    %661 = vmatprep.subr.mxu0 0.0
    %662 = vmatpush2.msra.mxu0 0.0
    %663 = vmatprep.subr.mxu0 0.0
    %664 = vmatpush2.msra.mxu0 0.0
    %665 = vmatprep.subr.mxu0 0.0
    %666 = vmatpush2.msra.mxu0 0.0
    %667 = vmatprep.subr.mxu0 0.0
    %668 = vmatpush2.msra.mxu0 0.0
    %669 = vmatprep.subr.mxu0 0.0
    %670 = vmatpush2.msra.mxu0 0.0
    %671 = vmatprep.subr.mxu0 0.0
    %672 = vmatpush2.msra.mxu0 0.0
    %673 = vmatprep.subr.mxu0 0.0
    %674 = vmatpush2.msra.mxu0 0.0
    %675 = vmatprep.subr.mxu0 0.0
    %676 = vmatpush2.msra.mxu0 0.0
    %677 = vmatprep.subr.mxu0 0.0
    %678 = vmatpush2.msra.mxu0 0.0
    %679 = vmatprep.subr.mxu0 0.0
    %680 = vmatpush2.msra.mxu0 0.0
    %681 = vmatprep.subr.mxu0 0.0
    %682 = vmatpush2.msra.mxu0 0.0
    %683 = vmatprep.subr.mxu0 0.0
    %684 = vmatpush2.msra.mxu0 0.0
    %685 = vmatprep.subr.mxu0 0.0
    %686 = vmatpush2.msra.mxu0 0.0
    %687 = vmatprep.subr.mxu0 0.0
    %688 = vmatpush2.msra.mxu0 0.0
    %689 = vmatprep.subr.mxu0 0.0
    %690 = vmatpush2.msra.mxu0 0.0
    %691 = vmatprep.subr.mxu0 0.0
    %692 = vmatpush2.msra.mxu0 0.0
    %693 = vmatprep.mubr.f32.mxu0 0.0
    %694 = vmatmul.mubr.f32.gmra.mxu0 %v620
    %v695 = vpop.f32.mrf.mxu0
    %v696 = vadd.f32 %v617, %v695
    %v697 = vpop.f32.mrf.mxu0
    %698 = vmatprep.mubr.f32.mxu0 0.0
    %699 = vmatmul.mubr.f32.gmra.mxu0 %v623
    %v700 = vpop.f32.mrf.mxu0
    %v701 = vadd.f32 %v617, %v700
    %v702 = vpop.f32.mrf.mxu0
    %703 = vdwg.mxu0
    %v704 = vmax.f32 %v696, 0.0
    %v705 = vmax.f32 %v701, 0.0
    %v707 = vlaneseq
    %v708 = vshrl.u32 %v707, 7
    %v709 = vsub.s32 0, %v708
    %v710 = vrot.slane %v567, %v709
    %vm712 = vcmask 261120
    %v714 = vsel %vm712, %v704, 0
    %v717 = vsel %vm712, %v705, 0
    %719 = vmatprep.subr.mxu0 0.0
    %720 = vmatpush1.msra.mxu0 0.0
    %721 = vmatprep.subr.mxu0 0.0
    %722 = vmatpush1.msra.mxu0 0.0
    %723 = vmatprep.subr.mxu0 0.0
    %724 = vmatpush1.msra.mxu0 0.0
    %725 = vmatprep.subr.mxu0 0.0
    %726 = vmatpush1.msra.mxu0 0.0
    %727 = vmatprep.subr.mxu0 0.0
    %728 = vmatpush1.msra.mxu0 0.0
    %729 = vmatprep.subr.mxu0 0.0
    %730 = vmatpush1.msra.mxu0 0.0
    %731 = vmatprep.subr.mxu0 0.0
    %732 = vmatpush1.msra.mxu0 0.0
    %733 = vmatprep.subr.mxu0 0.0
    %734 = vmatpush1.msra.mxu0 0.0
    %735 = vmatprep.subr.mxu0 0.0
    %736 = vmatpush1.msra.mxu0 0.0
    %737 = vmatprep.subr.mxu0 0.0
    %738 = vmatpush1.msra.mxu0 0.0
    %739 = vmatprep.subr.mxu0 0.0
    %740 = vmatpush1.msra.mxu0 0.0
    %741 = vmatprep.subr.mxu0 0.0
    %742 = vmatpush1.msra.mxu0 0.0
    %743 = vmatprep.subr.mxu0 0.0
    %744 = vmatpush1.msra.mxu0 %v566
    %745 = vmatprep.subr.mxu0 0.0
    %746 = vmatpush1.msra.mxu0 %v565
    %747 = vmatprep.subr.mxu0 0.0
    %748 = vmatpush1.msra.mxu0 %v564
    %749 = vmatprep.subr.mxu0 0.0
    %750 = vmatpush1.msra.mxu0 %v563
    %751 = vmatprep.subr.mxu0 0.0
    %752 = vmatpush2.msra.mxu0 0.0
    %753 = vmatprep.subr.mxu0 0.0
    %754 = vmatpush2.msra.mxu0 0.0
    %755 = vmatprep.subr.mxu0 0.0
    %756 = vmatpush2.msra.mxu0 0.0
    %757 = vmatprep.subr.mxu0 0.0
    %758 = vmatpush2.msra.mxu0 0.0
    %759 = vmatprep.subr.mxu0 0.0
    %760 = vmatpush2.msra.mxu0 0.0
    %761 = vmatprep.subr.mxu0 0.0
    %762 = vmatpush2.msra.mxu0 0.0
    %763 = vmatprep.subr.mxu0 0.0
    %764 = vmatpush2.msra.mxu0 0.0
    %765 = vmatprep.subr.mxu0 0.0
    %766 = vmatpush2.msra.mxu0 0.0
    %767 = vmatprep.subr.mxu0 0.0
    %768 = vmatpush2.msra.mxu0 0.0
    %769 = vmatprep.subr.mxu0 0.0
    %770 = vmatpush2.msra.mxu0 0.0
    %771 = vmatprep.subr.mxu0 0.0
    %772 = vmatpush2.msra.mxu0 0.0
    %773 = vmatprep.subr.mxu0 0.0
    %774 = vmatpush2.msra.mxu0 0.0
    %775 = vmatprep.subr.mxu0 0.0
    %776 = vmatpush2.msra.mxu0 0.0
    %777 = vmatprep.subr.mxu0 0.0
    %778 = vmatpush2.msra.mxu0 0.0
    %779 = vmatprep.subr.mxu0 0.0
    %780 = vmatpush2.msra.mxu0 0.0
    %781 = vmatprep.subr.mxu0 0.0
    %782 = vmatpush2.msra.mxu0 0.0
    %783 = vmatprep.mubr.f32.mxu0 0.0
    %784 = vmatmul.mubr.f32.gmra.mxu0 %v714
    %v785 = vpop.f32.mrf.mxu0
    %v786 = vadd.f32 %v710, %v785
    %v787 = vpop.f32.mrf.mxu0
    %788 = vmatprep.mubr.f32.mxu0 0.0
    %789 = vmatmul.mubr.f32.gmra.mxu0 %v717
    %v790 = vpop.f32.mrf.mxu0
    %v791 = vadd.f32 %v710, %v790
    %v792 = vpop.f32.mrf.mxu0
    %793 = vdwg.mxu0
    %v794 = vmax.f32 %v786, 0.0
    %v795 = vmax.f32 %v791, 0.0
    %v796 = vld [vmem:[%s7] sm:$0xff]
    %v797 = vld [vmem:[%s7 + $0x8] sm:$0x3]
    %v798 = vld [vmem:[%s21] sm:$0x1]
    %v799 = vld [vmem:[%s23] sm:$0x1]
    %v800 = vld [vmem:[%s25] sm:$0x7f]
    %v801 = vld [vmem:[#allocation11] sm:$0x1]
    %v802 = vld [vmem:[%s29] sm:$0xff]
    %v803 = vld [vmem:[%s29 + $0x8] sm:$0xff]
    %v804 = vld [vmem:[%s29 + $0x10] sm:$0xff]
    %v805 = vld [vmem:[%s29 + $0x18] sm:$0xff]
    %v806 = vld [vmem:[#allocation13] sm:$0x1]
    %v807 = vsel %vm568, %v796, 0.0
    %808 = vadd.xlane.f32.xlu0 %v807
    %v809 = vpop.xlane.xlu0 %808
    %vm810 = vcmask 50176
    %v811 = vsel %vm810, %v797, 0.0
    %812 = vadd.xlane.f32.xlu0 %v811
    %v813 = vpop.xlane.xlu0 %812
    %v814 = vmul.f32 %v809, %v576
    %v815 = vmul.f32 %v813, %v576
    %v816 = vsub.f32 %v796, %v814
    %v817 = vsub.f32 %v797, %v815
    %v818 = vmul.f32 %v816, %v816
    %v819 = vmul.f32 %v817, %v817
    %v820 = vsel %vm568, %v818, 0.0
    %821 = vadd.xlane.f32.xlu0 %v820
    %v822 = vpop.xlane.xlu0 %821
    %v823 = vsel %vm810, %v819, 0.0
    %824 = vadd.xlane.f32.xlu0 %v823
    %v825 = vpop.xlane.xlu0 %824
    %v826 = vmul.f32 %v822, %v576
    %v827 = vmul.f32 %v825, %v576
    %v828 = vadd.f32 %v826, 1e-05
    %v829 = vadd.f32 %v827, 1e-05
    %v830 = vrsqrt.pop %v828
    %v831 = vrsqrt.pop %v829
    %v832 = vmul.f32 %v816, %v830
    %v833 = vmul.f32 %v817, %v831
    %v835 = vlaneseq
    %v836 = vshrl.u32 %v835, 7
    %v837 = vsub.s32 0, %v836
    %v838 = vrot.slane %v798, %v837
    %v840 = vmul.f32 %v832, %v838
    %v841 = vmul.f32 %v833, %v838
    %v843 = vlaneseq
    %v844 = vshrl.u32 %v843, 7
    %v845 = vsub.s32 0, %v844
    %v846 = vrot.slane %v799, %v845
    %v848 = vadd.f32 %v840, %v846
    %v849 = vadd.f32 %v841, %v846
    %v851 = vlaneseq
    %v852 = vshrl.u32 %v851, 7
    %v853 = vsub.s32 0, %v852
    %v854 = vrot.slane %v801, %v853
    %v857 = vsel %vm568, %v848, 0
    %v860 = vsel %vm568, %v849, 0
    %v863 = vsel %vm625, %v800, 0
    %865 = vmatprep.subr.mxu0 0.0
    %866 = vmatpush1.msra.mxu0 0.0
    %867 = vmatprep.subr.mxu0 0.0
    %868 = vmatpush1.msra.mxu0 0.0
    %869 = vmatprep.subr.mxu0 0.0
    %870 = vmatpush1.msra.mxu0 0.0
    %871 = vmatprep.subr.mxu0 0.0
    %872 = vmatpush1.msra.mxu0 0.0
    %873 = vmatprep.subr.mxu0 0.0
    %874 = vmatpush1.msra.mxu0 0.0
    %875 = vmatprep.subr.mxu0 0.0
    %876 = vmatpush1.msra.mxu0 0.0
    %877 = vmatprep.subr.mxu0 0.0
    %878 = vmatpush1.msra.mxu0 0.0
    %879 = vmatprep.subr.mxu0 0.0
    %880 = vmatpush1.msra.mxu0 0.0
    %881 = vmatprep.subr.mxu0 0.0
    %882 = vmatpush1.msra.mxu0 0.0
    %883 = vmatprep.subr.mxu0 0.0
    %884 = vmatpush1.msra.mxu0 0.0
    %885 = vmatprep.subr.mxu0 0.0
    %886 = vmatpush1.msra.mxu0 0.0
    %887 = vmatprep.subr.mxu0 0.0
    %888 = vmatpush1.msra.mxu0 0.0
    %889 = vmatprep.subr.mxu0 0.0
    %890 = vmatpush1.msra.mxu0 0.0
    %891 = vmatprep.subr.mxu0 0.0
    %892 = vmatpush1.msra.mxu0 0.0
    %893 = vmatprep.subr.mxu0 0.0
    %894 = vmatpush1.msra.mxu0 0.0
    %895 = vmatprep.subr.mxu0 0.0
    %896 = vmatpush1.msra.mxu0 %v863
    %897 = vmatprep.subr.mxu0 0.0
    %898 = vmatpush2.msra.mxu0 0.0
    %899 = vmatprep.subr.mxu0 0.0
    %900 = vmatpush2.msra.mxu0 0.0
    %901 = vmatprep.subr.mxu0 0.0
    %902 = vmatpush2.msra.mxu0 0.0
    %903 = vmatprep.subr.mxu0 0.0
    %904 = vmatpush2.msra.mxu0 0.0
    %905 = vmatprep.subr.mxu0 0.0
    %906 = vmatpush2.msra.mxu0 0.0
    %907 = vmatprep.subr.mxu0 0.0
    %908 = vmatpush2.msra.mxu0 0.0
    %909 = vmatprep.subr.mxu0 0.0
    %910 = vmatpush2.msra.mxu0 0.0
    %911 = vmatprep.subr.mxu0 0.0
    %912 = vmatpush2.msra.mxu0 0.0
    %913 = vmatprep.subr.mxu0 0.0
    %914 = vmatpush2.msra.mxu0 0.0
    %915 = vmatprep.subr.mxu0 0.0
    %916 = vmatpush2.msra.mxu0 0.0
    %917 = vmatprep.subr.mxu0 0.0
    %918 = vmatpush2.msra.mxu0 0.0
    %919 = vmatprep.subr.mxu0 0.0
    %920 = vmatpush2.msra.mxu0 0.0
    %921 = vmatprep.subr.mxu0 0.0
    %922 = vmatpush2.msra.mxu0 0.0
    %923 = vmatprep.subr.mxu0 0.0
    %924 = vmatpush2.msra.mxu0 0.0
    %925 = vmatprep.subr.mxu0 0.0
    %926 = vmatpush2.msra.mxu0 0.0
    %927 = vmatprep.subr.mxu0 0.0
    %928 = vmatpush2.msra.mxu0 0.0
    %929 = vmatprep.mubr.f32.mxu0 0.0
    %930 = vmatmul.mubr.f32.gmra.mxu0 %v857
    %v931 = vpop.f32.mrf.mxu0
    %v932 = vadd.f32 %v854, %v931
    %v933 = vpop.f32.mrf.mxu0
    %934 = vmatprep.mubr.f32.mxu0 0.0
    %935 = vmatmul.mubr.f32.gmra.mxu0 %v860
    %v936 = vpop.f32.mrf.mxu0
    %v937 = vadd.f32 %v854, %v936
    %v938 = vpop.f32.mrf.mxu0
    %939 = vdwg.mxu0
    %v940 = vmax.f32 %v932, 0.0
    %v941 = vmax.f32 %v937, 0.0
    %v943 = vlaneseq
    %v944 = vshrl.u32 %v943, 7
    %v945 = vsub.s32 0, %v944
    %v946 = vrot.slane %v806, %v945
    %v949 = vsel %vm712, %v940, 0
    %v952 = vsel %vm712, %v941, 0
    %954 = vmatprep.subr.mxu0 0.0
    %955 = vmatpush1.msra.mxu0 0.0
    %956 = vmatprep.subr.mxu0 0.0
    %957 = vmatpush1.msra.mxu0 0.0
    %958 = vmatprep.subr.mxu0 0.0
    %959 = vmatpush1.msra.mxu0 0.0
    %960 = vmatprep.subr.mxu0 0.0
    %961 = vmatpush1.msra.mxu0 0.0
    %962 = vmatprep.subr.mxu0 0.0
    %963 = vmatpush1.msra.mxu0 0.0
    %964 = vmatprep.subr.mxu0 0.0
    %965 = vmatpush1.msra.mxu0 0.0
    %966 = vmatprep.subr.mxu0 0.0
    %967 = vmatpush1.msra.mxu0 0.0
    %968 = vmatprep.subr.mxu0 0.0
    %969 = vmatpush1.msra.mxu0 0.0
    %970 = vmatprep.subr.mxu0 0.0
    %971 = vmatpush1.msra.mxu0 0.0
    %972 = vmatprep.subr.mxu0 0.0
    %973 = vmatpush1.msra.mxu0 0.0
    %974 = vmatprep.subr.mxu0 0.0
    %975 = vmatpush1.msra.mxu0 0.0
    %976 = vmatprep.subr.mxu0 0.0
    %977 = vmatpush1.msra.mxu0 0.0
    %978 = vmatprep.subr.mxu0 0.0
    %979 = vmatpush1.msra.mxu0 %v805
    %980 = vmatprep.subr.mxu0 0.0
    %981 = vmatpush1.msra.mxu0 %v804
    %982 = vmatprep.subr.mxu0 0.0
    %983 = vmatpush1.msra.mxu0 %v803
    %984 = vmatprep.subr.mxu0 0.0
    %985 = vmatpush1.msra.mxu0 %v802
    %986 = vmatprep.subr.mxu0 0.0
    %987 = vmatpush2.msra.mxu0 0.0
    %988 = vmatprep.subr.mxu0 0.0
    %989 = vmatpush2.msra.mxu0 0.0
    %990 = vmatprep.subr.mxu0 0.0
    %991 = vmatpush2.msra.mxu0 0.0
    %992 = vmatprep.subr.mxu0 0.0
    %993 = vmatpush2.msra.mxu0 0.0
    %994 = vmatprep.subr.mxu0 0.0
    %995 = vmatpush2.msra.mxu0 0.0
    %996 = vmatprep.subr.mxu0 0.0
    %997 = vmatpush2.msra.mxu0 0.0
    %998 = vmatprep.subr.mxu0 0.0
    %999 = vmatpush2.msra.mxu0 0.0
    %1000 = vmatprep.subr.mxu0 0.0
    %1001 = vmatpush2.msra.mxu0 0.0
    %1002 = vmatprep.subr.mxu0 0.0
    %1003 = vmatpush2.msra.mxu0 0.0
    %1004 = vmatprep.subr.mxu0 0.0
    %1005 = vmatpush2.msra.mxu0 0.0
    %1006 = vmatprep.subr.mxu0 0.0
    %1007 = vmatpush2.msra.mxu0 0.0
    %1008 = vmatprep.subr.mxu0 0.0
    %1009 = vmatpush2.msra.mxu0 0.0
    %1010 = vmatprep.subr.mxu0 0.0
    %1011 = vmatpush2.msra.mxu0 0.0
    %1012 = vmatprep.subr.mxu0 0.0
    %1013 = vmatpush2.msra.mxu0 0.0
    %1014 = vmatprep.subr.mxu0 0.0
    %1015 = vmatpush2.msra.mxu0 0.0
    %1016 = vmatprep.subr.mxu0 0.0
    %1017 = vmatpush2.msra.mxu0 0.0
    %1018 = vmatprep.mubr.f32.mxu0 0.0
    %1019 = vmatmul.mubr.f32.gmra.mxu0 %v949
    %v1020 = vpop.f32.mrf.mxu0
    %v1021 = vadd.f32 %v946, %v1020
    %v1022 = vpop.f32.mrf.mxu0
    %1023 = vmatprep.mubr.f32.mxu0 0.0
    %1024 = vmatmul.mubr.f32.gmra.mxu0 %v952
    %v1025 = vpop.f32.mrf.mxu0
    %v1026 = vadd.f32 %v946, %v1025
    %v1027 = vpop.f32.mrf.mxu0
    %1028 = vdwg.mxu0
    %v1029 = vmax.f32 %v1021, 0.0
    %v1030 = vmax.f32 %v1026, 0.0
    %v1031 = vld [vmem:[%s1] sm:$0xff]
    %v1032 = vld [vmem:[%s1 + $0x8] sm:$0xff]
    %v1033 = vld [vmem:[%s1 + $0x10] sm:$0xff]
    %v1034 = vlaneseq
    %v1035 = vand.u32 %v1034, 127
    %1036 = vset.pattern.permute.xlu0 0
    %1037 = vperm.xlu0 %1036, %v1031
    %v1038 = vpop.permute.xlu0 %1037
    %1039 = vset.pattern.permute.xlu0 0
    %1040 = vperm.xlu0 %1039, %v1032
    %v1041 = vpop.permute.xlu0 %1040
    %1042 = vset.pattern.permute.xlu0 0
    %1043 = vperm.xlu0 %1042, %v1033
    %v1044 = vpop.permute.xlu0 %1043
    %vm1045 = vcmp.eq.s32.totalorder %v1038, %v1035
    %vm1046 = vcmp.eq.s32.totalorder %v1041, %v1035
    %vm1047 = vcmp.eq.s32.totalorder %v1044, %v1035
    %v1048 = vsel %vm1045, 1.0, 0.0
    %v1049 = vsel %vm1046, 1.0, 0.0
    %v1050 = vsel %vm1047, 1.0, 0.0
    %v1051 = vld [vmem:[%s3] sm:$0xff]
    %v1052 = vld [vmem:[%s3 + $0x8] sm:$0xff]
    %v1053 = vld [vmem:[%s3 + $0x10] sm:$0xff]
    %1054 = vset.pattern.permute.xlu0 0
    %1055 = vperm.xlu0 %1054, %v1051
    %v1056 = vpop.permute.xlu0 %1055
    %1057 = vset.pattern.permute.xlu0 0
    %1058 = vperm.xlu0 %1057, %v1052
    %v1059 = vpop.permute.xlu0 %1058
    %1060 = vset.pattern.permute.xlu0 0
    %1061 = vperm.xlu0 %1060, %v1053
    %v1062 = vpop.permute.xlu0 %1061
    %vm1063 = vcmp.eq.s32.totalorder %v1056, %v1035
    %vm1064 = vcmp.eq.s32.totalorder %v1059, %v1035
    %vm1065 = vcmp.eq.s32.totalorder %v1062, %v1035
    %v1066 = vsel %vm1063, 1.0, 0.0
    %v1067 = vsel %vm1064, 1.0, 0.0
    %v1068 = vsel %vm1065, 1.0, 0.0
    %vm1069 = vcmask 97280
    %v1071 = vsel %vm1069, %v1048, 0
    %v1074 = vsel %vm1069, %v1049, 0
    %v1077 = vsel %vm1069, %v1050, 0
    %vm1079 = vcmask 1043456
    %v1081 = vsel %vm1079, %v795, 0
    %1083 = vmatprep.subr.mxu0 0.0
    %1084 = vmatpush1.msra.mxu0 0.0
    %1085 = vmatprep.subr.mxu0 0.0
    %1086 = vmatpush1.msra.mxu0 0.0
    %1087 = vmatprep.subr.mxu0 0.0
    %1088 = vmatpush1.msra.mxu0 0.0
    %1089 = vmatprep.subr.mxu0 0.0
    %1090 = vmatpush1.msra.mxu0 0.0
    %1091 = vmatprep.subr.mxu0 0.0
    %1092 = vmatpush1.msra.mxu0 0.0
    %1093 = vmatprep.subr.mxu0 0.0
    %1094 = vmatpush1.msra.mxu0 0.0
    %1095 = vmatprep.subr.mxu0 0.0
    %1096 = vmatpush1.msra.mxu0 0.0
    %1097 = vmatprep.subr.mxu0 0.0
    %1098 = vmatpush1.msra.mxu0 0.0
    %1099 = vmatprep.subr.mxu0 0.0
    %1100 = vmatpush1.msra.mxu0 0.0
    %1101 = vmatprep.subr.mxu0 0.0
    %1102 = vmatpush1.msra.mxu0 0.0
    %1103 = vmatprep.subr.mxu0 0.0
    %1104 = vmatpush1.msra.mxu0 0.0
    %1105 = vmatprep.subr.mxu0 0.0
    %1106 = vmatpush1.msra.mxu0 0.0
    %1107 = vmatprep.subr.mxu0 0.0
    %1108 = vmatpush1.msra.mxu0 0.0
    %1109 = vmatprep.subr.mxu0 0.0
    %1110 = vmatpush1.msra.mxu0 0.0
    %1111 = vmatprep.subr.mxu0 0.0
    %1112 = vmatpush1.msra.mxu0 %v1081
    %1113 = vmatprep.subr.mxu0 0.0
    %1114 = vmatpush1.msra.mxu0 %v794
    %1115 = vmatprep.subr.mxu0 0.0
    %1116 = vmatpush2.msra.mxu0 0.0
    %1117 = vmatprep.subr.mxu0 0.0
    %1118 = vmatpush2.msra.mxu0 0.0
    %1119 = vmatprep.subr.mxu0 0.0
    %1120 = vmatpush2.msra.mxu0 0.0
    %1121 = vmatprep.subr.mxu0 0.0
    %1122 = vmatpush2.msra.mxu0 0.0
    %1123 = vmatprep.subr.mxu0 0.0
    %1124 = vmatpush2.msra.mxu0 0.0
    %1125 = vmatprep.subr.mxu0 0.0
    %1126 = vmatpush2.msra.mxu0 0.0
    %1127 = vmatprep.subr.mxu0 0.0
    %1128 = vmatpush2.msra.mxu0 0.0
    %1129 = vmatprep.subr.mxu0 0.0
    %1130 = vmatpush2.msra.mxu0 0.0
    %1131 = vmatprep.subr.mxu0 0.0
    %1132 = vmatpush2.msra.mxu0 0.0
    %1133 = vmatprep.subr.mxu0 0.0
    %1134 = vmatpush2.msra.mxu0 0.0
    %1135 = vmatprep.subr.mxu0 0.0
    %1136 = vmatpush2.msra.mxu0 0.0
    %1137 = vmatprep.subr.mxu0 0.0
    %1138 = vmatpush2.msra.mxu0 0.0
    %1139 = vmatprep.subr.mxu0 0.0
    %1140 = vmatpush2.msra.mxu0 0.0
    %1141 = vmatprep.subr.mxu0 0.0
    %1142 = vmatpush2.msra.mxu0 0.0
    %1143 = vmatprep.subr.mxu0 0.0
    %1144 = vmatpush2.msra.mxu0 0.0
    %1145 = vmatprep.subr.mxu0 0.0
    %1146 = vmatpush2.msra.mxu0 0.0
    %1147 = vmatprep.mubr.f32.mxu0 0.0
    %1148 = vmatmul.mubr.f32.gmra.mxu0 %v1071
    %v1149 = vpop.f32.mrf.mxu0
    %v1150 = vadd.f32 0.0, %v1149
    %v1151 = vpop.f32.mrf.mxu0
    %1152 = vmatprep.mubr.f32.mxu0 0.0
    %1153 = vmatmul.mubr.f32.gmra.mxu0 %v1074
    %v1154 = vpop.f32.mrf.mxu0
    %v1155 = vadd.f32 0.0, %v1154
    %v1156 = vpop.f32.mrf.mxu0
    %1157 = vmatprep.mubr.f32.mxu0 0.0
    %1158 = vmatmul.mubr.f32.gmra.mxu0 %v1077
    %v1159 = vpop.f32.mrf.mxu0
    %v1160 = vadd.f32 0.0, %v1159
    %v1161 = vpop.f32.mrf.mxu0
    %1162 = vdwg.mxu0
    %vm1163 = vcmask 80896
    %v1165 = vsel %vm1163, %v1066, 0
    %v1168 = vsel %vm1163, %v1067, 0
    %v1171 = vsel %vm1163, %v1068, 0
    %vm1173 = vcmask 1041408
    %v1175 = vsel %vm1173, %v1030, 0
    %1177 = vmatprep.subr.mxu0 0.0
    %1178 = vmatpush1.msra.mxu0 0.0
    %1179 = vmatprep.subr.mxu0 0.0
    %1180 = vmatpush1.msra.mxu0 0.0
    %1181 = vmatprep.subr.mxu0 0.0
    %1182 = vmatpush1.msra.mxu0 0.0
    %1183 = vmatprep.subr.mxu0 0.0
    %1184 = vmatpush1.msra.mxu0 0.0
    %1185 = vmatprep.subr.mxu0 0.0
    %1186 = vmatpush1.msra.mxu0 0.0
    %1187 = vmatprep.subr.mxu0 0.0
    %1188 = vmatpush1.msra.mxu0 0.0
    %1189 = vmatprep.subr.mxu0 0.0
    %1190 = vmatpush1.msra.mxu0 0.0
    %1191 = vmatprep.subr.mxu0 0.0
    %1192 = vmatpush1.msra.mxu0 0.0
    %1193 = vmatprep.subr.mxu0 0.0
    %1194 = vmatpush1.msra.mxu0 0.0
    %1195 = vmatprep.subr.mxu0 0.0
    %1196 = vmatpush1.msra.mxu0 0.0
    %1197 = vmatprep.subr.mxu0 0.0
    %1198 = vmatpush1.msra.mxu0 0.0
    %1199 = vmatprep.subr.mxu0 0.0
    %1200 = vmatpush1.msra.mxu0 0.0
    %1201 = vmatprep.subr.mxu0 0.0
    %1202 = vmatpush1.msra.mxu0 0.0
    %1203 = vmatprep.subr.mxu0 0.0
    %1204 = vmatpush1.msra.mxu0 0.0
    %1205 = vmatprep.subr.mxu0 0.0
    %1206 = vmatpush1.msra.mxu0 %v1175
    %1207 = vmatprep.subr.mxu0 0.0
    %1208 = vmatpush1.msra.mxu0 %v1029
    %1209 = vmatprep.subr.mxu0 0.0
    %1210 = vmatpush2.msra.mxu0 0.0
    %1211 = vmatprep.subr.mxu0 0.0
    %1212 = vmatpush2.msra.mxu0 0.0
    %1213 = vmatprep.subr.mxu0 0.0
    %1214 = vmatpush2.msra.mxu0 0.0
    %1215 = vmatprep.subr.mxu0 0.0
    %1216 = vmatpush2.msra.mxu0 0.0
    %1217 = vmatprep.subr.mxu0 0.0
    %1218 = vmatpush2.msra.mxu0 0.0
    %1219 = vmatprep.subr.mxu0 0.0
    %1220 = vmatpush2.msra.mxu0 0.0
    %1221 = vmatprep.subr.mxu0 0.0
    %1222 = vmatpush2.msra.mxu0 0.0
    %1223 = vmatprep.subr.mxu0 0.0
    %1224 = vmatpush2.msra.mxu0 0.0
    %1225 = vmatprep.subr.mxu0 0.0
    %1226 = vmatpush2.msra.mxu0 0.0
    %1227 = vmatprep.subr.mxu0 0.0
    %1228 = vmatpush2.msra.mxu0 0.0
    %1229 = vmatprep.subr.mxu0 0.0
    %1230 = vmatpush2.msra.mxu0 0.0
    %1231 = vmatprep.subr.mxu0 0.0
    %1232 = vmatpush2.msra.mxu0 0.0
    %1233 = vmatprep.subr.mxu0 0.0
    %1234 = vmatpush2.msra.mxu0 0.0
    %1235 = vmatprep.subr.mxu0 0.0
    %1236 = vmatpush2.msra.mxu0 0.0
    %1237 = vmatprep.subr.mxu0 0.0
    %1238 = vmatpush2.msra.mxu0 0.0
    %1239 = vmatprep.subr.mxu0 0.0
    %1240 = vmatpush2.msra.mxu0 0.0
    %1241 = vmatprep.mubr.f32.mxu0 0.0
    %1242 = vmatmul.mubr.f32.gmra.mxu0 %v1165
    %v1243 = vpop.f32.mrf.mxu0
    %v1244 = vadd.f32 0.0, %v1243
    %v1245 = vpop.f32.mrf.mxu0
    %1246 = vmatprep.mubr.f32.mxu0 0.0
    %1247 = vmatmul.mubr.f32.gmra.mxu0 %v1168
    %v1248 = vpop.f32.mrf.mxu0
    %v1249 = vadd.f32 0.0, %v1248
    %v1250 = vpop.f32.mrf.mxu0
    %1251 = vmatprep.mubr.f32.mxu0 0.0
    %1252 = vmatmul.mubr.f32.gmra.mxu0 %v1171
    %v1253 = vpop.f32.mrf.mxu0
    %v1254 = vadd.f32 0.0, %v1253
    %v1255 = vpop.f32.mrf.mxu0
    %1256 = vdwg.mxu0
    %v1257 = vld [vmem:[%s33] sm:$0xff]
    %v1258 = vld [vmem:[%s33 + $0x8] sm:$0xff]
    %v1259 = vld [vmem:[%s33 + $0x10] sm:$0xff]
    %v1260 = vld [vmem:[%s33 + $0x18] sm:$0xff]
    %v1261 = vld [vmem:[%s35] sm:$0x1]
    %v1262 = vld [vmem:[%s37] sm:$0xff]
    %v1263 = vld [vmem:[%s37 + $0x8] sm:$0xff]
    %v1264 = vld [vmem:[%s37 + $0x10] sm:$0xff]
    %v1265 = vld [vmem:[%s37 + $0x18] sm:$0xff]
    %v1266 = vld [vmem:[#allocation14] sm:$0x1]
    %v1267 = vld [vmem:[#allocation16] sm:$0x1]
    %v1268 = vld [vmem:[%s43] sm:$0xff]
    %v1269 = vld [vmem:[%s43 + $0x8] sm:$0xff]
    %v1270 = vld [vmem:[%s43 + $0x10] sm:$0xff]
    %v1271 = vld [vmem:[%s43 + $0x18] sm:$0xff]
    %v1272 = vld [vmem:[#allocation17] sm:$0x1]
    %v1273 = vld [vmem:[#allocation19] sm:$0x1]
    %v1274 = vld [vmem:[#allocation20] sm:$0x1]
    %v1275 = vld [vmem:[#allocation22] sm:$0xff]
    %v1276 = vld [vmem:[#allocation22 + $0x8] sm:$0xff]
    %v1277 = vld [vmem:[#allocation22 + $0x10] sm:$0xff]
    %v1278 = vld [vmem:[#allocation22 + $0x18] sm:$0xff]
    %v1279 = vld [vmem:[#allocation23] sm:$0xff]
    %v1280 = vld [vmem:[#allocation23 + $0x8] sm:$0xff]
    %v1281 = vld [vmem:[#allocation23 + $0x10] sm:$0xff]
    %v1282 = vld [vmem:[#allocation23 + $0x18] sm:$0xff]
    %v1283 = vld [vmem:[#allocation25] sm:$0x1]
    %v1284 = vld [vmem:[%s57] sm:$0xff]
    %v1285 = vld [vmem:[%s57 + $0x8] sm:$0xff]
    %v1286 = vld [vmem:[%s57 + $0x10] sm:$0xff]
    %v1287 = vld [vmem:[%s57 + $0x18] sm:$0xff]
    %v1288 = vld [vmem:[#allocation26] sm:$0x1]
    %v1290 = vlaneseq
    %v1291 = vshrl.u32 %v1290, 7
    %v1292 = vsub.s32 0, %v1291
    %v1293 = vrot.slane %v1261, %v1292
    %v1296 = vsel %vm712, %v1244, 0
    %v1299 = vsel %vm712, %v1249, 0
    %v1302 = vsel %vm712, %v1254, 0
    %1304 = vmatprep.subr.mxu0 0.0
    %1305 = vmatpush1.msra.mxu0 0.0
    %1306 = vmatprep.subr.mxu0 0.0
    %1307 = vmatpush1.msra.mxu0 0.0
    %1308 = vmatprep.subr.mxu0 0.0
    %1309 = vmatpush1.msra.mxu0 0.0
    %1310 = vmatprep.subr.mxu0 0.0
    %1311 = vmatpush1.msra.mxu0 0.0
    %1312 = vmatprep.subr.mxu0 0.0
    %1313 = vmatpush1.msra.mxu0 0.0
    %1314 = vmatprep.subr.mxu0 0.0
    %1315 = vmatpush1.msra.mxu0 0.0
    %1316 = vmatprep.subr.mxu0 0.0
    %1317 = vmatpush1.msra.mxu0 0.0
    %1318 = vmatprep.subr.mxu0 0.0
    %1319 = vmatpush1.msra.mxu0 0.0
    %1320 = vmatprep.subr.mxu0 0.0
    %1321 = vmatpush1.msra.mxu0 0.0
    %1322 = vmatprep.subr.mxu0 0.0
    %1323 = vmatpush1.msra.mxu0 0.0
    %1324 = vmatprep.subr.mxu0 0.0
    %1325 = vmatpush1.msra.mxu0 0.0
    %1326 = vmatprep.subr.mxu0 0.0
    %1327 = vmatpush1.msra.mxu0 0.0
    %1328 = vmatprep.subr.mxu0 0.0
    %1329 = vmatpush1.msra.mxu0 %v1260
    %1330 = vmatprep.subr.mxu0 0.0
    %1331 = vmatpush1.msra.mxu0 %v1259
    %1332 = vmatprep.subr.mxu0 0.0
    %1333 = vmatpush1.msra.mxu0 %v1258
    %1334 = vmatprep.subr.mxu0 0.0
    %1335 = vmatpush1.msra.mxu0 %v1257
    %1336 = vmatprep.subr.mxu0 0.0
    %1337 = vmatpush2.msra.mxu0 0.0
    %1338 = vmatprep.subr.mxu0 0.0
    %1339 = vmatpush2.msra.mxu0 0.0
    %1340 = vmatprep.subr.mxu0 0.0
    %1341 = vmatpush2.msra.mxu0 0.0
    %1342 = vmatprep.subr.mxu0 0.0
    %1343 = vmatpush2.msra.mxu0 0.0
    %1344 = vmatprep.subr.mxu0 0.0
    %1345 = vmatpush2.msra.mxu0 0.0
    %1346 = vmatprep.subr.mxu0 0.0
    %1347 = vmatpush2.msra.mxu0 0.0
    %1348 = vmatprep.subr.mxu0 0.0
    %1349 = vmatpush2.msra.mxu0 0.0
    %1350 = vmatprep.subr.mxu0 0.0
    %1351 = vmatpush2.msra.mxu0 0.0
    %1352 = vmatprep.subr.mxu0 0.0
    %1353 = vmatpush2.msra.mxu0 0.0
    %1354 = vmatprep.subr.mxu0 0.0
    %1355 = vmatpush2.msra.mxu0 0.0
    %1356 = vmatprep.subr.mxu0 0.0
    %1357 = vmatpush2.msra.mxu0 0.0
    %1358 = vmatprep.subr.mxu0 0.0
    %1359 = vmatpush2.msra.mxu0 0.0
    %1360 = vmatprep.subr.mxu0 0.0
    %1361 = vmatpush2.msra.mxu0 0.0
    %1362 = vmatprep.subr.mxu0 0.0
    %1363 = vmatpush2.msra.mxu0 0.0
    %1364 = vmatprep.subr.mxu0 0.0
    %1365 = vmatpush2.msra.mxu0 0.0
    %1366 = vmatprep.subr.mxu0 0.0
    %1367 = vmatpush2.msra.mxu0 0.0
    %1368 = vmatprep.mubr.f32.mxu0 0.0
    %1369 = vmatmul.mubr.f32.gmra.mxu0 %v1296
    %v1370 = vpop.f32.mrf.mxu0
    %v1371 = vadd.f32 %v1293, %v1370
    %v1372 = vpop.f32.mrf.mxu0
    %1373 = vmatprep.mubr.f32.mxu0 0.0
    %1374 = vmatmul.mubr.f32.gmra.mxu0 %v1299
    %v1375 = vpop.f32.mrf.mxu0
    %v1376 = vadd.f32 %v1293, %v1375
    %v1377 = vpop.f32.mrf.mxu0
    %1378 = vmatprep.mubr.f32.mxu0 0.0
    %1379 = vmatmul.mubr.f32.gmra.mxu0 %v1302
    %v1380 = vpop.f32.mrf.mxu0
    %v1381 = vadd.f32 %v1293, %v1380
    %v1382 = vpop.f32.mrf.mxu0
    %1383 = vdwg.mxu0
    %v1385 = vsel %vm712, %v1150, 0
    %v1388 = vsel %vm712, %v1155, 0
    %v1391 = vsel %vm712, %v1160, 0
    %1393 = vmatprep.subr.mxu0 0.0
    %1394 = vmatpush1.msra.mxu0 0.0
    %1395 = vmatprep.subr.mxu0 0.0
    %1396 = vmatpush1.msra.mxu0 0.0
    %1397 = vmatprep.subr.mxu0 0.0
    %1398 = vmatpush1.msra.mxu0 0.0
    %1399 = vmatprep.subr.mxu0 0.0
    %1400 = vmatpush1.msra.mxu0 0.0
    %1401 = vmatprep.subr.mxu0 0.0
    %1402 = vmatpush1.msra.mxu0 0.0
    %1403 = vmatprep.subr.mxu0 0.0
    %1404 = vmatpush1.msra.mxu0 0.0
    %1405 = vmatprep.subr.mxu0 0.0
    %1406 = vmatpush1.msra.mxu0 0.0
    %1407 = vmatprep.subr.mxu0 0.0
    %1408 = vmatpush1.msra.mxu0 0.0
    %1409 = vmatprep.subr.mxu0 0.0
    %1410 = vmatpush1.msra.mxu0 0.0
    %1411 = vmatprep.subr.mxu0 0.0
    %1412 = vmatpush1.msra.mxu0 0.0
    %1413 = vmatprep.subr.mxu0 0.0
    %1414 = vmatpush1.msra.mxu0 0.0
    %1415 = vmatprep.subr.mxu0 0.0
    %1416 = vmatpush1.msra.mxu0 0.0
    %1417 = vmatprep.subr.mxu0 0.0
    %1418 = vmatpush1.msra.mxu0 %v1265
    %1419 = vmatprep.subr.mxu0 0.0
    %1420 = vmatpush1.msra.mxu0 %v1264
    %1421 = vmatprep.subr.mxu0 0.0
    %1422 = vmatpush1.msra.mxu0 %v1263
    %1423 = vmatprep.subr.mxu0 0.0
    %1424 = vmatpush1.msra.mxu0 %v1262
    %1425 = vmatprep.subr.mxu0 0.0
    %1426 = vmatpush2.msra.mxu0 0.0
    %1427 = vmatprep.subr.mxu0 0.0
    %1428 = vmatpush2.msra.mxu0 0.0
    %1429 = vmatprep.subr.mxu0 0.0
    %1430 = vmatpush2.msra.mxu0 0.0
    %1431 = vmatprep.subr.mxu0 0.0
    %1432 = vmatpush2.msra.mxu0 0.0
    %1433 = vmatprep.subr.mxu0 0.0
    %1434 = vmatpush2.msra.mxu0 0.0
    %1435 = vmatprep.subr.mxu0 0.0
    %1436 = vmatpush2.msra.mxu0 0.0
    %1437 = vmatprep.subr.mxu0 0.0
    %1438 = vmatpush2.msra.mxu0 0.0
    %1439 = vmatprep.subr.mxu0 0.0
    %1440 = vmatpush2.msra.mxu0 0.0
    %1441 = vmatprep.subr.mxu0 0.0
    %1442 = vmatpush2.msra.mxu0 0.0
    %1443 = vmatprep.subr.mxu0 0.0
    %1444 = vmatpush2.msra.mxu0 0.0
    %1445 = vmatprep.subr.mxu0 0.0
    %1446 = vmatpush2.msra.mxu0 0.0
    %1447 = vmatprep.subr.mxu0 0.0
    %1448 = vmatpush2.msra.mxu0 0.0
    %1449 = vmatprep.subr.mxu0 0.0
    %1450 = vmatpush2.msra.mxu0 0.0
    %1451 = vmatprep.subr.mxu0 0.0
    %1452 = vmatpush2.msra.mxu0 0.0
    %1453 = vmatprep.subr.mxu0 0.0
    %1454 = vmatpush2.msra.mxu0 0.0
    %1455 = vmatprep.subr.mxu0 0.0
    %1456 = vmatpush2.msra.mxu0 0.0
    %1457 = vmatprep.mubr.f32.mxu0 0.0
    %1458 = vmatmul.mubr.f32.gmra.mxu0 %v1385
    %v1459 = vpop.f32.mrf.mxu0
    %v1460 = vadd.f32 0.0, %v1459
    %v1461 = vpop.f32.mrf.mxu0
    %1462 = vmatprep.mubr.f32.mxu0 0.0
    %1463 = vmatmul.mubr.f32.gmra.mxu0 %v1388
    %v1464 = vpop.f32.mrf.mxu0
    %v1465 = vadd.f32 0.0, %v1464
    %v1466 = vpop.f32.mrf.mxu0
    %1467 = vmatprep.mubr.f32.mxu0 0.0
    %1468 = vmatmul.mubr.f32.gmra.mxu0 %v1391
    %v1469 = vpop.f32.mrf.mxu0
    %v1470 = vadd.f32 0.0, %v1469
    %v1471 = vpop.f32.mrf.mxu0
    %1472 = vdwg.mxu0
    %v1473 = vadd.f32 %v1371, %v1460
    %v1474 = vadd.f32 %v1376, %v1465
    %v1475 = vadd.f32 %v1381, %v1470
    %v1476 = vsel %vm712, %v1473, 0.0
    %1477 = vadd.xlane.f32.xlu0 %v1476
    %v1478 = vpop.xlane.xlu0 %1477
    %v1479 = vsel %vm712, %v1474, 0.0
    %1480 = vadd.xlane.f32.xlu0 %v1479
    %v1481 = vpop.xlane.xlu0 %1480
    %v1482 = vsel %vm712, %v1475, 0.0
    %1483 = vadd.xlane.f32.xlu0 %v1482
    %v1484 = vpop.xlane.xlu0 %1483
    %v1485 = vrcp.pop 32.0
    %v1486 = vmul.f32 %v1478, %v1485
    %v1487 = vmul.f32 %v1481, %v1485
    %v1488 = vmul.f32 %v1484, %v1485
    %v1489 = vsub.f32 %v1473, %v1486
    %v1490 = vsub.f32 %v1474, %v1487
    %v1491 = vsub.f32 %v1475, %v1488
    %v1492 = vmul.f32 %v1489, %v1489
    %v1493 = vmul.f32 %v1490, %v1490
    %v1494 = vmul.f32 %v1491, %v1491
    %v1495 = vsel %vm712, %v1492, 0.0
    %1496 = vadd.xlane.f32.xlu0 %v1495
    %v1497 = vpop.xlane.xlu0 %1496
    %v1498 = vsel %vm712, %v1493, 0.0
    %1499 = vadd.xlane.f32.xlu0 %v1498
    %v1500 = vpop.xlane.xlu0 %1499
    %v1501 = vsel %vm712, %v1494, 0.0
    %1502 = vadd.xlane.f32.xlu0 %v1501
    %v1503 = vpop.xlane.xlu0 %1502
    %v1504 = vmul.f32 %v1497, %v1485
    %v1505 = vmul.f32 %v1500, %v1485
    %v1506 = vmul.f32 %v1503, %v1485
    %v1507 = vadd.f32 %v1504, 1e-05
    %v1508 = vadd.f32 %v1505, 1e-05
    %v1509 = vadd.f32 %v1506, 1e-05
    %v1510 = vrsqrt.pop %v1507
    %v1511 = vrsqrt.pop %v1508
    %v1512 = vrsqrt.pop %v1509
    %v1513 = vmul.f32 %v1489, %v1510
    %v1514 = vmul.f32 %v1490, %v1511
    %v1515 = vmul.f32 %v1491, %v1512
    %v1517 = vlaneseq
    %v1518 = vshrl.u32 %v1517, 7
    %v1519 = vsub.s32 0, %v1518
    %v1520 = vrot.slane %v1266, %v1519
    %v1522 = vmul.f32 %v1513, %v1520
    %v1523 = vmul.f32 %v1514, %v1520
    %v1524 = vmul.f32 %v1515, %v1520
    %v1526 = vlaneseq
    %v1527 = vshrl.u32 %v1526, 7
    %v1528 = vsub.s32 0, %v1527
    %v1529 = vrot.slane %v1267, %v1528
    %v1531 = vadd.f32 %v1522, %v1529
    %v1532 = vadd.f32 %v1523, %v1529
    %v1533 = vadd.f32 %v1524, %v1529
    %v1534 = vmax.f32 %v1531, 0.0
    %v1535 = vmax.f32 %v1532, 0.0
    %v1536 = vmax.f32 %v1533, 0.0
    %v1538 = vlaneseq
    %v1539 = vshrl.u32 %v1538, 7
    %v1540 = vsub.s32 0, %v1539
    %v1541 = vrot.slane %v1272, %v1540
    %v1544 = vsel %vm712, %v1534, 0
    %v1547 = vsel %vm712, %v1535, 0
    %v1550 = vsel %vm712, %v1536, 0
    %1552 = vmatprep.subr.mxu0 0.0
    %1553 = vmatpush1.msra.mxu0 0.0
    %1554 = vmatprep.subr.mxu0 0.0
    %1555 = vmatpush1.msra.mxu0 0.0
    %1556 = vmatprep.subr.mxu0 0.0
    %1557 = vmatpush1.msra.mxu0 0.0
    %1558 = vmatprep.subr.mxu0 0.0
    %1559 = vmatpush1.msra.mxu0 0.0
    %1560 = vmatprep.subr.mxu0 0.0
    %1561 = vmatpush1.msra.mxu0 0.0
    %1562 = vmatprep.subr.mxu0 0.0
    %1563 = vmatpush1.msra.mxu0 0.0
    %1564 = vmatprep.subr.mxu0 0.0
    %1565 = vmatpush1.msra.mxu0 0.0
    %1566 = vmatprep.subr.mxu0 0.0
    %1567 = vmatpush1.msra.mxu0 0.0
    %1568 = vmatprep.subr.mxu0 0.0
    %1569 = vmatpush1.msra.mxu0 0.0
    %1570 = vmatprep.subr.mxu0 0.0
    %1571 = vmatpush1.msra.mxu0 0.0
    %1572 = vmatprep.subr.mxu0 0.0
    %1573 = vmatpush1.msra.mxu0 0.0
    %1574 = vmatprep.subr.mxu0 0.0
    %1575 = vmatpush1.msra.mxu0 0.0
    %1576 = vmatprep.subr.mxu0 0.0
    %1577 = vmatpush1.msra.mxu0 %v1271
    %1578 = vmatprep.subr.mxu0 0.0
    %1579 = vmatpush1.msra.mxu0 %v1270
    %1580 = vmatprep.subr.mxu0 0.0
    %1581 = vmatpush1.msra.mxu0 %v1269
    %1582 = vmatprep.subr.mxu0 0.0
    %1583 = vmatpush1.msra.mxu0 %v1268
    %1584 = vmatprep.subr.mxu0 0.0
    %1585 = vmatpush2.msra.mxu0 0.0
    %1586 = vmatprep.subr.mxu0 0.0
    %1587 = vmatpush2.msra.mxu0 0.0
    %1588 = vmatprep.subr.mxu0 0.0
    %1589 = vmatpush2.msra.mxu0 0.0
    %1590 = vmatprep.subr.mxu0 0.0
    %1591 = vmatpush2.msra.mxu0 0.0
    %1592 = vmatprep.subr.mxu0 0.0
    %1593 = vmatpush2.msra.mxu0 0.0
    %1594 = vmatprep.subr.mxu0 0.0
    %1595 = vmatpush2.msra.mxu0 0.0
    %1596 = vmatprep.subr.mxu0 0.0
    %1597 = vmatpush2.msra.mxu0 0.0
    %1598 = vmatprep.subr.mxu0 0.0
    %1599 = vmatpush2.msra.mxu0 0.0
    %1600 = vmatprep.subr.mxu0 0.0
    %1601 = vmatpush2.msra.mxu0 0.0
    %1602 = vmatprep.subr.mxu0 0.0
    %1603 = vmatpush2.msra.mxu0 0.0
    %1604 = vmatprep.subr.mxu0 0.0
    %1605 = vmatpush2.msra.mxu0 0.0
    %1606 = vmatprep.subr.mxu0 0.0
    %1607 = vmatpush2.msra.mxu0 0.0
    %1608 = vmatprep.subr.mxu0 0.0
    %1609 = vmatpush2.msra.mxu0 0.0
    %1610 = vmatprep.subr.mxu0 0.0
    %1611 = vmatpush2.msra.mxu0 0.0
    %1612 = vmatprep.subr.mxu0 0.0
    %1613 = vmatpush2.msra.mxu0 0.0
    %1614 = vmatprep.subr.mxu0 0.0
    %1615 = vmatpush2.msra.mxu0 0.0
    %1616 = vmatprep.mubr.f32.mxu0 0.0
    %1617 = vmatmul.mubr.f32.gmra.mxu0 %v1544
    %v1618 = vpop.f32.mrf.mxu0
    %v1619 = vadd.f32 %v1541, %v1618
    %v1620 = vpop.f32.mrf.mxu0
    %1621 = vmatprep.mubr.f32.mxu0 0.0
    %1622 = vmatmul.mubr.f32.gmra.mxu0 %v1547
    %v1623 = vpop.f32.mrf.mxu0
    %v1624 = vadd.f32 %v1541, %v1623
    %v1625 = vpop.f32.mrf.mxu0
    %1626 = vmatprep.mubr.f32.mxu0 0.0
    %1627 = vmatmul.mubr.f32.gmra.mxu0 %v1550
    %v1628 = vpop.f32.mrf.mxu0
    %v1629 = vadd.f32 %v1541, %v1628
    %v1630 = vpop.f32.mrf.mxu0
    %1631 = vdwg.mxu0
    %1632 = vxpose.xlu0.b32.start [1/16] %v1066, 128
    %1633 = vxpose.xlu0.b32.cont [2/16] %v1067, 128
    %1634 = vxpose.xlu0.b32.cont [3/16] %v1068, 128
    %1635 = vxpose.xlu0.b32.cont [4/16] 0.0, 128
    %1636 = vxpose.xlu0.b32.cont [5/16] 0.0, 128
    %1637 = vxpose.xlu0.b32.cont [6/16] 0.0, 128
    %1638 = vxpose.xlu0.b32.cont [7/16] 0.0, 128
    %1639 = vxpose.xlu0.b32.cont [8/16] 0.0, 128
    %1640 = vxpose.xlu0.b32.cont [9/16] 0.0, 128
    %1641 = vxpose.xlu0.b32.cont [10/16] 0.0, 128
    %1642 = vxpose.xlu0.b32.cont [11/16] 0.0, 128
    %1643 = vxpose.xlu0.b32.cont [12/16] 0.0, 128
    %1644 = vxpose.xlu0.b32.cont [13/16] 0.0, 128
    %1645 = vxpose.xlu0.b32.cont [14/16] 0.0, 128
    %1646 = vxpose.xlu0.b32.cont [15/16] 0.0, 128
    %1647 = vxpose.xlu0.b32.end [16/16] 0.0, 128
    %v1648 = vpop.trf.xlu0
    %v1649 = vpop.trf.xlu0
    %v1650 = vpop.trf.xlu0
    %v1651 = vpop.trf.xlu0
    %v1652 = vpop.trf.xlu0
    %v1653 = vpop.trf.xlu0
    %v1654 = vpop.trf.xlu0
    %v1655 = vpop.trf.xlu0
    %v1656 = vpop.trf.xlu0
    %v1657 = vpop.trf.xlu0
    %v1658 = vpop.trf.xlu0
    %v1659 = vpop.trf.xlu0
    %v1660 = vpop.trf.xlu0
    %v1661 = vpop.trf.xlu0
    %v1662 = vpop.trf.xlu0
    %v1663 = vpop.trf.xlu0
    %vm1664 = vcmask 195584
    %v1666 = vsel %vm1664, %v1648, 0
    %v1669 = vsel %vm1664, %v1649, 0
    %1671 = vmatprep.subr.mxu0 0.0
    %1672 = vmatpush1.msra.mxu0 0.0
    %1673 = vmatprep.subr.mxu0 0.0
    %1674 = vmatpush1.msra.mxu0 0.0
    %1675 = vmatprep.subr.mxu0 0.0
    %1676 = vmatpush1.msra.mxu0 0.0
    %1677 = vmatprep.subr.mxu0 0.0
    %1678 = vmatpush1.msra.mxu0 0.0
    %1679 = vmatprep.subr.mxu0 0.0
    %1680 = vmatpush1.msra.mxu0 0.0
    %1681 = vmatprep.subr.mxu0 0.0
    %1682 = vmatpush1.msra.mxu0 0.0
    %1683 = vmatprep.subr.mxu0 0.0
    %1684 = vmatpush1.msra.mxu0 0.0
    %1685 = vmatprep.subr.mxu0 0.0
    %1686 = vmatpush1.msra.mxu0 0.0
    %1687 = vmatprep.subr.mxu0 0.0
    %1688 = vmatpush1.msra.mxu0 0.0
    %1689 = vmatprep.subr.mxu0 0.0
    %1690 = vmatpush1.msra.mxu0 0.0
    %1691 = vmatprep.subr.mxu0 0.0
    %1692 = vmatpush1.msra.mxu0 0.0
    %1693 = vmatprep.subr.mxu0 0.0
    %1694 = vmatpush1.msra.mxu0 0.0
    %1695 = vmatprep.subr.mxu0 0.0
    %1696 = vmatpush1.msra.mxu0 0.0
    %1697 = vmatprep.subr.mxu0 0.0
    %1698 = vmatpush1.msra.mxu0 %v1629
    %1699 = vmatprep.subr.mxu0 0.0
    %1700 = vmatpush1.msra.mxu0 %v1624
    %1701 = vmatprep.subr.mxu0 0.0
    %1702 = vmatpush1.msra.mxu0 %v1619
    %1703 = vmatprep.subr.mxu0 0.0
    %1704 = vmatpush2.msra.mxu0 0.0
    %1705 = vmatprep.subr.mxu0 0.0
    %1706 = vmatpush2.msra.mxu0 0.0
    %1707 = vmatprep.subr.mxu0 0.0
    %1708 = vmatpush2.msra.mxu0 0.0
    %1709 = vmatprep.subr.mxu0 0.0
    %1710 = vmatpush2.msra.mxu0 0.0
    %1711 = vmatprep.subr.mxu0 0.0
    %1712 = vmatpush2.msra.mxu0 0.0
    %1713 = vmatprep.subr.mxu0 0.0
    %1714 = vmatpush2.msra.mxu0 0.0
    %1715 = vmatprep.subr.mxu0 0.0
    %1716 = vmatpush2.msra.mxu0 0.0
    %1717 = vmatprep.subr.mxu0 0.0
    %1718 = vmatpush2.msra.mxu0 0.0
    %1719 = vmatprep.subr.mxu0 0.0
    %1720 = vmatpush2.msra.mxu0 0.0
    %1721 = vmatprep.subr.mxu0 0.0
    %1722 = vmatpush2.msra.mxu0 0.0
    %1723 = vmatprep.subr.mxu0 0.0
    %1724 = vmatpush2.msra.mxu0 0.0
    %1725 = vmatprep.subr.mxu0 0.0
    %1726 = vmatpush2.msra.mxu0 0.0
    %1727 = vmatprep.subr.mxu0 0.0
    %1728 = vmatpush2.msra.mxu0 0.0
    %1729 = vmatprep.subr.mxu0 0.0
    %1730 = vmatpush2.msra.mxu0 0.0
    %1731 = vmatprep.subr.mxu0 0.0
    %1732 = vmatpush2.msra.mxu0 0.0
    %1733 = vmatprep.subr.mxu0 0.0
    %1734 = vmatpush2.msra.mxu0 0.0
    %1735 = vmatprep.mubr.f32.mxu0 0.0
    %1736 = vmatmul.mubr.f32.gmra.mxu0 %v1666
    %v1737 = vpop.f32.mrf.mxu0
    %v1738 = vadd.f32 0.0, %v1737
    %v1739 = vpop.f32.mrf.mxu0
    %1740 = vmatprep.mubr.f32.mxu0 0.0
    %1741 = vmatmul.mubr.f32.gmra.mxu0 %v1669
    %v1742 = vpop.f32.mrf.mxu0
    %v1743 = vadd.f32 0.0, %v1742
    %v1744 = vpop.f32.mrf.mxu0
    %1745 = vdwg.mxu0
    %v1746 = vsel %vm712, %v1738, 0.0
    %1747 = vadd.xlane.f32.xlu0 %v1746
    %v1748 = vpop.xlane.xlu0 %1747
    %vm1749 = vcmask 254976
    %v1750 = vsel %vm1749, %v1743, 0.0
    %1751 = vadd.xlane.f32.xlu0 %v1750
    %v1752 = vpop.xlane.xlu0 %1751
    %v1753 = vmul.f32 %v1748, %v1485
    %v1754 = vmul.f32 %v1752, %v1485
    %v1755 = vsub.f32 %v1738, %v1753
    %v1756 = vsub.f32 %v1743, %v1754
    %v1757 = vmul.f32 %v1755, %v1755
    %v1758 = vmul.f32 %v1756, %v1756
    %v1759 = vsel %vm712, %v1757, 0.0
    %1760 = vadd.xlane.f32.xlu0 %v1759
    %v1761 = vpop.xlane.xlu0 %1760
    %v1762 = vsel %vm1749, %v1758, 0.0
    %1763 = vadd.xlane.f32.xlu0 %v1762
    %v1764 = vpop.xlane.xlu0 %1763
    %v1765 = vmul.f32 %v1761, %v1485
    %v1766 = vmul.f32 %v1764, %v1485
    %v1767 = vadd.f32 %v1765, 1e-05
    %v1768 = vadd.f32 %v1766, 1e-05
    %v1769 = vrsqrt.pop %v1767
    %v1770 = vrsqrt.pop %v1768
    %v1771 = vmul.f32 %v1755, %v1769
    %v1772 = vmul.f32 %v1756, %v1770
    %v1774 = vlaneseq
    %v1775 = vshrl.u32 %v1774, 7
    %v1776 = vsub.s32 0, %v1775
    %v1777 = vrot.slane %v1273, %v1776
    %v1779 = vmul.f32 %v1771, %v1777
    %v1780 = vmul.f32 %v1772, %v1777
    %v1782 = vlaneseq
    %v1783 = vshrl.u32 %v1782, 7
    %v1784 = vsub.s32 0, %v1783
    %v1785 = vrot.slane %v1274, %v1784
    %v1787 = vadd.f32 %v1779, %v1785
    %v1788 = vadd.f32 %v1780, %v1785
    %v1790 = vsel %vm712, %v1029, 0
    %v1792 = vsel %vm712, %v1030, 0
    %1794 = vmatprep.subr.mxu0 0.0
    %1795 = vmatpush1.msra.mxu0 0.0
    %1796 = vmatprep.subr.mxu0 0.0
    %1797 = vmatpush1.msra.mxu0 0.0
    %1798 = vmatprep.subr.mxu0 0.0
    %1799 = vmatpush1.msra.mxu0 0.0
    %1800 = vmatprep.subr.mxu0 0.0
    %1801 = vmatpush1.msra.mxu0 0.0
    %1802 = vmatprep.subr.mxu0 0.0
    %1803 = vmatpush1.msra.mxu0 0.0
    %1804 = vmatprep.subr.mxu0 0.0
    %1805 = vmatpush1.msra.mxu0 0.0
    %1806 = vmatprep.subr.mxu0 0.0
    %1807 = vmatpush1.msra.mxu0 0.0
    %1808 = vmatprep.subr.mxu0 0.0
    %1809 = vmatpush1.msra.mxu0 0.0
    %1810 = vmatprep.subr.mxu0 0.0
    %1811 = vmatpush1.msra.mxu0 0.0
    %1812 = vmatprep.subr.mxu0 0.0
    %1813 = vmatpush1.msra.mxu0 0.0
    %1814 = vmatprep.subr.mxu0 0.0
    %1815 = vmatpush1.msra.mxu0 0.0
    %1816 = vmatprep.subr.mxu0 0.0
    %1817 = vmatpush1.msra.mxu0 0.0
    %1818 = vmatprep.subr.mxu0 0.0
    %1819 = vmatpush1.msra.mxu0 %v1282
    %1820 = vmatprep.subr.mxu0 0.0
    %1821 = vmatpush1.msra.mxu0 %v1281
    %1822 = vmatprep.subr.mxu0 0.0
    %1823 = vmatpush1.msra.mxu0 %v1280
    %1824 = vmatprep.subr.mxu0 0.0
    %1825 = vmatpush1.msra.mxu0 %v1279
    %1826 = vmatprep.subr.mxu0 0.0
    %1827 = vmatpush2.msra.mxu0 0.0
    %1828 = vmatprep.subr.mxu0 0.0
    %1829 = vmatpush2.msra.mxu0 0.0
    %1830 = vmatprep.subr.mxu0 0.0
    %1831 = vmatpush2.msra.mxu0 0.0
    %1832 = vmatprep.subr.mxu0 0.0
    %1833 = vmatpush2.msra.mxu0 0.0
    %1834 = vmatprep.subr.mxu0 0.0
    %1835 = vmatpush2.msra.mxu0 0.0
    %1836 = vmatprep.subr.mxu0 0.0
    %1837 = vmatpush2.msra.mxu0 0.0
    %1838 = vmatprep.subr.mxu0 0.0
    %1839 = vmatpush2.msra.mxu0 0.0
    %1840 = vmatprep.subr.mxu0 0.0
    %1841 = vmatpush2.msra.mxu0 0.0
    %1842 = vmatprep.subr.mxu0 0.0
    %1843 = vmatpush2.msra.mxu0 0.0
    %1844 = vmatprep.subr.mxu0 0.0
    %1845 = vmatpush2.msra.mxu0 0.0
    %1846 = vmatprep.subr.mxu0 0.0
    %1847 = vmatpush2.msra.mxu0 0.0
    %1848 = vmatprep.subr.mxu0 0.0
    %1849 = vmatpush2.msra.mxu0 0.0
    %1850 = vmatprep.subr.mxu0 0.0
    %1851 = vmatpush2.msra.mxu0 0.0
    %1852 = vmatprep.subr.mxu0 0.0
    %1853 = vmatpush2.msra.mxu0 0.0
    %1854 = vmatprep.subr.mxu0 0.0
    %1855 = vmatpush2.msra.mxu0 0.0
    %1856 = vmatprep.subr.mxu0 0.0
    %1857 = vmatpush2.msra.mxu0 0.0
    %1858 = vmatprep.mubr.f32.mxu0 0.0
    %1859 = vmatmul.mubr.f32.gmra.mxu0 %v1790
    %v1860 = vpop.f32.mrf.mxu0
    %v1861 = vadd.f32 0.0, %v1860
    %v1862 = vpop.f32.mrf.mxu0
    %1863 = vmatprep.mubr.f32.mxu0 0.0
    %1864 = vmatmul.mubr.f32.gmra.mxu0 %v1792
    %v1865 = vpop.f32.mrf.mxu0
    %v1866 = vadd.f32 0.0, %v1865
    %v1867 = vpop.f32.mrf.mxu0
    %1868 = vdwg.mxu0
    %v1870 = vsel %vm712, %v1787, 0
    %v1873 = vsel %vm712, %v1788, 0
    %1875 = vmatprep.subr.mxu0 0.0
    %1876 = vmatpush1.msra.mxu0 0.0
    %1877 = vmatprep.subr.mxu0 0.0
    %1878 = vmatpush1.msra.mxu0 0.0
    %1879 = vmatprep.subr.mxu0 0.0
    %1880 = vmatpush1.msra.mxu0 0.0
    %1881 = vmatprep.subr.mxu0 0.0
    %1882 = vmatpush1.msra.mxu0 0.0
    %1883 = vmatprep.subr.mxu0 0.0
    %1884 = vmatpush1.msra.mxu0 0.0
    %1885 = vmatprep.subr.mxu0 0.0
    %1886 = vmatpush1.msra.mxu0 0.0
    %1887 = vmatprep.subr.mxu0 0.0
    %1888 = vmatpush1.msra.mxu0 0.0
    %1889 = vmatprep.subr.mxu0 0.0
    %1890 = vmatpush1.msra.mxu0 0.0
    %1891 = vmatprep.subr.mxu0 0.0
    %1892 = vmatpush1.msra.mxu0 0.0
    %1893 = vmatprep.subr.mxu0 0.0
    %1894 = vmatpush1.msra.mxu0 0.0
    %1895 = vmatprep.subr.mxu0 0.0
    %1896 = vmatpush1.msra.mxu0 0.0
    %1897 = vmatprep.subr.mxu0 0.0
    %1898 = vmatpush1.msra.mxu0 0.0
    %1899 = vmatprep.subr.mxu0 0.0
    %1900 = vmatpush1.msra.mxu0 %v1278
    %1901 = vmatprep.subr.mxu0 0.0
    %1902 = vmatpush1.msra.mxu0 %v1277
    %1903 = vmatprep.subr.mxu0 0.0
    %1904 = vmatpush1.msra.mxu0 %v1276
    %1905 = vmatprep.subr.mxu0 0.0
    %1906 = vmatpush1.msra.mxu0 %v1275
    %1907 = vmatprep.subr.mxu0 0.0
    %1908 = vmatpush2.msra.mxu0 0.0
    %1909 = vmatprep.subr.mxu0 0.0
    %1910 = vmatpush2.msra.mxu0 0.0
    %1911 = vmatprep.subr.mxu0 0.0
    %1912 = vmatpush2.msra.mxu0 0.0
    %1913 = vmatprep.subr.mxu0 0.0
    %1914 = vmatpush2.msra.mxu0 0.0
    %1915 = vmatprep.subr.mxu0 0.0
    %1916 = vmatpush2.msra.mxu0 0.0
    %1917 = vmatprep.subr.mxu0 0.0
    %1918 = vmatpush2.msra.mxu0 0.0
    %1919 = vmatprep.subr.mxu0 0.0
    %1920 = vmatpush2.msra.mxu0 0.0
    %1921 = vmatprep.subr.mxu0 0.0
    %1922 = vmatpush2.msra.mxu0 0.0
    %1923 = vmatprep.subr.mxu0 0.0
    %1924 = vmatpush2.msra.mxu0 0.0
    %1925 = vmatprep.subr.mxu0 0.0
    %1926 = vmatpush2.msra.mxu0 0.0
    %1927 = vmatprep.subr.mxu0 0.0
    %1928 = vmatpush2.msra.mxu0 0.0
    %1929 = vmatprep.subr.mxu0 0.0
    %1930 = vmatpush2.msra.mxu0 0.0
    %1931 = vmatprep.subr.mxu0 0.0
    %1932 = vmatpush2.msra.mxu0 0.0
    %1933 = vmatprep.subr.mxu0 0.0
    %1934 = vmatpush2.msra.mxu0 0.0
    %1935 = vmatprep.subr.mxu0 0.0
    %1936 = vmatpush2.msra.mxu0 0.0
    %1937 = vmatprep.subr.mxu0 0.0
    %1938 = vmatpush2.msra.mxu0 0.0
    %1939 = vmatprep.mubr.f32.mxu0 0.0
    %1940 = vmatmul.mubr.f32.gmra.mxu0 %v1870
    %v1941 = vpop.f32.mrf.mxu0
    %v1942 = vadd.f32 %v1861, %v1941
    %v1943 = vpop.f32.mrf.mxu0
    %1944 = vmatprep.mubr.f32.mxu0 0.0
    %1945 = vmatmul.mubr.f32.gmra.mxu0 %v1873
    %v1946 = vpop.f32.mrf.mxu0
    %v1947 = vadd.f32 %v1866, %v1946
    %v1948 = vpop.f32.mrf.mxu0
    %1949 = vdwg.mxu0
    %v1951 = vlaneseq
    %v1952 = vshrl.u32 %v1951, 7
    %v1953 = vsub.s32 0, %v1952
    %v1954 = vrot.slane %v1283, %v1953
    %v1956 = vadd.f32 %v1942, %v1954
    %v1957 = vadd.f32 %v1947, %v1954
    %v1958 = vmax.f32 %v1956, 0.0
    %v1959 = vmax.f32 %v1957, 0.0
    %v1961 = vlaneseq
    %v1962 = vshrl.u32 %v1961, 7
    %v1963 = vsub.s32 0, %v1962
    %v1964 = vrot.slane %v1288, %v1963
    %v1967 = vsel %vm712, %v1958, 0
    %v1970 = vsel %vm712, %v1959, 0
    %1972 = vmatprep.subr.mxu0 0.0
    %1973 = vmatpush1.msra.mxu0 0.0
    %1974 = vmatprep.subr.mxu0 0.0
    %1975 = vmatpush1.msra.mxu0 0.0
    %1976 = vmatprep.subr.mxu0 0.0
    %1977 = vmatpush1.msra.mxu0 0.0
    %1978 = vmatprep.subr.mxu0 0.0
    %1979 = vmatpush1.msra.mxu0 0.0
    %1980 = vmatprep.subr.mxu0 0.0
    %1981 = vmatpush1.msra.mxu0 0.0
    %1982 = vmatprep.subr.mxu0 0.0
    %1983 = vmatpush1.msra.mxu0 0.0
    %1984 = vmatprep.subr.mxu0 0.0
    %1985 = vmatpush1.msra.mxu0 0.0
    %1986 = vmatprep.subr.mxu0 0.0
    %1987 = vmatpush1.msra.mxu0 0.0
    %1988 = vmatprep.subr.mxu0 0.0
    %1989 = vmatpush1.msra.mxu0 0.0
    %1990 = vmatprep.subr.mxu0 0.0
    %1991 = vmatpush1.msra.mxu0 0.0
    %1992 = vmatprep.subr.mxu0 0.0
    %1993 = vmatpush1.msra.mxu0 0.0
    %1994 = vmatprep.subr.mxu0 0.0
    %1995 = vmatpush1.msra.mxu0 0.0
    %1996 = vmatprep.subr.mxu0 0.0
    %1997 = vmatpush1.msra.mxu0 %v1287
    %1998 = vmatprep.subr.mxu0 0.0
    %1999 = vmatpush1.msra.mxu0 %v1286
    %2000 = vmatprep.subr.mxu0 0.0
    %2001 = vmatpush1.msra.mxu0 %v1285
    %2002 = vmatprep.subr.mxu0 0.0
    %2003 = vmatpush1.msra.mxu0 %v1284
    %2004 = vmatprep.subr.mxu0 0.0
    %2005 = vmatpush2.msra.mxu0 0.0
    %2006 = vmatprep.subr.mxu0 0.0
    %2007 = vmatpush2.msra.mxu0 0.0
    %2008 = vmatprep.subr.mxu0 0.0
    %2009 = vmatpush2.msra.mxu0 0.0
    %2010 = vmatprep.subr.mxu0 0.0
    %2011 = vmatpush2.msra.mxu0 0.0
    %2012 = vmatprep.subr.mxu0 0.0
    %2013 = vmatpush2.msra.mxu0 0.0
    %2014 = vmatprep.subr.mxu0 0.0
    %2015 = vmatpush2.msra.mxu0 0.0
    %2016 = vmatprep.subr.mxu0 0.0
    %2017 = vmatpush2.msra.mxu0 0.0
    %2018 = vmatprep.subr.mxu0 0.0
    %2019 = vmatpush2.msra.mxu0 0.0
    %2020 = vmatprep.subr.mxu0 0.0
    %2021 = vmatpush2.msra.mxu0 0.0
    %2022 = vmatprep.subr.mxu0 0.0
    %2023 = vmatpush2.msra.mxu0 0.0
    %2024 = vmatprep.subr.mxu0 0.0
    %2025 = vmatpush2.msra.mxu0 0.0
    %2026 = vmatprep.subr.mxu0 0.0
    %2027 = vmatpush2.msra.mxu0 0.0
    %2028 = vmatprep.subr.mxu0 0.0
    %2029 = vmatpush2.msra.mxu0 0.0
    %2030 = vmatprep.subr.mxu0 0.0
    %2031 = vmatpush2.msra.mxu0 0.0
    %2032 = vmatprep.subr.mxu0 0.0
    %2033 = vmatpush2.msra.mxu0 0.0
    %2034 = vmatprep.subr.mxu0 0.0
    %2035 = vmatpush2.msra.mxu0 0.0
    %2036 = vmatprep.mubr.f32.mxu0 0.0
    %2037 = vmatmul.mubr.f32.gmra.mxu0 %v1967
    %v2038 = vpop.f32.mrf.mxu0
    %v2039 = vadd.f32 %v1964, %v2038
    %v2040 = vpop.f32.mrf.mxu0
    %2041 = vmatprep.mubr.f32.mxu0 0.0
    %2042 = vmatmul.mubr.f32.gmra.mxu0 %v1970
    %v2043 = vpop.f32.mrf.mxu0
    %v2044 = vadd.f32 %v1964, %v2043
    %v2045 = vpop.f32.mrf.mxu0
    %2046 = vdwg.mxu0
    %v2048 = vsel %vm1173, %v2044, 0
    %2050 = vmatprep.subr.mxu0 0.0
    %2051 = vmatpush1.msra.mxu0 0.0
    %2052 = vmatprep.subr.mxu0 0.0
    %2053 = vmatpush1.msra.mxu0 0.0
    %2054 = vmatprep.subr.mxu0 0.0
    %2055 = vmatpush1.msra.mxu0 0.0
    %2056 = vmatprep.subr.mxu0 0.0
    %2057 = vmatpush1.msra.mxu0 0.0
    %2058 = vmatprep.subr.mxu0 0.0
    %2059 = vmatpush1.msra.mxu0 0.0
    %2060 = vmatprep.subr.mxu0 0.0
    %2061 = vmatpush1.msra.mxu0 0.0
    %2062 = vmatprep.subr.mxu0 0.0
    %2063 = vmatpush1.msra.mxu0 0.0
    %2064 = vmatprep.subr.mxu0 0.0
    %2065 = vmatpush1.msra.mxu0 0.0
    %2066 = vmatprep.subr.mxu0 0.0
    %2067 = vmatpush1.msra.mxu0 0.0
    %2068 = vmatprep.subr.mxu0 0.0
    %2069 = vmatpush1.msra.mxu0 0.0
    %2070 = vmatprep.subr.mxu0 0.0
    %2071 = vmatpush1.msra.mxu0 0.0
    %2072 = vmatprep.subr.mxu0 0.0
    %2073 = vmatpush1.msra.mxu0 0.0
    %2074 = vmatprep.subr.mxu0 0.0
    %2075 = vmatpush1.msra.mxu0 0.0
    %2076 = vmatprep.subr.mxu0 0.0
    %2077 = vmatpush1.msra.mxu0 0.0
    %2078 = vmatprep.subr.mxu0 0.0
    %2079 = vmatpush1.msra.mxu0 %v2048
    %2080 = vmatprep.subr.mxu0 0.0
    %2081 = vmatpush1.msra.mxu0 %v2039
    %2082 = vmatprep.subr.mxu0 0.0
    %2083 = vmatpush2.msra.mxu0 0.0
    %2084 = vmatprep.subr.mxu0 0.0
    %2085 = vmatpush2.msra.mxu0 0.0
    %2086 = vmatprep.subr.mxu0 0.0
    %2087 = vmatpush2.msra.mxu0 0.0
    %2088 = vmatprep.subr.mxu0 0.0
    %2089 = vmatpush2.msra.mxu0 0.0
    %2090 = vmatprep.subr.mxu0 0.0
    %2091 = vmatpush2.msra.mxu0 0.0
    %2092 = vmatprep.subr.mxu0 0.0
    %2093 = vmatpush2.msra.mxu0 0.0
    %2094 = vmatprep.subr.mxu0 0.0
    %2095 = vmatpush2.msra.mxu0 0.0
    %2096 = vmatprep.subr.mxu0 0.0
    %2097 = vmatpush2.msra.mxu0 0.0
    %2098 = vmatprep.subr.mxu0 0.0
    %2099 = vmatpush2.msra.mxu0 0.0
    %2100 = vmatprep.subr.mxu0 0.0
    %2101 = vmatpush2.msra.mxu0 0.0
    %2102 = vmatprep.subr.mxu0 0.0
    %2103 = vmatpush2.msra.mxu0 0.0
    %2104 = vmatprep.subr.mxu0 0.0
    %2105 = vmatpush2.msra.mxu0 0.0
    %2106 = vmatprep.subr.mxu0 0.0
    %2107 = vmatpush2.msra.mxu0 0.0
    %2108 = vmatprep.subr.mxu0 0.0
    %2109 = vmatpush2.msra.mxu0 0.0
    %2110 = vmatprep.subr.mxu0 0.0
    %2111 = vmatpush2.msra.mxu0 0.0
    %2112 = vmatprep.subr.mxu0 0.0
    %2113 = vmatpush2.msra.mxu0 0.0
    %2114 = vmatprep.mubr.f32.mxu0 0.0
    %2115 = vmatmul.mubr.f32.gmra.mxu0 %v1165
    %v2116 = vpop.f32.mrf.mxu0
    %v2117 = vadd.f32 0.0, %v2116
    %v2118 = vpop.f32.mrf.mxu0
    %2119 = vmatprep.mubr.f32.mxu0 0.0
    %2120 = vmatmul.mubr.f32.gmra.mxu0 %v1168
    %v2121 = vpop.f32.mrf.mxu0
    %v2122 = vadd.f32 0.0, %v2121
    %v2123 = vpop.f32.mrf.mxu0
    %2124 = vmatprep.mubr.f32.mxu0 0.0
    %2125 = vmatmul.mubr.f32.gmra.mxu0 %v1171
    %v2126 = vpop.f32.mrf.mxu0
    %v2127 = vadd.f32 0.0, %v2126
    %v2128 = vpop.f32.mrf.mxu0
    %2129 = vdwg.mxu0
    %v2130 = vld [vmem:[#allocation28] sm:$0xff]
    %v2131 = vld [vmem:[#allocation28 + $0x8] sm:$0xff]
    %v2132 = vld [vmem:[#allocation28 + $0x10] sm:$0xff]
    %v2133 = vld [vmem:[#allocation28 + $0x18] sm:$0xff]
    %v2134 = vld [vmem:[%s63] sm:$0x1]
    %v2135 = vld [vmem:[#allocation29] sm:$0xff]
    %v2136 = vld [vmem:[#allocation29 + $0x8] sm:$0xff]
    %v2137 = vld [vmem:[#allocation29 + $0x10] sm:$0xff]
    %v2138 = vld [vmem:[#allocation29 + $0x18] sm:$0xff]
    %v2139 = vld [vmem:[#allocation31] sm:$0x1]
    %v2140 = vld [vmem:[#allocation32] sm:$0x1]
    %v2141 = vld [vmem:[#allocation34] sm:$0xff]
    %v2142 = vld [vmem:[#allocation34 + $0x8] sm:$0xff]
    %v2143 = vld [vmem:[#allocation34 + $0x10] sm:$0xff]
    %v2144 = vld [vmem:[#allocation34 + $0x18] sm:$0xff]
    %v2145 = vld [vmem:[#allocation35] sm:$0x1]
    %v2146 = vld [vmem:[#allocation37] sm:$0x1]
    %v2147 = vld [vmem:[#allocation38] sm:$0x1]
    %v2148 = vld [vmem:[#allocation40] sm:$0xff]
    %v2149 = vld [vmem:[#allocation40 + $0x8] sm:$0xff]
    %v2150 = vld [vmem:[#allocation40 + $0x10] sm:$0xff]
    %v2151 = vld [vmem:[#allocation40 + $0x18] sm:$0xff]
    %v2152 = vld [vmem:[#allocation41] sm:$0xff]
    %v2153 = vld [vmem:[#allocation41 + $0x8] sm:$0xff]
    %v2154 = vld [vmem:[#allocation41 + $0x10] sm:$0xff]
    %v2155 = vld [vmem:[#allocation41 + $0x18] sm:$0xff]
    %v2156 = vld [vmem:[#allocation43] sm:$0x1]
    %v2157 = vld [vmem:[#allocation44] sm:$0xff]
    %v2158 = vld [vmem:[#allocation44 + $0x8] sm:$0xff]
    %v2159 = vld [vmem:[#allocation44 + $0x10] sm:$0xff]
    %v2160 = vld [vmem:[#allocation44 + $0x18] sm:$0xff]
    %v2161 = vld [vmem:[#allocation46] sm:$0x1]
    %v2163 = vlaneseq
    %v2164 = vshrl.u32 %v2163, 7
    %v2165 = vsub.s32 0, %v2164
    %v2166 = vrot.slane %v2134, %v2165
    %2168 = vmatprep.subr.mxu0 0.0
    %2169 = vmatpush1.msra.mxu0 0.0
    %2170 = vmatprep.subr.mxu0 0.0
    %2171 = vmatpush1.msra.mxu0 0.0
    %2172 = vmatprep.subr.mxu0 0.0
    %2173 = vmatpush1.msra.mxu0 0.0
    %2174 = vmatprep.subr.mxu0 0.0
    %2175 = vmatpush1.msra.mxu0 0.0
    %2176 = vmatprep.subr.mxu0 0.0
    %2177 = vmatpush1.msra.mxu0 0.0
    %2178 = vmatprep.subr.mxu0 0.0
    %2179 = vmatpush1.msra.mxu0 0.0
    %2180 = vmatprep.subr.mxu0 0.0
    %2181 = vmatpush1.msra.mxu0 0.0
    %2182 = vmatprep.subr.mxu0 0.0
    %2183 = vmatpush1.msra.mxu0 0.0
    %2184 = vmatprep.subr.mxu0 0.0
    %2185 = vmatpush1.msra.mxu0 0.0
    %2186 = vmatprep.subr.mxu0 0.0
    %2187 = vmatpush1.msra.mxu0 0.0
    %2188 = vmatprep.subr.mxu0 0.0
    %2189 = vmatpush1.msra.mxu0 0.0
    %2190 = vmatprep.subr.mxu0 0.0
    %2191 = vmatpush1.msra.mxu0 0.0
    %2192 = vmatprep.subr.mxu0 0.0
    %2193 = vmatpush1.msra.mxu0 %v2133
    %2194 = vmatprep.subr.mxu0 0.0
    %2195 = vmatpush1.msra.mxu0 %v2132
    %2196 = vmatprep.subr.mxu0 0.0
    %2197 = vmatpush1.msra.mxu0 %v2131
    %2198 = vmatprep.subr.mxu0 0.0
    %2199 = vmatpush1.msra.mxu0 %v2130
    %2200 = vmatprep.subr.mxu0 0.0
    %2201 = vmatpush2.msra.mxu0 0.0
    %2202 = vmatprep.subr.mxu0 0.0
    %2203 = vmatpush2.msra.mxu0 0.0
    %2204 = vmatprep.subr.mxu0 0.0
    %2205 = vmatpush2.msra.mxu0 0.0
    %2206 = vmatprep.subr.mxu0 0.0
    %2207 = vmatpush2.msra.mxu0 0.0
    %2208 = vmatprep.subr.mxu0 0.0
    %2209 = vmatpush2.msra.mxu0 0.0
    %2210 = vmatprep.subr.mxu0 0.0
    %2211 = vmatpush2.msra.mxu0 0.0
    %2212 = vmatprep.subr.mxu0 0.0
    %2213 = vmatpush2.msra.mxu0 0.0
    %2214 = vmatprep.subr.mxu0 0.0
    %2215 = vmatpush2.msra.mxu0 0.0
    %2216 = vmatprep.subr.mxu0 0.0
    %2217 = vmatpush2.msra.mxu0 0.0
    %2218 = vmatprep.subr.mxu0 0.0
    %2219 = vmatpush2.msra.mxu0 0.0
    %2220 = vmatprep.subr.mxu0 0.0
    %2221 = vmatpush2.msra.mxu0 0.0
    %2222 = vmatprep.subr.mxu0 0.0
    %2223 = vmatpush2.msra.mxu0 0.0
    %2224 = vmatprep.subr.mxu0 0.0
    %2225 = vmatpush2.msra.mxu0 0.0
    %2226 = vmatprep.subr.mxu0 0.0
    %2227 = vmatpush2.msra.mxu0 0.0
    %2228 = vmatprep.subr.mxu0 0.0
    %2229 = vmatpush2.msra.mxu0 0.0
    %2230 = vmatprep.subr.mxu0 0.0
    %2231 = vmatpush2.msra.mxu0 0.0
    %2232 = vmatprep.mubr.f32.mxu0 0.0
    %2233 = vmatmul.mubr.f32.gmra.mxu0 %v1385
    %v2234 = vpop.f32.mrf.mxu0
    %v2235 = vadd.f32 %v2166, %v2234
    %v2236 = vpop.f32.mrf.mxu0
    %2237 = vmatprep.mubr.f32.mxu0 0.0
    %2238 = vmatmul.mubr.f32.gmra.mxu0 %v1388
    %v2239 = vpop.f32.mrf.mxu0
    %v2240 = vadd.f32 %v2166, %v2239
    %v2241 = vpop.f32.mrf.mxu0
    %2242 = vmatprep.mubr.f32.mxu0 0.0
    %2243 = vmatmul.mubr.f32.gmra.mxu0 %v1391
    %v2244 = vpop.f32.mrf.mxu0
    %v2245 = vadd.f32 %v2166, %v2244
    %v2246 = vpop.f32.mrf.mxu0
    %2247 = vdwg.mxu0
    %v2249 = vsel %vm712, %v2117, 0
    %v2252 = vsel %vm712, %v2122, 0
    %v2255 = vsel %vm712, %v2127, 0
    %2257 = vmatprep.subr.mxu0 0.0
    %2258 = vmatpush1.msra.mxu0 0.0
    %2259 = vmatprep.subr.mxu0 0.0
    %2260 = vmatpush1.msra.mxu0 0.0
    %2261 = vmatprep.subr.mxu0 0.0
    %2262 = vmatpush1.msra.mxu0 0.0
    %2263 = vmatprep.subr.mxu0 0.0
    %2264 = vmatpush1.msra.mxu0 0.0
    %2265 = vmatprep.subr.mxu0 0.0
    %2266 = vmatpush1.msra.mxu0 0.0
    %2267 = vmatprep.subr.mxu0 0.0
    %2268 = vmatpush1.msra.mxu0 0.0
    %2269 = vmatprep.subr.mxu0 0.0
    %2270 = vmatpush1.msra.mxu0 0.0
    %2271 = vmatprep.subr.mxu0 0.0
    %2272 = vmatpush1.msra.mxu0 0.0
    %2273 = vmatprep.subr.mxu0 0.0
    %2274 = vmatpush1.msra.mxu0 0.0
    %2275 = vmatprep.subr.mxu0 0.0
    %2276 = vmatpush1.msra.mxu0 0.0
    %2277 = vmatprep.subr.mxu0 0.0
    %2278 = vmatpush1.msra.mxu0 0.0
    %2279 = vmatprep.subr.mxu0 0.0
    %2280 = vmatpush1.msra.mxu0 0.0
    %2281 = vmatprep.subr.mxu0 0.0
    %2282 = vmatpush1.msra.mxu0 %v2138
    %2283 = vmatprep.subr.mxu0 0.0
    %2284 = vmatpush1.msra.mxu0 %v2137
    %2285 = vmatprep.subr.mxu0 0.0
    %2286 = vmatpush1.msra.mxu0 %v2136
    %2287 = vmatprep.subr.mxu0 0.0
    %2288 = vmatpush1.msra.mxu0 %v2135
    %2289 = vmatprep.subr.mxu0 0.0
    %2290 = vmatpush2.msra.mxu0 0.0
    %2291 = vmatprep.subr.mxu0 0.0
    %2292 = vmatpush2.msra.mxu0 0.0
    %2293 = vmatprep.subr.mxu0 0.0
    %2294 = vmatpush2.msra.mxu0 0.0
    %2295 = vmatprep.subr.mxu0 0.0
    %2296 = vmatpush2.msra.mxu0 0.0
    %2297 = vmatprep.subr.mxu0 0.0
    %2298 = vmatpush2.msra.mxu0 0.0
    %2299 = vmatprep.subr.mxu0 0.0
    %2300 = vmatpush2.msra.mxu0 0.0
    %2301 = vmatprep.subr.mxu0 0.0
    %2302 = vmatpush2.msra.mxu0 0.0
    %2303 = vmatprep.subr.mxu0 0.0
    %2304 = vmatpush2.msra.mxu0 0.0
    %2305 = vmatprep.subr.mxu0 0.0
    %2306 = vmatpush2.msra.mxu0 0.0
    %2307 = vmatprep.subr.mxu0 0.0
    %2308 = vmatpush2.msra.mxu0 0.0
    %2309 = vmatprep.subr.mxu0 0.0
    %2310 = vmatpush2.msra.mxu0 0.0
    %2311 = vmatprep.subr.mxu0 0.0
    %2312 = vmatpush2.msra.mxu0 0.0
    %2313 = vmatprep.subr.mxu0 0.0
    %2314 = vmatpush2.msra.mxu0 0.0
    %2315 = vmatprep.subr.mxu0 0.0
    %2316 = vmatpush2.msra.mxu0 0.0
    %2317 = vmatprep.subr.mxu0 0.0
    %2318 = vmatpush2.msra.mxu0 0.0
    %2319 = vmatprep.subr.mxu0 0.0
    %2320 = vmatpush2.msra.mxu0 0.0
    %2321 = vmatprep.mubr.f32.mxu0 0.0
    %2322 = vmatmul.mubr.f32.gmra.mxu0 %v2249
    %v2323 = vpop.f32.mrf.mxu0
    %v2324 = vadd.f32 0.0, %v2323
    %v2325 = vpop.f32.mrf.mxu0
    %2326 = vmatprep.mubr.f32.mxu0 0.0
    %2327 = vmatmul.mubr.f32.gmra.mxu0 %v2252
    %v2328 = vpop.f32.mrf.mxu0
    %v2329 = vadd.f32 0.0, %v2328
    %v2330 = vpop.f32.mrf.mxu0
    %2331 = vmatprep.mubr.f32.mxu0 0.0
    %2332 = vmatmul.mubr.f32.gmra.mxu0 %v2255
    %v2333 = vpop.f32.mrf.mxu0
    %v2334 = vadd.f32 0.0, %v2333
    %v2335 = vpop.f32.mrf.mxu0
    %2336 = vdwg.mxu0
    %v2337 = vadd.f32 %v2235, %v2324
    %v2338 = vadd.f32 %v2240, %v2329
    %v2339 = vadd.f32 %v2245, %v2334
    %v2340 = vsel %vm712, %v2337, 0.0
    %2341 = vadd.xlane.f32.xlu0 %v2340
    %v2342 = vpop.xlane.xlu0 %2341
    %v2343 = vsel %vm712, %v2338, 0.0
    %2344 = vadd.xlane.f32.xlu0 %v2343
    %v2345 = vpop.xlane.xlu0 %2344
    %v2346 = vsel %vm712, %v2339, 0.0
    %2347 = vadd.xlane.f32.xlu0 %v2346
    %v2348 = vpop.xlane.xlu0 %2347
    %v2349 = vmul.f32 %v2342, %v1485
    %v2350 = vmul.f32 %v2345, %v1485
    %v2351 = vmul.f32 %v2348, %v1485
    %v2352 = vsub.f32 %v2337, %v2349
    %v2353 = vsub.f32 %v2338, %v2350
    %v2354 = vsub.f32 %v2339, %v2351
    %v2355 = vmul.f32 %v2352, %v2352
    %v2356 = vmul.f32 %v2353, %v2353
    %v2357 = vmul.f32 %v2354, %v2354
    %v2358 = vsel %vm712, %v2355, 0.0
    %2359 = vadd.xlane.f32.xlu0 %v2358
    %v2360 = vpop.xlane.xlu0 %2359
    %v2361 = vsel %vm712, %v2356, 0.0
    %2362 = vadd.xlane.f32.xlu0 %v2361
    %v2363 = vpop.xlane.xlu0 %2362
    %v2364 = vsel %vm712, %v2357, 0.0
    %2365 = vadd.xlane.f32.xlu0 %v2364
    %v2366 = vpop.xlane.xlu0 %2365
    %v2367 = vmul.f32 %v2360, %v1485
    %v2368 = vmul.f32 %v2363, %v1485
    %v2369 = vmul.f32 %v2366, %v1485
    %v2370 = vadd.f32 %v2367, 1e-05
    %v2371 = vadd.f32 %v2368, 1e-05
    %v2372 = vadd.f32 %v2369, 1e-05
    %v2373 = vrsqrt.pop %v2370
    %v2374 = vrsqrt.pop %v2371
    %v2375 = vrsqrt.pop %v2372
    %v2376 = vmul.f32 %v2352, %v2373
    %v2377 = vmul.f32 %v2353, %v2374
    %v2378 = vmul.f32 %v2354, %v2375
    %v2380 = vlaneseq
    %v2381 = vshrl.u32 %v2380, 7
    %v2382 = vsub.s32 0, %v2381
    %v2383 = vrot.slane %v2139, %v2382
    %v2385 = vmul.f32 %v2376, %v2383
    %v2386 = vmul.f32 %v2377, %v2383
    %v2387 = vmul.f32 %v2378, %v2383
    %v2389 = vlaneseq
    %v2390 = vshrl.u32 %v2389, 7
    %v2391 = vsub.s32 0, %v2390
    %v2392 = vrot.slane %v2140, %v2391
    %v2394 = vadd.f32 %v2385, %v2392
    %v2395 = vadd.f32 %v2386, %v2392
    %v2396 = vadd.f32 %v2387, %v2392
    %v2397 = vmax.f32 %v2394, 0.0
    %v2398 = vmax.f32 %v2395, 0.0
    %v2399 = vmax.f32 %v2396, 0.0
    %v2401 = vlaneseq
    %v2402 = vshrl.u32 %v2401, 7
    %v2403 = vsub.s32 0, %v2402
    %v2404 = vrot.slane %v2145, %v2403
    %v2407 = vsel %vm712, %v2397, 0
    %v2410 = vsel %vm712, %v2398, 0
    %v2413 = vsel %vm712, %v2399, 0
    %2415 = vmatprep.subr.mxu0 0.0
    %2416 = vmatpush1.msra.mxu0 0.0
    %2417 = vmatprep.subr.mxu0 0.0
    %2418 = vmatpush1.msra.mxu0 0.0
    %2419 = vmatprep.subr.mxu0 0.0
    %2420 = vmatpush1.msra.mxu0 0.0
    %2421 = vmatprep.subr.mxu0 0.0
    %2422 = vmatpush1.msra.mxu0 0.0
    %2423 = vmatprep.subr.mxu0 0.0
    %2424 = vmatpush1.msra.mxu0 0.0
    %2425 = vmatprep.subr.mxu0 0.0
    %2426 = vmatpush1.msra.mxu0 0.0
    %2427 = vmatprep.subr.mxu0 0.0
    %2428 = vmatpush1.msra.mxu0 0.0
    %2429 = vmatprep.subr.mxu0 0.0
    %2430 = vmatpush1.msra.mxu0 0.0
    %2431 = vmatprep.subr.mxu0 0.0
    %2432 = vmatpush1.msra.mxu0 0.0
    %2433 = vmatprep.subr.mxu0 0.0
    %2434 = vmatpush1.msra.mxu0 0.0
    %2435 = vmatprep.subr.mxu0 0.0
    %2436 = vmatpush1.msra.mxu0 0.0
    %2437 = vmatprep.subr.mxu0 0.0
    %2438 = vmatpush1.msra.mxu0 0.0
    %2439 = vmatprep.subr.mxu0 0.0
    %2440 = vmatpush1.msra.mxu0 %v2144
    %2441 = vmatprep.subr.mxu0 0.0
    %2442 = vmatpush1.msra.mxu0 %v2143
    %2443 = vmatprep.subr.mxu0 0.0
    %2444 = vmatpush1.msra.mxu0 %v2142
    %2445 = vmatprep.subr.mxu0 0.0
    %2446 = vmatpush1.msra.mxu0 %v2141
    %2447 = vmatprep.subr.mxu0 0.0
    %2448 = vmatpush2.msra.mxu0 0.0
    %2449 = vmatprep.subr.mxu0 0.0
    %2450 = vmatpush2.msra.mxu0 0.0
    %2451 = vmatprep.subr.mxu0 0.0
    %2452 = vmatpush2.msra.mxu0 0.0
    %2453 = vmatprep.subr.mxu0 0.0
    %2454 = vmatpush2.msra.mxu0 0.0
    %2455 = vmatprep.subr.mxu0 0.0
    %2456 = vmatpush2.msra.mxu0 0.0
    %2457 = vmatprep.subr.mxu0 0.0
    %2458 = vmatpush2.msra.mxu0 0.0
    %2459 = vmatprep.subr.mxu0 0.0
    %2460 = vmatpush2.msra.mxu0 0.0
    %2461 = vmatprep.subr.mxu0 0.0
    %2462 = vmatpush2.msra.mxu0 0.0
    %2463 = vmatprep.subr.mxu0 0.0
    %2464 = vmatpush2.msra.mxu0 0.0
    %2465 = vmatprep.subr.mxu0 0.0
    %2466 = vmatpush2.msra.mxu0 0.0
    %2467 = vmatprep.subr.mxu0 0.0
    %2468 = vmatpush2.msra.mxu0 0.0
    %2469 = vmatprep.subr.mxu0 0.0
    %2470 = vmatpush2.msra.mxu0 0.0
    %2471 = vmatprep.subr.mxu0 0.0
    %2472 = vmatpush2.msra.mxu0 0.0
    %2473 = vmatprep.subr.mxu0 0.0
    %2474 = vmatpush2.msra.mxu0 0.0
    %2475 = vmatprep.subr.mxu0 0.0
    %2476 = vmatpush2.msra.mxu0 0.0
    %2477 = vmatprep.subr.mxu0 0.0
    %2478 = vmatpush2.msra.mxu0 0.0
    %2479 = vmatprep.mubr.f32.mxu0 0.0
    %2480 = vmatmul.mubr.f32.gmra.mxu0 %v2407
    %v2481 = vpop.f32.mrf.mxu0
    %v2482 = vadd.f32 %v2404, %v2481
    %v2483 = vpop.f32.mrf.mxu0
    %2484 = vmatprep.mubr.f32.mxu0 0.0
    %2485 = vmatmul.mubr.f32.gmra.mxu0 %v2410
    %v2486 = vpop.f32.mrf.mxu0
    %v2487 = vadd.f32 %v2404, %v2486
    %v2488 = vpop.f32.mrf.mxu0
    %2489 = vmatprep.mubr.f32.mxu0 0.0
    %2490 = vmatmul.mubr.f32.gmra.mxu0 %v2413
    %v2491 = vpop.f32.mrf.mxu0
    %v2492 = vadd.f32 %v2404, %v2491
    %v2493 = vpop.f32.mrf.mxu0
    %2494 = vdwg.mxu0
    %2495 = vxpose.xlu0.b32.start [1/16] %v1048, 128
    %2496 = vxpose.xlu0.b32.cont [2/16] %v1049, 128
    %2497 = vxpose.xlu0.b32.cont [3/16] %v1050, 128
    %2498 = vxpose.xlu0.b32.cont [4/16] 0.0, 128
    %2499 = vxpose.xlu0.b32.cont [5/16] 0.0, 128
    %2500 = vxpose.xlu0.b32.cont [6/16] 0.0, 128
    %2501 = vxpose.xlu0.b32.cont [7/16] 0.0, 128
    %2502 = vxpose.xlu0.b32.cont [8/16] 0.0, 128
    %2503 = vxpose.xlu0.b32.cont [9/16] 0.0, 128
    %2504 = vxpose.xlu0.b32.cont [10/16] 0.0, 128
    %2505 = vxpose.xlu0.b32.cont [11/16] 0.0, 128
    %2506 = vxpose.xlu0.b32.cont [12/16] 0.0, 128
    %2507 = vxpose.xlu0.b32.cont [13/16] 0.0, 128
    %2508 = vxpose.xlu0.b32.cont [14/16] 0.0, 128
    %2509 = vxpose.xlu0.b32.cont [15/16] 0.0, 128
    %2510 = vxpose.xlu0.b32.end [16/16] 0.0, 128
    %v2511 = vpop.trf.xlu0
    %v2512 = vpop.trf.xlu0
    %v2513 = vpop.trf.xlu0
    %v2514 = vpop.trf.xlu0
    %v2515 = vpop.trf.xlu0
    %v2516 = vpop.trf.xlu0
    %v2517 = vpop.trf.xlu0
    %v2518 = vpop.trf.xlu0
    %v2519 = vpop.trf.xlu0
    %v2520 = vpop.trf.xlu0
    %v2521 = vpop.trf.xlu0
    %v2522 = vpop.trf.xlu0
    %v2523 = vpop.trf.xlu0
    %v2524 = vpop.trf.xlu0
    %v2525 = vpop.trf.xlu0
    %v2526 = vpop.trf.xlu0
    %v2528 = vsel %vm1664, %v2511, 0
    %v2531 = vsel %vm1664, %v2512, 0
    %2533 = vmatprep.subr.mxu0 0.0
    %2534 = vmatpush1.msra.mxu0 0.0
    %2535 = vmatprep.subr.mxu0 0.0
    %2536 = vmatpush1.msra.mxu0 0.0
    %2537 = vmatprep.subr.mxu0 0.0
    %2538 = vmatpush1.msra.mxu0 0.0
    %2539 = vmatprep.subr.mxu0 0.0
    %2540 = vmatpush1.msra.mxu0 0.0
    %2541 = vmatprep.subr.mxu0 0.0
    %2542 = vmatpush1.msra.mxu0 0.0
    %2543 = vmatprep.subr.mxu0 0.0
    %2544 = vmatpush1.msra.mxu0 0.0
    %2545 = vmatprep.subr.mxu0 0.0
    %2546 = vmatpush1.msra.mxu0 0.0
    %2547 = vmatprep.subr.mxu0 0.0
    %2548 = vmatpush1.msra.mxu0 0.0
    %2549 = vmatprep.subr.mxu0 0.0
    %2550 = vmatpush1.msra.mxu0 0.0
    %2551 = vmatprep.subr.mxu0 0.0
    %2552 = vmatpush1.msra.mxu0 0.0
    %2553 = vmatprep.subr.mxu0 0.0
    %2554 = vmatpush1.msra.mxu0 0.0
    %2555 = vmatprep.subr.mxu0 0.0
    %2556 = vmatpush1.msra.mxu0 0.0
    %2557 = vmatprep.subr.mxu0 0.0
    %2558 = vmatpush1.msra.mxu0 0.0
    %2559 = vmatprep.subr.mxu0 0.0
    %2560 = vmatpush1.msra.mxu0 %v2492
    %2561 = vmatprep.subr.mxu0 0.0
    %2562 = vmatpush1.msra.mxu0 %v2487
    %2563 = vmatprep.subr.mxu0 0.0
    %2564 = vmatpush1.msra.mxu0 %v2482
    %2565 = vmatprep.subr.mxu0 0.0
    %2566 = vmatpush2.msra.mxu0 0.0
    %2567 = vmatprep.subr.mxu0 0.0
    %2568 = vmatpush2.msra.mxu0 0.0
    %2569 = vmatprep.subr.mxu0 0.0
    %2570 = vmatpush2.msra.mxu0 0.0
    %2571 = vmatprep.subr.mxu0 0.0
    %2572 = vmatpush2.msra.mxu0 0.0
    %2573 = vmatprep.subr.mxu0 0.0
    %2574 = vmatpush2.msra.mxu0 0.0
    %2575 = vmatprep.subr.mxu0 0.0
    %2576 = vmatpush2.msra.mxu0 0.0
    %2577 = vmatprep.subr.mxu0 0.0
    %2578 = vmatpush2.msra.mxu0 0.0
    %2579 = vmatprep.subr.mxu0 0.0
    %2580 = vmatpush2.msra.mxu0 0.0
    %2581 = vmatprep.subr.mxu0 0.0
    %2582 = vmatpush2.msra.mxu0 0.0
    %2583 = vmatprep.subr.mxu0 0.0
    %2584 = vmatpush2.msra.mxu0 0.0
    %2585 = vmatprep.subr.mxu0 0.0
    %2586 = vmatpush2.msra.mxu0 0.0
    %2587 = vmatprep.subr.mxu0 0.0
    %2588 = vmatpush2.msra.mxu0 0.0
    %2589 = vmatprep.subr.mxu0 0.0
    %2590 = vmatpush2.msra.mxu0 0.0
    %2591 = vmatprep.subr.mxu0 0.0
    %2592 = vmatpush2.msra.mxu0 0.0
    %2593 = vmatprep.subr.mxu0 0.0
    %2594 = vmatpush2.msra.mxu0 0.0
    %2595 = vmatprep.subr.mxu0 0.0
    %2596 = vmatpush2.msra.mxu0 0.0
    %2597 = vmatprep.mubr.f32.mxu0 0.0
    %2598 = vmatmul.mubr.f32.gmra.mxu0 %v2528
    %v2599 = vpop.f32.mrf.mxu0
    %v2600 = vadd.f32 0.0, %v2599
    %v2601 = vpop.f32.mrf.mxu0
    %2602 = vmatprep.mubr.f32.mxu0 0.0
    %2603 = vmatmul.mubr.f32.gmra.mxu0 %v2531
    %v2604 = vpop.f32.mrf.mxu0
    %v2605 = vadd.f32 0.0, %v2604
    %v2606 = vpop.f32.mrf.mxu0
    %2607 = vdwg.mxu0
    %v2608 = vsel %vm712, %v2600, 0.0
    %2609 = vadd.xlane.f32.xlu0 %v2608
    %v2610 = vpop.xlane.xlu0 %2609
    %vm2611 = vcmask 257024
    %v2612 = vsel %vm2611, %v2605, 0.0
    %2613 = vadd.xlane.f32.xlu0 %v2612
    %v2614 = vpop.xlane.xlu0 %2613
    %v2615 = vmul.f32 %v2610, %v1485
    %v2616 = vmul.f32 %v2614, %v1485
    %v2617 = vsub.f32 %v2600, %v2615
    %v2618 = vsub.f32 %v2605, %v2616
    %v2619 = vmul.f32 %v2617, %v2617
    %v2620 = vmul.f32 %v2618, %v2618
    %v2621 = vsel %vm712, %v2619, 0.0
    %2622 = vadd.xlane.f32.xlu0 %v2621
    %v2623 = vpop.xlane.xlu0 %2622
    %v2624 = vsel %vm2611, %v2620, 0.0
    %2625 = vadd.xlane.f32.xlu0 %v2624
    %v2626 = vpop.xlane.xlu0 %2625
    %v2627 = vmul.f32 %v2623, %v1485
    %v2628 = vmul.f32 %v2626, %v1485
    %v2629 = vadd.f32 %v2627, 1e-05
    %v2630 = vadd.f32 %v2628, 1e-05
    %v2631 = vrsqrt.pop %v2629
    %v2632 = vrsqrt.pop %v2630
    %v2633 = vmul.f32 %v2617, %v2631
    %v2634 = vmul.f32 %v2618, %v2632
    %v2636 = vlaneseq
    %v2637 = vshrl.u32 %v2636, 7
    %v2638 = vsub.s32 0, %v2637
    %v2639 = vrot.slane %v2146, %v2638
    %v2641 = vmul.f32 %v2633, %v2639
    %v2642 = vmul.f32 %v2634, %v2639
    %v2644 = vlaneseq
    %v2645 = vshrl.u32 %v2644, 7
    %v2646 = vsub.s32 0, %v2645
    %v2647 = vrot.slane %v2147, %v2646
    %v2649 = vadd.f32 %v2641, %v2647
    %v2650 = vadd.f32 %v2642, %v2647
    %v2652 = vsel %vm712, %v794, 0
    %v2654 = vsel %vm712, %v795, 0
    %2656 = vmatprep.subr.mxu0 0.0
    %2657 = vmatpush1.msra.mxu0 0.0
    %2658 = vmatprep.subr.mxu0 0.0
    %2659 = vmatpush1.msra.mxu0 0.0
    %2660 = vmatprep.subr.mxu0 0.0
    %2661 = vmatpush1.msra.mxu0 0.0
    %2662 = vmatprep.subr.mxu0 0.0
    %2663 = vmatpush1.msra.mxu0 0.0
    %2664 = vmatprep.subr.mxu0 0.0
    %2665 = vmatpush1.msra.mxu0 0.0
    %2666 = vmatprep.subr.mxu0 0.0
    %2667 = vmatpush1.msra.mxu0 0.0
    %2668 = vmatprep.subr.mxu0 0.0
    %2669 = vmatpush1.msra.mxu0 0.0
    %2670 = vmatprep.subr.mxu0 0.0
    %2671 = vmatpush1.msra.mxu0 0.0
    %2672 = vmatprep.subr.mxu0 0.0
    %2673 = vmatpush1.msra.mxu0 0.0
    %2674 = vmatprep.subr.mxu0 0.0
    %2675 = vmatpush1.msra.mxu0 0.0
    %2676 = vmatprep.subr.mxu0 0.0
    %2677 = vmatpush1.msra.mxu0 0.0
    %2678 = vmatprep.subr.mxu0 0.0
    %2679 = vmatpush1.msra.mxu0 0.0
    %2680 = vmatprep.subr.mxu0 0.0
    %2681 = vmatpush1.msra.mxu0 %v2155
    %2682 = vmatprep.subr.mxu0 0.0
    %2683 = vmatpush1.msra.mxu0 %v2154
    %2684 = vmatprep.subr.mxu0 0.0
    %2685 = vmatpush1.msra.mxu0 %v2153
    %2686 = vmatprep.subr.mxu0 0.0
    %2687 = vmatpush1.msra.mxu0 %v2152
    %2688 = vmatprep.subr.mxu0 0.0
    %2689 = vmatpush2.msra.mxu0 0.0
    %2690 = vmatprep.subr.mxu0 0.0
    %2691 = vmatpush2.msra.mxu0 0.0
    %2692 = vmatprep.subr.mxu0 0.0
    %2693 = vmatpush2.msra.mxu0 0.0
    %2694 = vmatprep.subr.mxu0 0.0
    %2695 = vmatpush2.msra.mxu0 0.0
    %2696 = vmatprep.subr.mxu0 0.0
    %2697 = vmatpush2.msra.mxu0 0.0
    %2698 = vmatprep.subr.mxu0 0.0
    %2699 = vmatpush2.msra.mxu0 0.0
    %2700 = vmatprep.subr.mxu0 0.0
    %2701 = vmatpush2.msra.mxu0 0.0
    %2702 = vmatprep.subr.mxu0 0.0
    %2703 = vmatpush2.msra.mxu0 0.0
    %2704 = vmatprep.subr.mxu0 0.0
    %2705 = vmatpush2.msra.mxu0 0.0
    %2706 = vmatprep.subr.mxu0 0.0
    %2707 = vmatpush2.msra.mxu0 0.0
    %2708 = vmatprep.subr.mxu0 0.0
    %2709 = vmatpush2.msra.mxu0 0.0
    %2710 = vmatprep.subr.mxu0 0.0
    %2711 = vmatpush2.msra.mxu0 0.0
    %2712 = vmatprep.subr.mxu0 0.0
    %2713 = vmatpush2.msra.mxu0 0.0
    %2714 = vmatprep.subr.mxu0 0.0
    %2715 = vmatpush2.msra.mxu0 0.0
    %2716 = vmatprep.subr.mxu0 0.0
    %2717 = vmatpush2.msra.mxu0 0.0
    %2718 = vmatprep.subr.mxu0 0.0
    %2719 = vmatpush2.msra.mxu0 0.0
    %2720 = vmatprep.mubr.f32.mxu0 0.0
    %2721 = vmatmul.mubr.f32.gmra.mxu0 %v2652
    %v2722 = vpop.f32.mrf.mxu0
    %v2723 = vadd.f32 0.0, %v2722
    %v2724 = vpop.f32.mrf.mxu0
    %2725 = vmatprep.mubr.f32.mxu0 0.0
    %2726 = vmatmul.mubr.f32.gmra.mxu0 %v2654
    %v2727 = vpop.f32.mrf.mxu0
    %v2728 = vadd.f32 0.0, %v2727
    %v2729 = vpop.f32.mrf.mxu0
    %2730 = vdwg.mxu0
    %v2732 = vsel %vm712, %v2649, 0
    %v2735 = vsel %vm712, %v2650, 0
    %2737 = vmatprep.subr.mxu0 0.0
    %2738 = vmatpush1.msra.mxu0 0.0
    %2739 = vmatprep.subr.mxu0 0.0
    %2740 = vmatpush1.msra.mxu0 0.0
    %2741 = vmatprep.subr.mxu0 0.0
    %2742 = vmatpush1.msra.mxu0 0.0
    %2743 = vmatprep.subr.mxu0 0.0
    %2744 = vmatpush1.msra.mxu0 0.0
    %2745 = vmatprep.subr.mxu0 0.0
    %2746 = vmatpush1.msra.mxu0 0.0
    %2747 = vmatprep.subr.mxu0 0.0
    %2748 = vmatpush1.msra.mxu0 0.0
    %2749 = vmatprep.subr.mxu0 0.0
    %2750 = vmatpush1.msra.mxu0 0.0
    %2751 = vmatprep.subr.mxu0 0.0
    %2752 = vmatpush1.msra.mxu0 0.0
    %2753 = vmatprep.subr.mxu0 0.0
    %2754 = vmatpush1.msra.mxu0 0.0
    %2755 = vmatprep.subr.mxu0 0.0
    %2756 = vmatpush1.msra.mxu0 0.0
    %2757 = vmatprep.subr.mxu0 0.0
    %2758 = vmatpush1.msra.mxu0 0.0
    %2759 = vmatprep.subr.mxu0 0.0
    %2760 = vmatpush1.msra.mxu0 0.0
    %2761 = vmatprep.subr.mxu0 0.0
    %2762 = vmatpush1.msra.mxu0 %v2151
    %2763 = vmatprep.subr.mxu0 0.0
    %2764 = vmatpush1.msra.mxu0 %v2150
    %2765 = vmatprep.subr.mxu0 0.0
    %2766 = vmatpush1.msra.mxu0 %v2149
    %2767 = vmatprep.subr.mxu0 0.0
    %2768 = vmatpush1.msra.mxu0 %v2148
    %2769 = vmatprep.subr.mxu0 0.0
    %2770 = vmatpush2.msra.mxu0 0.0
    %2771 = vmatprep.subr.mxu0 0.0
    %2772 = vmatpush2.msra.mxu0 0.0
    %2773 = vmatprep.subr.mxu0 0.0
    %2774 = vmatpush2.msra.mxu0 0.0
    %2775 = vmatprep.subr.mxu0 0.0
    %2776 = vmatpush2.msra.mxu0 0.0
    %2777 = vmatprep.subr.mxu0 0.0
    %2778 = vmatpush2.msra.mxu0 0.0
    %2779 = vmatprep.subr.mxu0 0.0
    %2780 = vmatpush2.msra.mxu0 0.0
    %2781 = vmatprep.subr.mxu0 0.0
    %2782 = vmatpush2.msra.mxu0 0.0
    %2783 = vmatprep.subr.mxu0 0.0
    %2784 = vmatpush2.msra.mxu0 0.0
    %2785 = vmatprep.subr.mxu0 0.0
    %2786 = vmatpush2.msra.mxu0 0.0
    %2787 = vmatprep.subr.mxu0 0.0
    %2788 = vmatpush2.msra.mxu0 0.0
    %2789 = vmatprep.subr.mxu0 0.0
    %2790 = vmatpush2.msra.mxu0 0.0
    %2791 = vmatprep.subr.mxu0 0.0
    %2792 = vmatpush2.msra.mxu0 0.0
    %2793 = vmatprep.subr.mxu0 0.0
    %2794 = vmatpush2.msra.mxu0 0.0
    %2795 = vmatprep.subr.mxu0 0.0
    %2796 = vmatpush2.msra.mxu0 0.0
    %2797 = vmatprep.subr.mxu0 0.0
    %2798 = vmatpush2.msra.mxu0 0.0
    %2799 = vmatprep.subr.mxu0 0.0
    %2800 = vmatpush2.msra.mxu0 0.0
    %2801 = vmatprep.mubr.f32.mxu0 0.0
    %2802 = vmatmul.mubr.f32.gmra.mxu0 %v2732
    %v2803 = vpop.f32.mrf.mxu0
    %v2804 = vadd.f32 %v2723, %v2803
    %v2805 = vpop.f32.mrf.mxu0
    %2806 = vmatprep.mubr.f32.mxu0 0.0
    %2807 = vmatmul.mubr.f32.gmra.mxu0 %v2735
    %v2808 = vpop.f32.mrf.mxu0
    %v2809 = vadd.f32 %v2728, %v2808
    %v2810 = vpop.f32.mrf.mxu0
    %2811 = vdwg.mxu0
    %v2813 = vlaneseq
    %v2814 = vshrl.u32 %v2813, 7
    %v2815 = vsub.s32 0, %v2814
    %v2816 = vrot.slane %v2156, %v2815
    %v2818 = vadd.f32 %v2804, %v2816
    %v2819 = vadd.f32 %v2809, %v2816
    %v2820 = vmax.f32 %v2818, 0.0
    %v2821 = vmax.f32 %v2819, 0.0
    %v2823 = vlaneseq
    %v2824 = vshrl.u32 %v2823, 7
    %v2825 = vsub.s32 0, %v2824
    %v2826 = vrot.slane %v2161, %v2825
    %v2829 = vsel %vm712, %v2820, 0
    %v2832 = vsel %vm712, %v2821, 0
    %2834 = vmatprep.subr.mxu0 0.0
    %2835 = vmatpush1.msra.mxu0 0.0
    %2836 = vmatprep.subr.mxu0 0.0
    %2837 = vmatpush1.msra.mxu0 0.0
    %2838 = vmatprep.subr.mxu0 0.0
    %2839 = vmatpush1.msra.mxu0 0.0
    %2840 = vmatprep.subr.mxu0 0.0
    %2841 = vmatpush1.msra.mxu0 0.0
    %2842 = vmatprep.subr.mxu0 0.0
    %2843 = vmatpush1.msra.mxu0 0.0
    %2844 = vmatprep.subr.mxu0 0.0
    %2845 = vmatpush1.msra.mxu0 0.0
    %2846 = vmatprep.subr.mxu0 0.0
    %2847 = vmatpush1.msra.mxu0 0.0
    %2848 = vmatprep.subr.mxu0 0.0
    %2849 = vmatpush1.msra.mxu0 0.0
    %2850 = vmatprep.subr.mxu0 0.0
    %2851 = vmatpush1.msra.mxu0 0.0
    %2852 = vmatprep.subr.mxu0 0.0
    %2853 = vmatpush1.msra.mxu0 0.0
    %2854 = vmatprep.subr.mxu0 0.0
    %2855 = vmatpush1.msra.mxu0 0.0
    %2856 = vmatprep.subr.mxu0 0.0
    %2857 = vmatpush1.msra.mxu0 0.0
    %2858 = vmatprep.subr.mxu0 0.0
    %2859 = vmatpush1.msra.mxu0 %v2160
    %2860 = vmatprep.subr.mxu0 0.0
    %2861 = vmatpush1.msra.mxu0 %v2159
    %2862 = vmatprep.subr.mxu0 0.0
    %2863 = vmatpush1.msra.mxu0 %v2158
    %2864 = vmatprep.subr.mxu0 0.0
    %2865 = vmatpush1.msra.mxu0 %v2157
    %2866 = vmatprep.subr.mxu0 0.0
    %2867 = vmatpush2.msra.mxu0 0.0
    %2868 = vmatprep.subr.mxu0 0.0
    %2869 = vmatpush2.msra.mxu0 0.0
    %2870 = vmatprep.subr.mxu0 0.0
    %2871 = vmatpush2.msra.mxu0 0.0
    %2872 = vmatprep.subr.mxu0 0.0
    %2873 = vmatpush2.msra.mxu0 0.0
    %2874 = vmatprep.subr.mxu0 0.0
    %2875 = vmatpush2.msra.mxu0 0.0
    %2876 = vmatprep.subr.mxu0 0.0
    %2877 = vmatpush2.msra.mxu0 0.0
    %2878 = vmatprep.subr.mxu0 0.0
    %2879 = vmatpush2.msra.mxu0 0.0
    %2880 = vmatprep.subr.mxu0 0.0
    %2881 = vmatpush2.msra.mxu0 0.0
    %2882 = vmatprep.subr.mxu0 0.0
    %2883 = vmatpush2.msra.mxu0 0.0
    %2884 = vmatprep.subr.mxu0 0.0
    %2885 = vmatpush2.msra.mxu0 0.0
    %2886 = vmatprep.subr.mxu0 0.0
    %2887 = vmatpush2.msra.mxu0 0.0
    %2888 = vmatprep.subr.mxu0 0.0
    %2889 = vmatpush2.msra.mxu0 0.0
    %2890 = vmatprep.subr.mxu0 0.0
    %2891 = vmatpush2.msra.mxu0 0.0
    %2892 = vmatprep.subr.mxu0 0.0
    %2893 = vmatpush2.msra.mxu0 0.0
    %2894 = vmatprep.subr.mxu0 0.0
    %2895 = vmatpush2.msra.mxu0 0.0
    %2896 = vmatprep.subr.mxu0 0.0
    %2897 = vmatpush2.msra.mxu0 0.0
    %2898 = vmatprep.mubr.f32.mxu0 0.0
    %2899 = vmatmul.mubr.f32.gmra.mxu0 %v2829
    %v2900 = vpop.f32.mrf.mxu0
    %v2901 = vadd.f32 %v2826, %v2900
    %v2902 = vpop.f32.mrf.mxu0
    %2903 = vmatprep.mubr.f32.mxu0 0.0
    %2904 = vmatmul.mubr.f32.gmra.mxu0 %v2832
    %v2905 = vpop.f32.mrf.mxu0
    %v2906 = vadd.f32 %v2826, %v2905
    %v2907 = vpop.f32.mrf.mxu0
    %2908 = vdwg.mxu0
    %v2909 = vld [vmem:[%s89] sm:$0xff]
    %v2910 = vld [vmem:[%s89 + $0x8] sm:$0xff]
    %v2911 = vld [vmem:[%s89 + $0x10] sm:$0xff]
    %v2912 = vld [vmem:[%s89 + $0x18] sm:$0xff]
    %v2913 = vld [vmem:[#allocation47] sm:$0x1]
    %v2915 = vlaneseq
    %v2916 = vshrl.u32 %v2915, 7
    %v2917 = vsub.s32 0, %v2916
    %v2918 = vrot.slane %v2913, %v2917
    %v2921 = vsel %vm712, %v2901, 0
    %v2924 = vsel %vm712, %v2906, 0
    %2926 = vmatprep.subr.mxu0 0.0
    %2927 = vmatpush1.msra.mxu0 0.0
    %2928 = vmatprep.subr.mxu0 0.0
    %2929 = vmatpush1.msra.mxu0 0.0
    %2930 = vmatprep.subr.mxu0 0.0
    %2931 = vmatpush1.msra.mxu0 0.0
    %2932 = vmatprep.subr.mxu0 0.0
    %2933 = vmatpush1.msra.mxu0 0.0
    %2934 = vmatprep.subr.mxu0 0.0
    %2935 = vmatpush1.msra.mxu0 0.0
    %2936 = vmatprep.subr.mxu0 0.0
    %2937 = vmatpush1.msra.mxu0 0.0
    %2938 = vmatprep.subr.mxu0 0.0
    %2939 = vmatpush1.msra.mxu0 0.0
    %2940 = vmatprep.subr.mxu0 0.0
    %2941 = vmatpush1.msra.mxu0 0.0
    %2942 = vmatprep.subr.mxu0 0.0
    %2943 = vmatpush1.msra.mxu0 0.0
    %2944 = vmatprep.subr.mxu0 0.0
    %2945 = vmatpush1.msra.mxu0 0.0
    %2946 = vmatprep.subr.mxu0 0.0
    %2947 = vmatpush1.msra.mxu0 0.0
    %2948 = vmatprep.subr.mxu0 0.0
    %2949 = vmatpush1.msra.mxu0 0.0
    %2950 = vmatprep.subr.mxu0 0.0
    %2951 = vmatpush1.msra.mxu0 %v2912
    %2952 = vmatprep.subr.mxu0 0.0
    %2953 = vmatpush1.msra.mxu0 %v2911
    %2954 = vmatprep.subr.mxu0 0.0
    %2955 = vmatpush1.msra.mxu0 %v2910
    %2956 = vmatprep.subr.mxu0 0.0
    %2957 = vmatpush1.msra.mxu0 %v2909
    %2958 = vmatprep.subr.mxu0 0.0
    %2959 = vmatpush2.msra.mxu0 0.0
    %2960 = vmatprep.subr.mxu0 0.0
    %2961 = vmatpush2.msra.mxu0 0.0
    %2962 = vmatprep.subr.mxu0 0.0
    %2963 = vmatpush2.msra.mxu0 0.0
    %2964 = vmatprep.subr.mxu0 0.0
    %2965 = vmatpush2.msra.mxu0 0.0
    %2966 = vmatprep.subr.mxu0 0.0
    %2967 = vmatpush2.msra.mxu0 0.0
    %2968 = vmatprep.subr.mxu0 0.0
    %2969 = vmatpush2.msra.mxu0 0.0
    %2970 = vmatprep.subr.mxu0 0.0
    %2971 = vmatpush2.msra.mxu0 0.0
    %2972 = vmatprep.subr.mxu0 0.0
    %2973 = vmatpush2.msra.mxu0 0.0
    %2974 = vmatprep.subr.mxu0 0.0
    %2975 = vmatpush2.msra.mxu0 0.0
    %2976 = vmatprep.subr.mxu0 0.0
    %2977 = vmatpush2.msra.mxu0 0.0
    %2978 = vmatprep.subr.mxu0 0.0
    %2979 = vmatpush2.msra.mxu0 0.0
    %2980 = vmatprep.subr.mxu0 0.0
    %2981 = vmatpush2.msra.mxu0 0.0
    %2982 = vmatprep.subr.mxu0 0.0
    %2983 = vmatpush2.msra.mxu0 0.0
    %2984 = vmatprep.subr.mxu0 0.0
    %2985 = vmatpush2.msra.mxu0 0.0
    %2986 = vmatprep.subr.mxu0 0.0
    %2987 = vmatpush2.msra.mxu0 0.0
    %2988 = vmatprep.subr.mxu0 0.0
    %2989 = vmatpush2.msra.mxu0 0.0
    %2990 = vmatprep.mubr.f32.mxu0 0.0
    %2991 = vmatmul.mubr.f32.gmra.mxu0 %v2921
    %v2992 = vpop.f32.mrf.mxu0
    %v2993 = vadd.f32 %v2918, %v2992
    %v2994 = vpop.f32.mrf.mxu0
    %2995 = vmatprep.mubr.f32.mxu0 0.0
    %2996 = vmatmul.mubr.f32.gmra.mxu0 %v2924
    %v2997 = vpop.f32.mrf.mxu0
    %v2998 = vadd.f32 %v2918, %v2997
    %v2999 = vpop.f32.mrf.mxu0
    %3000 = vdwg.mxu0
    %v3001 = vmax.f32 %v2993, 0.0
    %v3002 = vmax.f32 %v2998, 0.0
    %v3003 = vld [vmem:[%s93] sm:$0xff]
    %v3004 = vld [vmem:[%s93 + $0x8] sm:$0xff]
    %v3005 = vld [vmem:[%s93 + $0x10] sm:$0xff]
    %v3006 = vld [vmem:[%s93 + $0x18] sm:$0xff]
    %v3008 = vsel %vm712, %v3001, 0
    %v3011 = vsel %vm712, %v3002, 0
    %3013 = vmatprep.subr.mxu0 0.0
    %3014 = vmatpush1.msra.mxu0 0.0
    %3015 = vmatprep.subr.mxu0 0.0
    %3016 = vmatpush1.msra.mxu0 0.0
    %3017 = vmatprep.subr.mxu0 0.0
    %3018 = vmatpush1.msra.mxu0 0.0
    %3019 = vmatprep.subr.mxu0 0.0
    %3020 = vmatpush1.msra.mxu0 0.0
    %3021 = vmatprep.subr.mxu0 0.0
    %3022 = vmatpush1.msra.mxu0 0.0
    %3023 = vmatprep.subr.mxu0 0.0
    %3024 = vmatpush1.msra.mxu0 0.0
    %3025 = vmatprep.subr.mxu0 0.0
    %3026 = vmatpush1.msra.mxu0 0.0
    %3027 = vmatprep.subr.mxu0 0.0
    %3028 = vmatpush1.msra.mxu0 0.0
    %3029 = vmatprep.subr.mxu0 0.0
    %3030 = vmatpush1.msra.mxu0 0.0
    %3031 = vmatprep.subr.mxu0 0.0
    %3032 = vmatpush1.msra.mxu0 0.0
    %3033 = vmatprep.subr.mxu0 0.0
    %3034 = vmatpush1.msra.mxu0 0.0
    %3035 = vmatprep.subr.mxu0 0.0
    %3036 = vmatpush1.msra.mxu0 0.0
    %3037 = vmatprep.subr.mxu0 0.0
    %3038 = vmatpush1.msra.mxu0 %v3006
    %3039 = vmatprep.subr.mxu0 0.0
    %3040 = vmatpush1.msra.mxu0 %v3005
    %3041 = vmatprep.subr.mxu0 0.0
    %3042 = vmatpush1.msra.mxu0 %v3004
    %3043 = vmatprep.subr.mxu0 0.0
    %3044 = vmatpush1.msra.mxu0 %v3003
    %3045 = vmatprep.subr.mxu0 0.0
    %3046 = vmatpush2.msra.mxu0 0.0
    %3047 = vmatprep.subr.mxu0 0.0
    %3048 = vmatpush2.msra.mxu0 0.0
    %3049 = vmatprep.subr.mxu0 0.0
    %3050 = vmatpush2.msra.mxu0 0.0
    %3051 = vmatprep.subr.mxu0 0.0
    %3052 = vmatpush2.msra.mxu0 0.0
    %3053 = vmatprep.subr.mxu0 0.0
    %3054 = vmatpush2.msra.mxu0 0.0
    %3055 = vmatprep.subr.mxu0 0.0
    %3056 = vmatpush2.msra.mxu0 0.0
    %3057 = vmatprep.subr.mxu0 0.0
    %3058 = vmatpush2.msra.mxu0 0.0
    %3059 = vmatprep.subr.mxu0 0.0
    %3060 = vmatpush2.msra.mxu0 0.0
    %3061 = vmatprep.subr.mxu0 0.0
    %3062 = vmatpush2.msra.mxu0 0.0
    %3063 = vmatprep.subr.mxu0 0.0
    %3064 = vmatpush2.msra.mxu0 0.0
    %3065 = vmatprep.subr.mxu0 0.0
    %3066 = vmatpush2.msra.mxu0 0.0
    %3067 = vmatprep.subr.mxu0 0.0
    %3068 = vmatpush2.msra.mxu0 0.0
    %3069 = vmatprep.subr.mxu0 0.0
    %3070 = vmatpush2.msra.mxu0 0.0
    %3071 = vmatprep.subr.mxu0 0.0
    %3072 = vmatpush2.msra.mxu0 0.0
    %3073 = vmatprep.subr.mxu0 0.0
    %3074 = vmatpush2.msra.mxu0 0.0
    %3075 = vmatprep.subr.mxu0 0.0
    %3076 = vmatpush2.msra.mxu0 0.0
    %3077 = vmatprep.mubr.f32.mxu0 0.0
    %3078 = vmatmul.mubr.f32.gmra.mxu0 %v3008
    %v3079 = vpop.f32.mrf.mxu0
    %v3080 = vadd.f32 0.0, %v3079
    %v3081 = vpop.f32.mrf.mxu0
    %3082 = vmatprep.mubr.f32.mxu0 0.0
    %3083 = vmatmul.mubr.f32.gmra.mxu0 %v3011
    %v3084 = vpop.f32.mrf.mxu0
    %v3085 = vadd.f32 0.0, %v3084
    %v3086 = vpop.f32.mrf.mxu0
    %3087 = vdwg.mxu0
    %v3088 = vmax.f32 %v3080, 0.0
    %v3089 = vmax.f32 %v3085, 0.0
    %v3090 = vand.u32 2147483647, %v3088
    %v3091 = vand.u32 2147483647, %v3089
    %vm3092 = vcmask 31744
    %v3093 = vsel %vm3092, %v3090, 0.0
    %3094 = vadd.xlane.f32.xlu0 %v3093
    %v3095 = vpop.xlane.xlu0 %3094
    %vm3096 = vcmask 27648
    %v3097 = vsel %vm3096, %v3091, 0.0
    %3098 = vadd.xlane.f32.xlu0 %v3097
    %v3099 = vpop.xlane.xlu0 %3098
    %v3100 = vmax.f32 %v3095, 1e-12
    %v3101 = vmax.f32 %v3099, 1e-12
    %v3102 = vrcp.pop %v3100
    %v3103 = vmul.f32 %v3088, %v3102
    %v3104 = vrcp.pop %v3101
    %v3105 = vmul.f32 %v3089, %v3104
    %v3106 = vsel %vm3092, %v3103, 0.0
    %v3107 = vsel %vm3096, %v3105, 0.0
    %v3108 = vadd.f32 %v3106, %v3107
    %v3109 = vrot.slane %v3108, 4
    %v3110 = vadd.f32 %v3108, %v3109
    %v3111 = vrot.slane %v3110, 2
    %v3112 = vadd.f32 %v3110, %v3111
    %v3113 = vrot.slane %v3112, 1
    %v3114 = vadd.f32 %v3112, %v3113
    %v3115 = vrcp.pop 12.0
    %v3116 = vmul.f32 %v3114, %v3115
    %vm3117 = vcmask 24576
    %3118 = vst.msk [vmem:[#allocation49] sm:$0x1] %vm3117, %v3116
    // Predicated region
    $region310: #{gnn_policy_forward.1} parent=1 // pred_check
      _
    $region311: #{gnn_policy_forward.1} parent=1 // pred_check_branch
      %3120 = sbr.rel (0) target = $region313
    $region312: #{gnn_policy_forward.1} parent=1 // pred_region
      %s3122 = ssub.s32 16, 16
      %3123 = vsyncadd [#allocation4], %s3122
      %s3125 = sshll.u32 [#allocation49], 4
      %s3126 = int_to_ptr.vmem [resolvable:$true] %s3125
      %3128 = dma.vmem_to_hbm [thread:$0]  %s3126, 16, %s95, [#allocation4]
    $region313: #{gnn_policy_forward.1} parent=1 // pred_fallthru
      _
    // Predicated region
    $region314: #{gnn_policy_forward.1} parent=1 // pred_check
      _
    $region315: #{gnn_policy_forward.1} parent=1 // pred_check_branch
      %3130 = sbr.rel (0) target = $region317
    $region316: #{gnn_policy_forward.1} parent=1 // pred_region
      %3131 = dma.done [#allocation4], 16
    $region317: #{gnn_policy_forward.1} parent=1 // pred_fallthru
      _
    %3132 = vsyncpa [#allocation3], 1
    %3133 = vsyncpa [#allocation6], 1
    %3134 = vsyncpa [#allocation9], 1
    %3135 = vsyncpa [#allocation12], 1
    %3136 = vsyncpa [#allocation15], 1
    %3137 = vsyncpa [#allocation18], 1
    %3138 = vsyncpa [#allocation21], 1
    %3139 = vsyncpa [#allocation24], 1
    %3140 = vsyncpa [#allocation27], 1
    %3141 = vsyncpa [#allocation30], 1
    %3142 = vsyncpa [#allocation33], 1
    %3143 = vsyncpa [#allocation36], 1
    %3144 = vsyncpa [#allocation39], 1
    %3145 = vsyncpa [#allocation42], 1
    %3146 = vsyncpa [#allocation45], 1
    %3147 = vsyncpa [#allocation48], 1
    %3148 = vsyncpa [#allocation4], 1

</llo_original>
